<compile_context>
chip_gen: v7x
topology: tpu7x:2x2x1
jax: 0.10.0
libtpu: 0.0.40
codegen_flags: <defaults>
</compile_context>

<pallas_src>
from functools import partial

import jax
import jax.numpy as jnp
from jax import lax
from jax.experimental import pallas as pl
from jax.experimental.pallas import tpu as pltpu

EPS = 1e-5
_VMEM_LIMIT = 32 * 1024 * 1024  # explicit scoped-VMEM budget (safe on v5e/v6e/v7x)


def _round_up(n, m):
    return ((n + m - 1) // m) * m


def _pad2(a, rows, cols):
    return jnp.pad(a, ((0, rows - a.shape[0]), (0, cols - a.shape[1])))


# --------------------------------------------------------------------------
# Kernel 1: batch-tiled matmul (bf16 operands, fp32 accumulate) + global
# per-feature sum / sum-of-squares accumulation for BatchNorm statistics.
# --------------------------------------------------------------------------
def _linear_stats_kernel(x_ref, w_ref, h_ref, stats_ref):
    @pl.when(pl.program_id(0) == 0)
    def _init():
        stats_ref[...] = jnp.zeros_like(stats_ref)

    xb = x_ref[...].astype(jnp.bfloat16)          # bf16 MXU operands
    h = jnp.dot(xb, w_ref[...], preferred_element_type=jnp.float32)
    h_ref[...] = h

    # Fused single-pass statistics: sum and sum-of-squares (var = E[h^2]-E[h]^2).
    s1 = jnp.sum(h, axis=0, keepdims=True)        # (1, F)
    s2 = jnp.sum(h * h, axis=0, keepdims=True)    # (1, F)
    upd = jnp.concatenate(
        [s1, s2, jnp.zeros((6, s1.shape[1]), jnp.float32)], axis=0)  # (8, F)
    stats_ref[...] = stats_ref[...] + upd


# --------------------------------------------------------------------------
# Kernel 2: BatchNorm (train-mode, global batch stats) + ELU, batch-tiled.
# Padded batch rows are forced back to zero so they contribute nothing to the
# next layer's statistics.
# --------------------------------------------------------------------------
def _bn_elu_kernel(h_ref, stats_ref, g_ref, b_ref, o_ref, *, n_rows, tile_n):
    inv_n = 1.0 / float(n_rows)
    mean = stats_ref[0:1, :] * inv_n
    var = stats_ref[1:2, :] * inv_n - mean * mean
    inv = lax.rsqrt(var + EPS)

    h = h_ref[...]
    xhat = (h - mean) * inv
    y = xhat * g_ref[...] + b_ref[...]
    # ELU(alpha=1)
    y = jnp.where(y > 0.0, y, jnp.exp(y) - 1.0)

    # Zero out padded batch rows (global stats correctness for the next layer).
    row = pl.program_id(0) * tile_n + lax.broadcasted_iota(jnp.int32, y.shape, 0)
    y = jnp.where(row < n_rows, y, 0.0)
    o_ref[...] = y


def _fused_layer(x_pad, w_pad, g_pad, b_pad, *, n_rows, tile_n):
    """One Linear -> BN(train) -> ELU layer on padded, lane-dense tensors."""
    n_pad, k_pad = x_pad.shape
    f_pad = w_pad.shape[1]
    num_tiles = n_pad // tile_n

    h, stats = pl.pallas_call(
        _linear_stats_kernel,
        out_shape=(jax.ShapeDtypeStruct((n_pad, f_pad), jnp.float32),
                   jax.ShapeDtypeStruct((8, f_pad), jnp.float32)),
        grid=(num_tiles,),
        in_specs=[
            pl.BlockSpec((tile_n, k_pad), lambda i: (i, 0)),   # x: batch tiled
            pl.BlockSpec((k_pad, f_pad), lambda i: (0, 0)),    # W: VMEM resident
        ],
        out_specs=(
            pl.BlockSpec((tile_n, f_pad), lambda i: (i, 0)),   # h: batch tiled
            pl.BlockSpec((8, f_pad), lambda i: (0, 0)),        # stats accumulator
        ),
        compiler_params=pltpu.CompilerParams(
            dimension_semantics=("arbitrary",),                # stats accumulate
            vmem_limit_bytes=_VMEM_LIMIT),
    )(x_pad, w_pad)

    out = pl.pallas_call(
        partial(_bn_elu_kernel, n_rows=n_rows, tile_n=tile_n),
        out_shape=jax.ShapeDtypeStruct((n_pad, f_pad), jnp.float32),
        grid=(num_tiles,),
        in_specs=[
            pl.BlockSpec((tile_n, f_pad), lambda i: (i, 0)),   # h: batch tiled
            pl.BlockSpec((8, f_pad), lambda i: (0, 0)),        # global stats
            pl.BlockSpec((1, f_pad), lambda i: (0, 0)),        # gamma
            pl.BlockSpec((1, f_pad), lambda i: (0, 0)),        # beta
        ],
        out_specs=pl.BlockSpec((tile_n, f_pad), lambda i: (i, 0)),
        compiler_params=pltpu.CompilerParams(
            dimension_semantics=("parallel",),                 # independent tiles
            vmem_limit_bytes=_VMEM_LIMIT),
    )(h, stats, g_pad, b_pad)
    return out


def mlp_forward(x, params, *, tile_n=256):
    """x: (N, input_size) float32. params from init_params (bf16 weights)."""
    n, in_f = x.shape
    hid = params["w1"].shape[1]
    out_f = params["w3"].shape[1]

    tile_n = min(tile_n, _round_up(n, 8))
    n_pad = _round_up(n, tile_n)
    in_p = _round_up(in_f, 128)
    hid_p = _round_up(hid, 128)
    out_p = _round_up(out_f, 128)

    # Zero-pad everything to lane-dense (multiple-of-128) feature widths.
    x_pad = jnp.pad(x, ((0, n_pad - n), (0, in_p - in_f)))
    w1 = _pad2(params["w1"], in_p, hid_p)
    w2 = _pad2(params["w2"], hid_p, hid_p)
    w3 = _pad2(params["w3"], hid_p, out_p)
    g1 = _pad2(params["g1"], 1, hid_p)
    g2 = _pad2(params["g2"], 1, hid_p)
    g3 = _pad2(params["g3"], 1, out_p)
    be1 = _pad2(params["be1"], 1, hid_p)
    be2 = _pad2(params["be2"], 1, hid_p)
    be3 = _pad2(params["be3"], 1, out_p)

    h = _fused_layer(x_pad, w1, g1, be1, n_rows=n, tile_n=tile_n)
    h = _fused_layer(h, w2, g2, be2, n_rows=n, tile_n=tile_n)
    h = _fused_layer(h, w3, g3, be3, n_rows=n, tile_n=tile_n)
    return h[:n, :out_f]


def init_params(key, input_size, output_size, hidden_size):
    """Deterministic synthetic init.

    Linear weights are stored (in, out) in bf16 (MXU operands).  Linear biases
    are intentionally omitted: followed immediately by train-mode BatchNorm
    they cancel exactly through mean subtraction, so the forward output is
    bit-for-bit-equivalent in exact arithmetic.  BN affine params follow the
    PyTorch default init (gamma=1, beta=0), stored (1, F) fp32.
    """
    ks = jax.random.split(key, 3)

    def linear_w(k, fan_in, fan_out):
        bound = 1.0 / (fan_in ** 0.5)
        w = jax.random.uniform(k, (fan_in, fan_out), jnp.float32, -bound, bound)
        return w.astype(jnp.bfloat16)

    params = dict(
        w1=linear_w(ks[0], input_size, hidden_size),
        w2=linear_w(ks[1], hidden_size, hidden_size),
        w3=linear_w(ks[2], hidden_size, output_size),
        g1=jnp.ones((1, hidden_size), jnp.float32),
        be1=jnp.zeros((1, hidden_size), jnp.float32),
        g2=jnp.ones((1, hidden_size), jnp.float32),
        be2=jnp.zeros((1, hidden_size), jnp.float32),
        g3=jnp.ones((1, output_size), jnp.float32),
        be3=jnp.zeros((1, output_size), jnp.float32),
    )
    return params


def mlp_reference(x, p):
    """Pure-JAX reference mirroring the kernel's numerics (bf16 matmul
    operands, fp32 accumulation, train-mode BN with single-pass variance)."""
    def layer(h_in, w, g, b):
        z = jnp.dot(h_in.astype(jnp.bfloat16), w,
                    preferred_element_type=jnp.float32)
        mean = jnp.mean(z, axis=0, keepdims=True)
        var = jnp.mean(z * z, axis=0, keepdims=True) - mean * mean
        y = (z - mean) * lax.rsqrt(var + EPS) * g + b
        return jnp.where(y > 0.0, y, jnp.exp(y) - 1.0)

    h = layer(x, p["w1"], p["g1"], p["be1"])
    h = layer(h, p["w2"], p["g2"], p["be2"])
    h = layer(h, p["w3"], p["g3"], p["be3"])
    return h


if __name__ == "__main__":
    key = jax.random.PRNGKey(0)
    kx, kp = jax.random.split(key)

    # Modest but tiling-exercising shapes: batch is NOT a tile multiple (tests
    # padded-row masking), features are deliberately not 128-aligned (tests
    # lane padding).  hidden_size matches the module default of 256.
    batch = 500
    input_size = 48
    hidden_size = 256
    output_size = 80

    x = jax.random.normal(kx, (batch, input_size), jnp.float32)
    params = init_params(kp, input_size, output_size, hidden_size)

    out = jax.block_until_ready(jax.jit(mlp_forward)(x, params))

    ref = mlp_reference(x, params)
    assert out.shape == (batch, output_size)
    max_err = float(jnp.max(jnp.abs(out - ref)))
    assert jnp.allclose(out, ref, atol=5e-3, rtol=5e-3), f"mismatch: {max_err}"

    print("KERNEL_OK")
</pallas_src>

<mosaic_0001>
module attributes {stable_mosaic.version = 11 : i64} {
  func.func @_linear_stats_kernel(%arg0: i32, %arg1: memref<256x128xf32, #tpu.memory_space<vmem>>, %arg2: memref<128x256xbf16, #tpu.memory_space<vmem>>, %arg3: memref<256x256xf32, #tpu.memory_space<vmem>>, %arg4: memref<8x256xf32, #tpu.memory_space<vmem>>) attributes {dimension_semantics = [#tpu.dimension_semantics<arbitrary>], iteration_bounds = array<i64: 2>, scalar_prefetch = 0 : i64, scratch_operands = 0 : i64, tpu.core_type = #tpu.core_type<tc>, window_params = [{transform_indices = @transform_0, window_bounds = array<i64: 256, 128>}, {pipeline_mode = #tpu.pipeline_mode<synchronous>, transform_indices = @transform_1, window_bounds = array<i64: 128, 256>}, {transform_indices = @transform_2, window_bounds = array<i64: 256, 256>}, {pipeline_mode = #tpu.pipeline_mode<synchronous>, transform_indices = @transform_3, window_bounds = array<i64: 8, 256>}]} {
    %c0_i32 = arith.constant 0 : i32
    %0 = arith.cmpi eq, %arg0, %c0_i32 : i32
    %1 = arith.extui %0 : i1 to i32
    %c0_i32_0 = arith.constant 0 : i32
    %2 = arith.cmpi ne, %1, %c0_i32_0 : i32
    scf.if %2 {
      %cst_13 = arith.constant 0.000000e+00 : f32
      %18 = vector.broadcast %cst_13 : f32 to vector<8x256xf32>
      %c0_14 = arith.constant 0 : index
      %c0_15 = arith.constant 0 : index
      %19 = vector.load %arg4[%c0_14, %c0_15] : memref<8x256xf32, #tpu.memory_space<vmem>>, vector<8x256xf32>
      tpu.vector_store %arg4[%c0_14, %c0_15], %18 {strides = array<i32>} : memref<8x256xf32, #tpu.memory_space<vmem>>, vector<8x256xf32>,
    } else {
    }
    %c0 = arith.constant 0 : index
    %c0_1 = arith.constant 0 : index
    %3 = vector.load %arg1[%c0, %c0_1] : memref<256x128xf32, #tpu.memory_space<vmem>>, vector<256x128xf32>
    %4 = arith.truncf %3 : vector<256x128xf32> to vector<256x128xbf16>
    %c0_2 = arith.constant 0 : index
    %c0_3 = arith.constant 0 : index
    %5 = vector.load %arg2[%c0_2, %c0_3] : memref<128x256xbf16, #tpu.memory_space<vmem>>, vector<128x256xbf16>
    %cst = arith.constant dense<0.000000e+00> : vector<256x256xf32>
    %6 = tpu.matmul %4, %5, %cst {dimension_numbers = #tpu.dot_dimension_numbers<[1], [0], [0], [1], [0, 0, 1, 1], [], []>} : vector<256x128xbf16>, vector<128x256xbf16>, vector<256x256xf32> -> vector<256x256xf32>
    %c0_4 = arith.constant 0 : index
    %c0_5 = arith.constant 0 : index
    %7 = vector.load %arg3[%c0_4, %c0_5] : memref<256x256xf32, #tpu.memory_space<vmem>>, vector<256x256xf32>
    tpu.vector_store %arg3[%c0_4, %c0_5], %6 {strides = array<i32>} : memref<256x256xf32, #tpu.memory_space<vmem>>, vector<256x256xf32>,
    %cst_6 = arith.constant dense<0.000000e+00> : vector<256xf32>
    %8 = vector.multi_reduction <add>, %6, %cst_6 [0] : vector<256x256xf32> to vector<256xf32>
    %9 = vector.shape_cast %8 : vector<256xf32> to vector<1x256xf32>
    %10 = arith.mulf %6, %6 : vector<256x256xf32>
    %cst_7 = arith.constant dense<0.000000e+00> : vector<256xf32>
    %11 = vector.multi_reduction <add>, %10, %cst_7 [0] : vector<256x256xf32> to vector<256xf32>
    %12 = vector.shape_cast %11 : vector<256xf32> to vector<1x256xf32>
    %cst_8 = arith.constant 0.000000e+00 : f32
    %13 = vector.broadcast %cst_8 : f32 to vector<6x256xf32>
    %14 = tpu.concatenate %9, %12, %13 in 0 : vector<1x256xf32>, vector<1x256xf32>, vector<6x256xf32> -> vector<8x256xf32>
    %c0_9 = arith.constant 0 : index
    %c0_10 = arith.constant 0 : index
    %15 = vector.load %arg4[%c0_9, %c0_10] : memref<8x256xf32, #tpu.memory_space<vmem>>, vector<8x256xf32>
    %16 = arith.addf %15, %14 : vector<8x256xf32>
    %c0_11 = arith.constant 0 : index
    %c0_12 = arith.constant 0 : index
    %17 = vector.load %arg4[%c0_11, %c0_12] : memref<8x256xf32, #tpu.memory_space<vmem>>, vector<8x256xf32>
    tpu.vector_store %arg4[%c0_11, %c0_12], %16 {strides = array<i32>} : memref<8x256xf32, #tpu.memory_space<vmem>>, vector<8x256xf32>,
    return
  }
  func.func @transform_0(%arg0: i32) -> (i32, i32) {
    %c0_i32 = arith.constant 0 : i32
    %c0_i32_0 = arith.constant 0 : i32
    return %arg0, %c0_i32 : i32, i32
  }
  func.func @transform_1(%arg0: i32) -> (i32, i32) {
    %c0_i32 = arith.constant 0 : i32
    %c0_i32_0 = arith.constant 0 : i32
    %c0_i32_1 = arith.constant 0 : i32
    return %c0_i32, %c0_i32_0 : i32, i32
  }
  func.func @transform_2(%arg0: i32) -> (i32, i32) {
    %c0_i32 = arith.constant 0 : i32
    %c0_i32_0 = arith.constant 0 : i32
    return %arg0, %c0_i32 : i32, i32
  }
  func.func @transform_3(%arg0: i32) -> (i32, i32) {
    %c0_i32 = arith.constant 0 : i32
    %c0_i32_0 = arith.constant 0 : i32
    %c0_i32_1 = arith.constant 0 : i32
    return %c0_i32, %c0_i32_0 : i32, i32
  }
}

module attributes {stable_mosaic.version = 11 : i64} {
  func.func @_bn_elu_kernel(%arg0: i32, %arg1: memref<256x256xf32, #tpu.memory_space<vmem>>, %arg2: memref<8x256xf32, #tpu.memory_space<vmem>>, %arg3: memref<1x256xf32, #tpu.memory_space<vmem>>, %arg4: memref<1x256xf32, #tpu.memory_space<vmem>>, %arg5: memref<256x256xf32, #tpu.memory_space<vmem>>) attributes {dimension_semantics = [#tpu.dimension_semantics<parallel>], iteration_bounds = array<i64: 2>, scalar_prefetch = 0 : i64, scratch_operands = 0 : i64, tpu.core_type = #tpu.core_type<tc>, window_params = [{transform_indices = @transform_0, window_bounds = array<i64: 256, 256>}, {pipeline_mode = #tpu.pipeline_mode<synchronous>, transform_indices = @transform_1, window_bounds = array<i64: 8, 256>}, {pipeline_mode = #tpu.pipeline_mode<synchronous>, transform_indices = @transform_2, window_bounds = array<i64: 1, 256>}, {pipeline_mode = #tpu.pipeline_mode<synchronous>, transform_indices = @transform_3, window_bounds = array<i64: 1, 256>}, {transform_indices = @transform_4, window_bounds = array<i64: 256, 256>}]} {
    %c0 = arith.constant 0 : index
    %c0_0 = arith.constant 0 : index
    %0 = vector.load %arg2[%c0, %c0_0] : memref<8x256xf32, #tpu.memory_space<vmem>>, vector<1x256xf32>
    %cst = arith.constant 2.000000e-03 : f32
    %1 = vector.broadcast %cst : f32 to vector<1x256xf32>
    %2 = arith.mulf %0, %1 : vector<1x256xf32>
    %c1 = arith.constant 1 : index
    %c0_1 = arith.constant 0 : index
    %3 = vector.load %arg2[%c1, %c0_1] : memref<8x256xf32, #tpu.memory_space<vmem>>, vector<1x256xf32>
    %cst_2 = arith.constant 2.000000e-03 : f32
    %4 = vector.broadcast %cst_2 : f32 to vector<1x256xf32>
    %5 = arith.mulf %3, %4 : vector<1x256xf32>
    %6 = arith.mulf %2, %2 : vector<1x256xf32>
    %7 = arith.subf %5, %6 : vector<1x256xf32>
    %cst_3 = arith.constant 9.99999974E-6 : f32
    %8 = vector.broadcast %cst_3 : f32 to vector<1x256xf32>
    %9 = arith.addf %7, %8 : vector<1x256xf32>
    %10 = math.rsqrt %9 : vector<1x256xf32>
    %c0_4 = arith.constant 0 : index
    %c0_5 = arith.constant 0 : index
    %11 = vector.load %arg1[%c0_4, %c0_5] : memref<256x256xf32, #tpu.memory_space<vmem>>, vector<256x256xf32>
    %12 = vector.broadcast %2 : vector<1x256xf32> to vector<256x256xf32>
    %13 = arith.subf %11, %12 : vector<256x256xf32>
    %14 = vector.broadcast %10 : vector<1x256xf32> to vector<256x256xf32>
    %15 = arith.mulf %13, %14 : vector<256x256xf32>
    %c0_6 = arith.constant 0 : index
    %c0_7 = arith.constant 0 : index
    %16 = vector.load %arg3[%c0_6, %c0_7] : memref<1x256xf32, #tpu.memory_space<vmem>>, vector<1x256xf32>
    %17 = vector.broadcast %16 : vector<1x256xf32> to vector<256x256xf32>
    %18 = arith.mulf %15, %17 : vector<256x256xf32>
    %c0_8 = arith.constant 0 : index
    %c0_9 = arith.constant 0 : index
    %19 = vector.load %arg4[%c0_8, %c0_9] : memref<1x256xf32, #tpu.memory_space<vmem>>, vector<1x256xf32>
    %20 = vector.broadcast %19 : vector<1x256xf32> to vector<256x256xf32>
    %21 = arith.addf %18, %20 : vector<256x256xf32>
    %cst_10 = arith.constant 0.000000e+00 : f32
    %22 = vector.broadcast %cst_10 : f32 to vector<256x256xf32>
    %23 = arith.cmpf ogt, %21, %22 : vector<256x256xf32>
    %24 = math.exp %21 : vector<256x256xf32>
    %cst_11 = arith.constant 1.000000e+00 : f32
    %25 = vector.broadcast %cst_11 : f32 to vector<256x256xf32>
    %26 = arith.subf %24, %25 : vector<256x256xf32>
    %27 = arith.select %23, %21, %26 : vector<256x256xi1>, vector<256x256xf32>
    %c256_i32 = arith.constant 256 : i32
    %28 = arith.muli %arg0, %c256_i32 : i32
    %29 = tpu.iota {dimensions = array<i32: 0>} : vector<256x256xi32>
    %30 = vector.broadcast %28 : i32 to vector<256x256xi32>
    %31 = arith.addi %30, %29 : vector<256x256xi32>
    %c500_i32 = arith.constant 500 : i32
    %32 = vector.broadcast %c500_i32 : i32 to vector<256x256xi32>
    %33 = arith.cmpi slt, %31, %32 : vector<256x256xi32>
    %cst_12 = arith.constant 0.000000e+00 : f32
    %34 = vector.broadcast %cst_12 : f32 to vector<256x256xf32>
    %35 = arith.select %33, %27, %34 : vector<256x256xi1>, vector<256x256xf32>
    %c0_13 = arith.constant 0 : index
    %c0_14 = arith.constant 0 : index
    %36 = vector.load %arg5[%c0_13, %c0_14] : memref<256x256xf32, #tpu.memory_space<vmem>>, vector<256x256xf32>
    tpu.vector_store %arg5[%c0_13, %c0_14], %35 {strides = array<i32>} : memref<256x256xf32, #tpu.memory_space<vmem>>, vector<256x256xf32>,
    return
  }
  func.func @transform_0(%arg0: i32) -> (i32, i32) {
    %c0_i32 = arith.constant 0 : i32
    %c0_i32_0 = arith.constant 0 : i32
    return %arg0, %c0_i32 : i32, i32
  }
  func.func @transform_1(%arg0: i32) -> (i32, i32) {
    %c0_i32 = arith.constant 0 : i32
    %c0_i32_0 = arith.constant 0 : i32
    %c0_i32_1 = arith.constant 0 : i32
    return %c0_i32, %c0_i32_0 : i32, i32
  }
  func.func @transform_2(%arg0: i32) -> (i32, i32) {
    %c0_i32 = arith.constant 0 : i32
    %c0_i32_0 = arith.constant 0 : i32
    %c0_i32_1 = arith.constant 0 : i32
    return %c0_i32, %c0_i32_0 : i32, i32
  }
  func.func @transform_3(%arg0: i32) -> (i32, i32) {
    %c0_i32 = arith.constant 0 : i32
    %c0_i32_0 = arith.constant 0 : i32
    %c0_i32_1 = arith.constant 0 : i32
    return %c0_i32, %c0_i32_0 : i32, i32
  }
  func.func @transform_4(%arg0: i32) -> (i32, i32) {
    %c0_i32 = arith.constant 0 : i32
    %c0_i32_0 = arith.constant 0 : i32
    return %arg0, %c0_i32 : i32, i32
  }
}

module attributes {stable_mosaic.version = 11 : i64} {
  func.func @_linear_stats_kernel(%arg0: i32, %arg1: memref<256x256xf32, #tpu.memory_space<vmem>>, %arg2: memref<256x256xbf16, #tpu.memory_space<vmem>>, %arg3: memref<256x256xf32, #tpu.memory_space<vmem>>, %arg4: memref<8x256xf32, #tpu.memory_space<vmem>>) attributes {dimension_semantics = [#tpu.dimension_semantics<arbitrary>], iteration_bounds = array<i64: 2>, scalar_prefetch = 0 : i64, scratch_operands = 0 : i64, tpu.core_type = #tpu.core_type<tc>, window_params = [{transform_indices = @transform_0, window_bounds = array<i64: 256, 256>}, {pipeline_mode = #tpu.pipeline_mode<synchronous>, transform_indices = @transform_1, window_bounds = array<i64: 256, 256>}, {transform_indices = @transform_2, window_bounds = array<i64: 256, 256>}, {pipeline_mode = #tpu.pipeline_mode<synchronous>, transform_indices = @transform_3, window_bounds = array<i64: 8, 256>}]} {
    %c0_i32 = arith.constant 0 : i32
    %0 = arith.cmpi eq, %arg0, %c0_i32 : i32
    %1 = arith.extui %0 : i1 to i32
    %c0_i32_0 = arith.constant 0 : i32
    %2 = arith.cmpi ne, %1, %c0_i32_0 : i32
    scf.if %2 {
      %cst_13 = arith.constant 0.000000e+00 : f32
      %18 = vector.broadcast %cst_13 : f32 to vector<8x256xf32>
      %c0_14 = arith.constant 0 : index
      %c0_15 = arith.constant 0 : index
      %19 = vector.load %arg4[%c0_14, %c0_15] : memref<8x256xf32, #tpu.memory_space<vmem>>, vector<8x256xf32>
      tpu.vector_store %arg4[%c0_14, %c0_15], %18 {strides = array<i32>} : memref<8x256xf32, #tpu.memory_space<vmem>>, vector<8x256xf32>,
    } else {
    }
    %c0 = arith.constant 0 : index
    %c0_1 = arith.constant 0 : index
    %3 = vector.load %arg1[%c0, %c0_1] : memref<256x256xf32, #tpu.memory_space<vmem>>, vector<256x256xf32>
    %4 = arith.truncf %3 : vector<256x256xf32> to vector<256x256xbf16>
    %c0_2 = arith.constant 0 : index
    %c0_3 = arith.constant 0 : index
    %5 = vector.load %arg2[%c0_2, %c0_3] : memref<256x256xbf16, #tpu.memory_space<vmem>>, vector<256x256xbf16>
    %cst = arith.constant dense<0.000000e+00> : vector<256x256xf32>
    %6 = tpu.matmul %4, %5, %cst {dimension_numbers = #tpu.dot_dimension_numbers<[1], [0], [0], [1], [0, 0, 1, 1], [], []>} : vector<256x256xbf16>, vector<256x256xbf16>, vector<256x256xf32> -> vector<256x256xf32>
    %c0_4 = arith.constant 0 : index
    %c0_5 = arith.constant 0 : index
    %7 = vector.load %arg3[%c0_4, %c0_5] : memref<256x256xf32, #tpu.memory_space<vmem>>, vector<256x256xf32>
    tpu.vector_store %arg3[%c0_4, %c0_5], %6 {strides = array<i32>} : memref<256x256xf32, #tpu.memory_space<vmem>>, vector<256x256xf32>,
    %cst_6 = arith.constant dense<0.000000e+00> : vector<256xf32>
    %8 = vector.multi_reduction <add>, %6, %cst_6 [0] : vector<256x256xf32> to vector<256xf32>
    %9 = vector.shape_cast %8 : vector<256xf32> to vector<1x256xf32>
    %10 = arith.mulf %6, %6 : vector<256x256xf32>
    %cst_7 = arith.constant dense<0.000000e+00> : vector<256xf32>
    %11 = vector.multi_reduction <add>, %10, %cst_7 [0] : vector<256x256xf32> to vector<256xf32>
    %12 = vector.shape_cast %11 : vector<256xf32> to vector<1x256xf32>
    %cst_8 = arith.constant 0.000000e+00 : f32
    %13 = vector.broadcast %cst_8 : f32 to vector<6x256xf32>
    %14 = tpu.concatenate %9, %12, %13 in 0 : vector<1x256xf32>, vector<1x256xf32>, vector<6x256xf32> -> vector<8x256xf32>
    %c0_9 = arith.constant 0 : index
    %c0_10 = arith.constant 0 : index
    %15 = vector.load %arg4[%c0_9, %c0_10] : memref<8x256xf32, #tpu.memory_space<vmem>>, vector<8x256xf32>
    %16 = arith.addf %15, %14 : vector<8x256xf32>
    %c0_11 = arith.constant 0 : index
    %c0_12 = arith.constant 0 : index
    %17 = vector.load %arg4[%c0_11, %c0_12] : memref<8x256xf32, #tpu.memory_space<vmem>>, vector<8x256xf32>
    tpu.vector_store %arg4[%c0_11, %c0_12], %16 {strides = array<i32>} : memref<8x256xf32, #tpu.memory_space<vmem>>, vector<8x256xf32>,
    return
  }
  func.func @transform_0(%arg0: i32) -> (i32, i32) {
    %c0_i32 = arith.constant 0 : i32
    %c0_i32_0 = arith.constant 0 : i32
    return %arg0, %c0_i32 : i32, i32
  }
  func.func @transform_1(%arg0: i32) -> (i32, i32) {
    %c0_i32 = arith.constant 0 : i32
    %c0_i32_0 = arith.constant 0 : i32
    %c0_i32_1 = arith.constant 0 : i32
    return %c0_i32, %c0_i32_0 : i32, i32
  }
  func.func @transform_2(%arg0: i32) -> (i32, i32) {
    %c0_i32 = arith.constant 0 : i32
    %c0_i32_0 = arith.constant 0 : i32
    return %arg0, %c0_i32 : i32, i32
  }
  func.func @transform_3(%arg0: i32) -> (i32, i32) {
    %c0_i32 = arith.constant 0 : i32
    %c0_i32_0 = arith.constant 0 : i32
    %c0_i32_1 = arith.constant 0 : i32
    return %c0_i32, %c0_i32_0 : i32, i32
  }
}

module attributes {stable_mosaic.version = 11 : i64} {
  func.func @_linear_stats_kernel(%arg0: i32, %arg1: memref<256x256xf32, #tpu.memory_space<vmem>>, %arg2: memref<256x128xbf16, #tpu.memory_space<vmem>>, %arg3: memref<256x128xf32, #tpu.memory_space<vmem>>, %arg4: memref<8x128xf32, #tpu.memory_space<vmem>>) attributes {dimension_semantics = [#tpu.dimension_semantics<arbitrary>], iteration_bounds = array<i64: 2>, scalar_prefetch = 0 : i64, scratch_operands = 0 : i64, tpu.core_type = #tpu.core_type<tc>, window_params = [{transform_indices = @transform_0, window_bounds = array<i64: 256, 256>}, {pipeline_mode = #tpu.pipeline_mode<synchronous>, transform_indices = @transform_1, window_bounds = array<i64: 256, 128>}, {transform_indices = @transform_2, window_bounds = array<i64: 256, 128>}, {pipeline_mode = #tpu.pipeline_mode<synchronous>, transform_indices = @transform_3, window_bounds = array<i64: 8, 128>}]} {
    %c0_i32 = arith.constant 0 : i32
    %0 = arith.cmpi eq, %arg0, %c0_i32 : i32
    %1 = arith.extui %0 : i1 to i32
    %c0_i32_0 = arith.constant 0 : i32
    %2 = arith.cmpi ne, %1, %c0_i32_0 : i32
    scf.if %2 {
      %cst_13 = arith.constant 0.000000e+00 : f32
      %18 = vector.broadcast %cst_13 : f32 to vector<8x128xf32>
      %c0_14 = arith.constant 0 : index
      %c0_15 = arith.constant 0 : index
      %19 = vector.load %arg4[%c0_14, %c0_15] : memref<8x128xf32, #tpu.memory_space<vmem>>, vector<8x128xf32>
      tpu.vector_store %arg4[%c0_14, %c0_15], %18 {strides = array<i32>} : memref<8x128xf32, #tpu.memory_space<vmem>>, vector<8x128xf32>,
    } else {
    }
    %c0 = arith.constant 0 : index
    %c0_1 = arith.constant 0 : index
    %3 = vector.load %arg1[%c0, %c0_1] : memref<256x256xf32, #tpu.memory_space<vmem>>, vector<256x256xf32>
    %4 = arith.truncf %3 : vector<256x256xf32> to vector<256x256xbf16>
    %c0_2 = arith.constant 0 : index
    %c0_3 = arith.constant 0 : index
    %5 = vector.load %arg2[%c0_2, %c0_3] : memref<256x128xbf16, #tpu.memory_space<vmem>>, vector<256x128xbf16>
    %cst = arith.constant dense<0.000000e+00> : vector<256x128xf32>
    %6 = tpu.matmul %4, %5, %cst {dimension_numbers = #tpu.dot_dimension_numbers<[1], [0], [0], [1], [0, 0, 1, 1], [], []>} : vector<256x256xbf16>, vector<256x128xbf16>, vector<256x128xf32> -> vector<256x128xf32>
    %c0_4 = arith.constant 0 : index
    %c0_5 = arith.constant 0 : index
    %7 = vector.load %arg3[%c0_4, %c0_5] : memref<256x128xf32, #tpu.memory_space<vmem>>, vector<256x128xf32>
    tpu.vector_store %arg3[%c0_4, %c0_5], %6 {strides = array<i32>} : memref<256x128xf32, #tpu.memory_space<vmem>>, vector<256x128xf32>,
    %cst_6 = arith.constant dense<0.000000e+00> : vector<128xf32>
    %8 = vector.multi_reduction <add>, %6, %cst_6 [0] : vector<256x128xf32> to vector<128xf32>
    %9 = vector.shape_cast %8 : vector<128xf32> to vector<1x128xf32>
    %10 = arith.mulf %6, %6 : vector<256x128xf32>
    %cst_7 = arith.constant dense<0.000000e+00> : vector<128xf32>
    %11 = vector.multi_reduction <add>, %10, %cst_7 [0] : vector<256x128xf32> to vector<128xf32>
    %12 = vector.shape_cast %11 : vector<128xf32> to vector<1x128xf32>
    %cst_8 = arith.constant 0.000000e+00 : f32
    %13 = vector.broadcast %cst_8 : f32 to vector<6x128xf32>
    %14 = tpu.concatenate %9, %12, %13 in 0 : vector<1x128xf32>, vector<1x128xf32>, vector<6x128xf32> -> vector<8x128xf32>
    %c0_9 = arith.constant 0 : index
    %c0_10 = arith.constant 0 : index
    %15 = vector.load %arg4[%c0_9, %c0_10] : memref<8x128xf32, #tpu.memory_space<vmem>>, vector<8x128xf32>
    %16 = arith.addf %15, %14 : vector<8x128xf32>
    %c0_11 = arith.constant 0 : index
    %c0_12 = arith.constant 0 : index
    %17 = vector.load %arg4[%c0_11, %c0_12] : memref<8x128xf32, #tpu.memory_space<vmem>>, vector<8x128xf32>
    tpu.vector_store %arg4[%c0_11, %c0_12], %16 {strides = array<i32>} : memref<8x128xf32, #tpu.memory_space<vmem>>, vector<8x128xf32>,
    return
  }
  func.func @transform_0(%arg0: i32) -> (i32, i32) {
    %c0_i32 = arith.constant 0 : i32
    %c0_i32_0 = arith.constant 0 : i32
    return %arg0, %c0_i32 : i32, i32
  }
  func.func @transform_1(%arg0: i32) -> (i32, i32) {
    %c0_i32 = arith.constant 0 : i32
    %c0_i32_0 = arith.constant 0 : i32
    %c0_i32_1 = arith.constant 0 : i32
    return %c0_i32, %c0_i32_0 : i32, i32
  }
  func.func @transform_2(%arg0: i32) -> (i32, i32) {
    %c0_i32 = arith.constant 0 : i32
    %c0_i32_0 = arith.constant 0 : i32
    return %arg0, %c0_i32 : i32, i32
  }
  func.func @transform_3(%arg0: i32) -> (i32, i32) {
    %c0_i32 = arith.constant 0 : i32
    %c0_i32_0 = arith.constant 0 : i32
    %c0_i32_1 = arith.constant 0 : i32
    return %c0_i32, %c0_i32_0 : i32, i32
  }
}

module attributes {stable_mosaic.version = 11 : i64} {
  func.func @_bn_elu_kernel(%arg0: i32, %arg1: memref<256x128xf32, #tpu.memory_space<vmem>>, %arg2: memref<8x128xf32, #tpu.memory_space<vmem>>, %arg3: memref<1x128xf32, #tpu.memory_space<vmem>>, %arg4: memref<1x128xf32, #tpu.memory_space<vmem>>, %arg5: memref<256x128xf32, #tpu.memory_space<vmem>>) attributes {dimension_semantics = [#tpu.dimension_semantics<parallel>], iteration_bounds = array<i64: 2>, scalar_prefetch = 0 : i64, scratch_operands = 0 : i64, tpu.core_type = #tpu.core_type<tc>, window_params = [{transform_indices = @transform_0, window_bounds = array<i64: 256, 128>}, {pipeline_mode = #tpu.pipeline_mode<synchronous>, transform_indices = @transform_1, window_bounds = array<i64: 8, 128>}, {pipeline_mode = #tpu.pipeline_mode<synchronous>, transform_indices = @transform_2, window_bounds = array<i64: 1, 128>}, {pipeline_mode = #tpu.pipeline_mode<synchronous>, transform_indices = @transform_3, window_bounds = array<i64: 1, 128>}, {transform_indices = @transform_4, window_bounds = array<i64: 256, 128>}]} {
    %c0 = arith.constant 0 : index
    %c0_0 = arith.constant 0 : index
    %0 = vector.load %arg2[%c0, %c0_0] : memref<8x128xf32, #tpu.memory_space<vmem>>, vector<1x128xf32>
    %cst = arith.constant 2.000000e-03 : f32
    %1 = vector.broadcast %cst : f32 to vector<1x128xf32>
    %2 = arith.mulf %0, %1 : vector<1x128xf32>
    %c1 = arith.constant 1 : index
    %c0_1 = arith.constant 0 : index
    %3 = vector.load %arg2[%c1, %c0_1] : memref<8x128xf32, #tpu.memory_space<vmem>>, vector<1x128xf32>
    %cst_2 = arith.constant 2.000000e-03 : f32
    %4 = vector.broadcast %cst_2 : f32 to vector<1x128xf32>
    %5 = arith.mulf %3, %4 : vector<1x128xf32>
    %6 = arith.mulf %2, %2 : vector<1x128xf32>
    %7 = arith.subf %5, %6 : vector<1x128xf32>
    %cst_3 = arith.constant 9.99999974E-6 : f32
    %8 = vector.broadcast %cst_3 : f32 to vector<1x128xf32>
    %9 = arith.addf %7, %8 : vector<1x128xf32>
    %10 = math.rsqrt %9 : vector<1x128xf32>
    %c0_4 = arith.constant 0 : index
    %c0_5 = arith.constant 0 : index
    %11 = vector.load %arg1[%c0_4, %c0_5] : memref<256x128xf32, #tpu.memory_space<vmem>>, vector<256x128xf32>
    %12 = vector.broadcast %2 : vector<1x128xf32> to vector<256x128xf32>
    %13 = arith.subf %11, %12 : vector<256x128xf32>
    %14 = vector.broadcast %10 : vector<1x128xf32> to vector<256x128xf32>
    %15 = arith.mulf %13, %14 : vector<256x128xf32>
    %c0_6 = arith.constant 0 : index
    %c0_7 = arith.constant 0 : index
    %16 = vector.load %arg3[%c0_6, %c0_7] : memref<1x128xf32, #tpu.memory_space<vmem>>, vector<1x128xf32>
    %17 = vector.broadcast %16 : vector<1x128xf32> to vector<256x128xf32>
    %18 = arith.mulf %15, %17 : vector<256x128xf32>
    %c0_8 = arith.constant 0 : index
    %c0_9 = arith.constant 0 : index
    %19 = vector.load %arg4[%c0_8, %c0_9] : memref<1x128xf32, #tpu.memory_space<vmem>>, vector<1x128xf32>
    %20 = vector.broadcast %19 : vector<1x128xf32> to vector<256x128xf32>
    %21 = arith.addf %18, %20 : vector<256x128xf32>
    %cst_10 = arith.constant 0.000000e+00 : f32
    %22 = vector.broadcast %cst_10 : f32 to vector<256x128xf32>
    %23 = arith.cmpf ogt, %21, %22 : vector<256x128xf32>
    %24 = math.exp %21 : vector<256x128xf32>
    %cst_11 = arith.constant 1.000000e+00 : f32
    %25 = vector.broadcast %cst_11 : f32 to vector<256x128xf32>
    %26 = arith.subf %24, %25 : vector<256x128xf32>
    %27 = arith.select %23, %21, %26 : vector<256x128xi1>, vector<256x128xf32>
    %c256_i32 = arith.constant 256 : i32
    %28 = arith.muli %arg0, %c256_i32 : i32
    %29 = tpu.iota {dimensions = array<i32: 0>} : vector<256x128xi32>
    %30 = vector.broadcast %28 : i32 to vector<256x128xi32>
    %31 = arith.addi %30, %29 : vector<256x128xi32>
    %c500_i32 = arith.constant 500 : i32
    %32 = vector.broadcast %c500_i32 : i32 to vector<256x128xi32>
    %33 = arith.cmpi slt, %31, %32 : vector<256x128xi32>
    %cst_12 = arith.constant 0.000000e+00 : f32
    %34 = vector.broadcast %cst_12 : f32 to vector<256x128xf32>
    %35 = arith.select %33, %27, %34 : vector<256x128xi1>, vector<256x128xf32>
    %c0_13 = arith.constant 0 : index
    %c0_14 = arith.constant 0 : index
    %36 = vector.load %arg5[%c0_13, %c0_14] : memref<256x128xf32, #tpu.memory_space<vmem>>, vector<256x128xf32>
    tpu.vector_store %arg5[%c0_13, %c0_14], %35 {strides = array<i32>} : memref<256x128xf32, #tpu.memory_space<vmem>>, vector<256x128xf32>,
    return
  }
  func.func @transform_0(%arg0: i32) -> (i32, i32) {
    %c0_i32 = arith.constant 0 : i32
    %c0_i32_0 = arith.constant 0 : i32
    return %arg0, %c0_i32 : i32, i32
  }
  func.func @transform_1(%arg0: i32) -> (i32, i32) {
    %c0_i32 = arith.constant 0 : i32
    %c0_i32_0 = arith.constant 0 : i32
    %c0_i32_1 = arith.constant 0 : i32
    return %c0_i32, %c0_i32_0 : i32, i32
  }
  func.func @transform_2(%arg0: i32) -> (i32, i32) {
    %c0_i32 = arith.constant 0 : i32
    %c0_i32_0 = arith.constant 0 : i32
    %c0_i32_1 = arith.constant 0 : i32
    return %c0_i32, %c0_i32_0 : i32, i32
  }
  func.func @transform_3(%arg0: i32) -> (i32, i32) {
    %c0_i32 = arith.constant 0 : i32
    %c0_i32_0 = arith.constant 0 : i32
    %c0_i32_1 = arith.constant 0 : i32
    return %c0_i32, %c0_i32_0 : i32, i32
  }
  func.func @transform_4(%arg0: i32) -> (i32, i32) {
    %c0_i32 = arith.constant 0 : i32
    %c0_i32_0 = arith.constant 0 : i32
    return %arg0, %c0_i32 : i32, i32
  }
}

</mosaic_0001>

<llo_original>
// kernel: mlp_forward.6
$region0: #{mlp_forward.6}
  #allocation0 [shape = 'u32[]', space=smem, size = 0x4, offset = 0x4, fixed_abs, tag = 'smem constant byte address 0x4 - core index']
  #allocation1 [shape = 'u32[144,128]{1,0:T(1,128)}', space=vmem, size = 0x12000, scoped, tag = 'internal scratch']
  %s0 = inlined_call_operand.vmem [shape: f32[512,128], index: 0, kind: input, shape index: {}]
  %s1 = inlined_call_operand.vmem [shape: bf16[128,256], index: 1, kind: input, shape index: {}]
  %s2 = inlined_call_operand.vmem [shape: f32[512,256], index: 2, kind: output, shape index: {0}]
  %s3 = inlined_call_operand.vmem [shape: f32[8,256], index: 3, kind: output, shape index: {1}]
  %4 = xla_tuple %s2, %s3
  %s5 = sld [smem:[#allocation0]]
  $region53: #{mlp_forward.6} parent=0
    _
  %s7 = ssub.s32 1, %s5
  %s8 = scalar_select 0, %s7, %s5
  loop: start=0, step=1, limit=4
  $region2: #{mlp_forward.6} parent=0 // loop_pre_header
    _
  $region3: #{mlp_forward.6} parent=0 // loop_header
    %s10 = sphi 0, %s14
    %p11 = scmp.ge.s32.totalorder %s10, 4
    %s20 = sphi 0, %s22
    %s23 = sphi 0, %s20
    %s24 = sphi 0, %s23
    %s40 = sphi 0, %s24
    %s44 = sphi 0, %s44
    %s46 = sphi 0, %s44
    %s47 = sphi 0, %s46
    %s61 = sphi 0, %s47
    %s67 = sphi 0, %s69
    %s70 = sphi 0, %s67
    %s71 = sphi 0, %s70
    %s87 = sphi 0, %s71
    %s91 = sphi 0, %s91
    %s93 = sphi 0, %s91
    %s94 = sphi 0, %s93
    %s108 = sphi 0, %s94
  $region4: #{mlp_forward.6} parent=0 // loop_header_branch
    %13 = sbr.rel (%p11) target = $region8
  $region5: #{mlp_forward.6} parent=0 // loop_body
    %s15 = ssub.s32 %s10, 1
    %s16 = ssub.s32 %s10, 2
    %s17 = sadd.s32 %s10, 1
    %s18 = ssub.s32 %s10, %s17
    %p19 = scmp.eq.s32.totalorder %s18, 0
    %s21 = sadd.s32 %s20, 1
    %s22 = scalar_select %p19, %s20, %s21
    %p25 = pneg %p19
    %p26 = scmp.eq.s32.totalorder %s10, 1
    %p27 = por %p25, %p26
    %p28 = scmp.ne.s32.totalorder %s20, %s23
    %p29 = scmp.eq.s32.totalorder %s10, 0
    %p30 = por %p28, %p29
    %p31 = scmp.ne.s32.totalorder %s20, %s23
    %p32 = scmp.eq.s32.totalorder %s15, 1
    %p33 = por %p31, %p32
    %p34 = scmp.ne.s32.totalorder %s23, %s24
    %p35 = scmp.eq.s32.totalorder %s15, 0
    %p36 = por %p34, %p35
    %p37 = scmp.ne.s32.totalorder %s23, %s24
    %p38 = scmp.eq.s32.totalorder %s16, 1
    %p39 = por %p37, %p38
    %p41 = scmp.ne.s32.totalorder %s24, %s40
    %p42 = scmp.eq.s32.totalorder %s16, 0
    %p43 = por %p41, %p42
    %s45 = sadd.s32 %s44, 1
    %p48 = scmp.eq.s32.totalorder %s10, 1
    %p49 = scmp.ne.s32.totalorder %s44, %s46
    %p50 = scmp.eq.s32.totalorder %s10, 0
    %p51 = por %p49, %p50
    %p52 = scmp.ne.s32.totalorder %s44, %s46
    %p53 = scmp.eq.s32.totalorder %s15, 1
    %p54 = por %p52, %p53
    %p55 = scmp.ne.s32.totalorder %s46, %s47
    %p56 = scmp.eq.s32.totalorder %s15, 0
    %p57 = por %p55, %p56
    %p58 = scmp.ne.s32.totalorder %s46, %s47
    %p59 = scmp.eq.s32.totalorder %s16, 1
    %p60 = por %p58, %p59
    %p62 = scmp.ne.s32.totalorder %s47, %s61
    %p63 = scmp.eq.s32.totalorder %s16, 0
    %p64 = por %p62, %p63
    %s65 = ssub.s32 %s10, %s17
    %p66 = scmp.eq.s32.totalorder %s65, 0
    %s68 = sadd.s32 %s67, 1
    %s69 = scalar_select %p66, %s67, %s68
    %p72 = pneg %p66
    %p73 = scmp.eq.s32.totalorder %s10, 1
    %p74 = por %p72, %p73
    %p75 = scmp.ne.s32.totalorder %s67, %s70
    %p76 = scmp.eq.s32.totalorder %s10, 0
    %p77 = por %p75, %p76
    %p78 = scmp.ne.s32.totalorder %s67, %s70
    %p79 = scmp.eq.s32.totalorder %s15, 1
    %p80 = por %p78, %p79
    %p81 = scmp.ne.s32.totalorder %s70, %s71
    %p82 = scmp.eq.s32.totalorder %s15, 0
    %p83 = por %p81, %p82
    %p84 = scmp.ne.s32.totalorder %s70, %s71
    %p85 = scmp.eq.s32.totalorder %s16, 1
    %p86 = por %p84, %p85
    %p88 = scmp.ne.s32.totalorder %s71, %s87
    %p89 = scmp.eq.s32.totalorder %s16, 0
    %p90 = por %p88, %p89
    %s92 = sadd.s32 %s91, 1
    %p95 = scmp.eq.s32.totalorder %s10, 1
    %p96 = scmp.ne.s32.totalorder %s91, %s93
    %p97 = scmp.eq.s32.totalorder %s10, 0
    %p98 = por %p96, %p97
    %p99 = scmp.ne.s32.totalorder %s91, %s93
    %p100 = scmp.eq.s32.totalorder %s15, 1
    %p101 = por %p99, %p100
    %p102 = scmp.ne.s32.totalorder %s93, %s94
    %p103 = scmp.eq.s32.totalorder %s15, 0
    %p104 = por %p102, %p103
    %p105 = scmp.ne.s32.totalorder %s93, %s94
    %p106 = scmp.eq.s32.totalorder %s16, 1
    %p107 = por %p105, %p106
    %p109 = scmp.ne.s32.totalorder %s94, %s108
    %p110 = scmp.eq.s32.totalorder %s16, 0
    %p111 = por %p109, %p110
    %p112 = scmp.le.s32.totalorder 1, %s10
    %p113 = scmp.lt.s32.totalorder %s10, 3
    %p114 = pnand %p112, %p113
    %p115 = pneg %p114
    // Predicated region
    $region9: #{mlp_forward.6} parent=5 // pred_check
      _
    $region10: #{mlp_forward.6} parent=5 // pred_check_branch
      %117 = sbr.rel (%p114) target = $region12
    $region11: #{mlp_forward.6} parent=5 // pred_region
      %s118 = ssub.s32 %s10, 1
      // Predicated region
      $region13: #{mlp_forward.6} parent=11 // pred_check
        %p119 = pneg %p57
      $region14: #{mlp_forward.6} parent=11 // pred_check_branch
        %121 = sbr.rel (%p119) target = $region16
      $region15: #{mlp_forward.6} parent=11 // pred_region
        _
      $region16: #{mlp_forward.6} parent=11 // pred_fallthru
        _
    $region12: #{mlp_forward.6} parent=5 // pred_fallthru
      _
    %p122 = scmp.lt.s32.totalorder %s10, 2
    // Predicated region
    $region17: #{mlp_forward.6} parent=5 // pred_check
      %p123 = pneg %p122
    $region18: #{mlp_forward.6} parent=5 // pred_check_branch
      %125 = sbr.rel (%p123) target = $region20
    $region19: #{mlp_forward.6} parent=5 // pred_region
      // Predicated region
      $region21: #{mlp_forward.6} parent=19 // pred_check
        %p126 = pneg %p30
      $region22: #{mlp_forward.6} parent=19 // pred_check_branch
        %128 = sbr.rel (%p126) target = $region24
      $region23: #{mlp_forward.6} parent=19 // pred_region
        %s129 = smul.u32 32, %s10
        %p130 = scmp.lt.s32.totalorder %s129, 63
        %s131 = scalar_select %p130, %s129, 63
        %s132 = smul.addr %s131, 8
        %s133 = scalar_lea.vmem %s0, %s132
        %s134 = smul.u32 32, %s10
      $region24: #{mlp_forward.6} parent=19 // pred_fallthru
        _
    $region20: #{mlp_forward.6} parent=5 // pred_fallthru
      _
    %p135 = scmp.le.s32.totalorder 1, %s10
    %p136 = scmp.lt.s32.totalorder %s10, 3
    %p137 = pnand %p135, %p136
    %p138 = pneg %p137
    // Predicated region
    $region25: #{mlp_forward.6} parent=5 // pred_check
      _
    $region26: #{mlp_forward.6} parent=5 // pred_check_branch
      %140 = sbr.rel (%p137) target = $region28
    $region27: #{mlp_forward.6} parent=5 // pred_region
      %s141 = ssub.s32 %s10, 1
      %s142 = smul.u32 32, %s15
      %p143 = scmp.lt.s32.totalorder %s142, 63
      %s144 = scalar_select %p143, %s142, 63
      %s145 = smul.addr %s144, 8
      %s146 = scalar_lea.vmem %s0, %s145
      %p147 = pneg %p36
      %p148 = pneg %p33
      %p149 = pneg %p57
      %p150 = pneg %p54
      %p151 = pneg %p83
      %p152 = pneg %p80
      %s153 = smul.u32 32, %s15
      %p154 = scmp.lt.s32.totalorder %s153, 63
      %s155 = scalar_select %p154, %s153, 63
      %s156 = smul.addr %s155, 2
      %s157 = smul.addr %s156, 8
      %s158 = scalar_lea.vmem %s2, %s157
      %p159 = pneg %p104
      %p160 = pneg %p101
      %s161 = smul.u32 32, %s15
      %p162 = scmp.lt.s32.totalorder %s161, 63
      %s163 = scalar_select %p162, %s161, 63
      %s164 = smul.addr %s163, 8
      %s165 = scalar_lea.vmem %s0, %s164
      %s166 = smul.u32 32, %s15
      %s167 = smul.u32 32, %s15
      %p168 = scmp.lt.s32.totalorder %s167, 63
      %s169 = scalar_select %p168, %s167, 63
      %s170 = smul.addr %s169, 2
      %s171 = smul.addr %s170, 8
      %s172 = scalar_lea.vmem %s2, %s171
      %s173 = smul.u32 32, %s15
      %p175 = scmp.eq.s32.totalorder %s15, 0
      // Predicated region
      $region29: #{mlp_forward.6} parent=27 // pred_check
        %p176 = pneg %p175
      $region30: #{mlp_forward.6} parent=27 // pred_check_branch
        %178 = sbr.rel (%p176) target = $region32
      $region31: #{mlp_forward.6} parent=27 // pred_region
        %179 = vst [vmem:[%s3] sm:$0xff] 0.0
        %180 = vst [vmem:[%s3 + $0x8] sm:$0xff] 0.0
      $region32: #{mlp_forward.6} parent=27 // pred_fallthru
        _
      %v181 = vld [vmem:[%s165] sm:$0xff]
      %v182 = vld [vmem:[%s165 + $0x8] sm:$0xff]
      %v183 = vld [vmem:[%s165 + $0x10] sm:$0xff]
      %v184 = vld [vmem:[%s165 + $0x18] sm:$0xff]
      %v185 = vld [vmem:[%s165 + $0x20] sm:$0xff]
      %v186 = vld [vmem:[%s165 + $0x28] sm:$0xff]
      %v187 = vld [vmem:[%s165 + $0x30] sm:$0xff]
      %v188 = vld [vmem:[%s165 + $0x38] sm:$0xff]
      %v189 = vld [vmem:[%s165 + $0x40] sm:$0xff]
      %v190 = vld [vmem:[%s165 + $0x48] sm:$0xff]
      %v191 = vld [vmem:[%s165 + $0x50] sm:$0xff]
      %v192 = vld [vmem:[%s165 + $0x58] sm:$0xff]
      %v193 = vld [vmem:[%s165 + $0x60] sm:$0xff]
      %v194 = vld [vmem:[%s165 + $0x68] sm:$0xff]
      %v195 = vld [vmem:[%s165 + $0x70] sm:$0xff]
      %v196 = vld [vmem:[%s165 + $0x78] sm:$0xff]
      %v197 = vld [vmem:[%s165 + $0x80] sm:$0xff]
      %v198 = vld [vmem:[%s165 + $0x88] sm:$0xff]
      %v199 = vld [vmem:[%s165 + $0x90] sm:$0xff]
      %v200 = vld [vmem:[%s165 + $0x98] sm:$0xff]
      %v201 = vld [vmem:[%s165 + $0xa0] sm:$0xff]
      %v202 = vld [vmem:[%s165 + $0xa8] sm:$0xff]
      %v203 = vld [vmem:[%s165 + $0xb0] sm:$0xff]
      %v204 = vld [vmem:[%s165 + $0xb8] sm:$0xff]
      %v205 = vld [vmem:[%s165 + $0xc0] sm:$0xff]
      %v206 = vld [vmem:[%s165 + $0xc8] sm:$0xff]
      %v207 = vld [vmem:[%s165 + $0xd0] sm:$0xff]
      %v208 = vld [vmem:[%s165 + $0xd8] sm:$0xff]
      %v209 = vld [vmem:[%s165 + $0xe0] sm:$0xff]
      %v210 = vld [vmem:[%s165 + $0xe8] sm:$0xff]
      %v211 = vld [vmem:[%s165 + $0xf0] sm:$0xff]
      %v212 = vld [vmem:[%s165 + $0xf8] sm:$0xff]
      %v213 = vpack.c.bf16 %v182, %v181
      %v214 = vpack.c.bf16 %v184, %v183
      %v215 = vpack.c.bf16 %v186, %v185
      %v216 = vpack.c.bf16 %v188, %v187
      %v217 = vpack.c.bf16 %v190, %v189
      %v218 = vpack.c.bf16 %v192, %v191
      %v219 = vpack.c.bf16 %v194, %v193
      %v220 = vpack.c.bf16 %v196, %v195
      %v221 = vpack.c.bf16 %v198, %v197
      %v222 = vpack.c.bf16 %v200, %v199
      %v223 = vpack.c.bf16 %v202, %v201
      %v224 = vpack.c.bf16 %v204, %v203
      %v225 = vpack.c.bf16 %v206, %v205
      %v226 = vpack.c.bf16 %v208, %v207
      %v227 = vpack.c.bf16 %v210, %v209
      %v228 = vpack.c.bf16 %v212, %v211
      %v229 = vld [vmem:[%s1] sm:$0xff]
      %v230 = vld [vmem:[%s1 + $0x8] sm:$0xff]
      %v231 = vld [vmem:[%s1 + $0x10] sm:$0xff]
      %v232 = vld [vmem:[%s1 + $0x18] sm:$0xff]
      %v233 = vld [vmem:[%s1 + $0x20] sm:$0xff]
      %v234 = vld [vmem:[%s1 + $0x28] sm:$0xff]
      %v235 = vld [vmem:[%s1 + $0x30] sm:$0xff]
      %v236 = vld [vmem:[%s1 + $0x38] sm:$0xff]
      %v237 = vld [vmem:[%s1 + $0x40] sm:$0xff]
      %v238 = vld [vmem:[%s1 + $0x48] sm:$0xff]
      %v239 = vld [vmem:[%s1 + $0x50] sm:$0xff]
      %v240 = vld [vmem:[%s1 + $0x58] sm:$0xff]
      %v241 = vld [vmem:[%s1 + $0x60] sm:$0xff]
      %v242 = vld [vmem:[%s1 + $0x68] sm:$0xff]
      %v243 = vld [vmem:[%s1 + $0x70] sm:$0xff]
      %v244 = vld [vmem:[%s1 + $0x78] sm:$0xff]
      %v261 = vunpack.c.l.b16 %v229
      %v262 = vunpack.c.h.b16 %v229
      %v263 = vunpack.c.l.b16 %v230
      %v264 = vunpack.c.h.b16 %v230
      %v265 = vunpack.c.l.b16 %v231
      %v266 = vunpack.c.h.b16 %v231
      %v267 = vunpack.c.l.b16 %v232
      %v268 = vunpack.c.h.b16 %v232
      %v269 = vunpack.c.l.b16 %v233
      %v270 = vunpack.c.h.b16 %v233
      %v271 = vunpack.c.l.b16 %v234
      %v272 = vunpack.c.h.b16 %v234
      %v273 = vunpack.c.l.b16 %v235
      %v274 = vunpack.c.h.b16 %v235
      %v275 = vunpack.c.l.b16 %v236
      %v276 = vunpack.c.h.b16 %v236
      %v277 = vunpack.c.l.b16 %v237
      %v278 = vunpack.c.h.b16 %v237
      %v279 = vunpack.c.l.b16 %v238
      %v280 = vunpack.c.h.b16 %v238
      %v281 = vunpack.c.l.b16 %v239
      %v282 = vunpack.c.h.b16 %v239
      %v283 = vunpack.c.l.b16 %v240
      %v284 = vunpack.c.h.b16 %v240
      %v285 = vunpack.c.l.b16 %v241
      %v286 = vunpack.c.h.b16 %v241
      %v287 = vunpack.c.l.b16 %v242
      %v288 = vunpack.c.h.b16 %v242
      %v289 = vunpack.c.l.b16 %v243
      %v290 = vunpack.c.h.b16 %v243
      %v291 = vunpack.c.l.b16 %v244
      %v292 = vunpack.c.h.b16 %v244
      %v293 = vpack.c.b16 %v263, %v261
      %v294 = vpack.c.b16 %v264, %v262
      %v295 = vpack.c.b16 %v267, %v265
      %v296 = vpack.c.b16 %v268, %v266
      %v297 = vpack.c.b16 %v271, %v269
      %v298 = vpack.c.b16 %v272, %v270
      %v299 = vpack.c.b16 %v275, %v273
      %v300 = vpack.c.b16 %v276, %v274
      %v301 = vpack.c.b16 %v279, %v277
      %v302 = vpack.c.b16 %v280, %v278
      %v303 = vpack.c.b16 %v283, %v281
      %v304 = vpack.c.b16 %v284, %v282
      %v305 = vpack.c.b16 %v287, %v285
      %v306 = vpack.c.b16 %v288, %v286
      %v307 = vpack.c.b16 %v291, %v289
      %v308 = vpack.c.b16 %v292, %v290
      %325 = vmatprep.subr.bf16.mxu0 %v294
      %326 = vmatpush1.bf16.msra.mxu0 %v293
      %327 = vmatprep.subr.bf16.mxu0 %v296
      %328 = vmatpush1.bf16.msra.mxu0 %v295
      %329 = vmatprep.subr.bf16.mxu0 %v298
      %330 = vmatpush1.bf16.msra.mxu0 %v297
      %331 = vmatprep.subr.bf16.mxu0 %v300
      %332 = vmatpush1.bf16.msra.mxu0 %v299
      %333 = vmatprep.subr.bf16.mxu0 %v302
      %334 = vmatpush1.bf16.msra.mxu0 %v301
      %335 = vmatprep.subr.bf16.mxu0 %v304
      %336 = vmatpush1.bf16.msra.mxu0 %v303
      %337 = vmatprep.subr.bf16.mxu0 %v306
      %338 = vmatpush1.bf16.msra.mxu0 %v305
      %339 = vmatprep.subr.bf16.mxu0 %v308
      %340 = vmatpush1.bf16.msra.mxu0 %v307
      %341 = vmatprep.subr.bf16.mxu0 0
      %342 = vmatpush1.bf16.msra.mxu0 0
      %343 = vmatprep.subr.bf16.mxu0 0
      %344 = vmatpush1.bf16.msra.mxu0 0
      %345 = vmatprep.subr.bf16.mxu0 0
      %346 = vmatpush1.bf16.msra.mxu0 0
      %347 = vmatprep.subr.bf16.mxu0 0
      %348 = vmatpush1.bf16.msra.mxu0 0
      %349 = vmatprep.subr.bf16.mxu0 0
      %350 = vmatpush1.bf16.msra.mxu0 0
      %351 = vmatprep.subr.bf16.mxu0 0
      %352 = vmatpush1.bf16.msra.mxu0 0
      %353 = vmatprep.subr.bf16.mxu0 0
      %354 = vmatpush1.bf16.msra.mxu0 0
      %355 = vmatprep.subr.bf16.mxu0 0
      %356 = vmatpush1.bf16.msra.mxu0 0
      %357 = vmatprep.mubr.bf16.mxu0 0
      %358 = vmatmul.mubr.bf16.gmra.mrb[0].mxu0 %v213
      %v359 = vpop.f32.mrb[0].mxu0
      %v360 = vadd.f32 0.0, %v359
      %v361 = vpop.f32.mrb[0].mxu0
      %v362 = vadd.f32 0.0, %v361
      %v363 = vpop.f32.mrb[0].mxu0
      %v364 = vadd.f32 0.0, %v363
      %v365 = vpop.f32.mrb[0].mxu0
      %v366 = vadd.f32 0.0, %v365
      %367 = vmatprep.mubr.bf16.mxu0 0
      %368 = vmatmul.mubr.bf16.gmra.mrb[0].mxu0 %v214
      %v369 = vpop.f32.mrb[0].mxu0
      %v370 = vadd.f32 0.0, %v369
      %v371 = vpop.f32.mrb[0].mxu0
      %v372 = vadd.f32 0.0, %v371
      %v373 = vpop.f32.mrb[0].mxu0
      %v374 = vadd.f32 0.0, %v373
      %v375 = vpop.f32.mrb[0].mxu0
      %v376 = vadd.f32 0.0, %v375
      %377 = vmatprep.mubr.bf16.mxu0 0
      %378 = vmatmul.mubr.bf16.gmra.mrb[0].mxu0 %v215
      %v379 = vpop.f32.mrb[0].mxu0
      %v380 = vadd.f32 0.0, %v379
      %v381 = vpop.f32.mrb[0].mxu0
      %v382 = vadd.f32 0.0, %v381
      %v383 = vpop.f32.mrb[0].mxu0
      %v384 = vadd.f32 0.0, %v383
      %v385 = vpop.f32.mrb[0].mxu0
      %v386 = vadd.f32 0.0, %v385
      %387 = vmatprep.mubr.bf16.mxu0 0
      %388 = vmatmul.mubr.bf16.gmra.mrb[0].mxu0 %v216
      %v389 = vpop.f32.mrb[0].mxu0
      %v390 = vadd.f32 0.0, %v389
      %v391 = vpop.f32.mrb[0].mxu0
      %v392 = vadd.f32 0.0, %v391
      %v393 = vpop.f32.mrb[0].mxu0
      %v394 = vadd.f32 0.0, %v393
      %v395 = vpop.f32.mrb[0].mxu0
      %v396 = vadd.f32 0.0, %v395
      %397 = vmatprep.mubr.bf16.mxu0 0
      %398 = vmatmul.mubr.bf16.gmra.mrb[0].mxu0 %v217
      %v399 = vpop.f32.mrb[0].mxu0
      %v400 = vadd.f32 0.0, %v399
      %v401 = vpop.f32.mrb[0].mxu0
      %v402 = vadd.f32 0.0, %v401
      %v403 = vpop.f32.mrb[0].mxu0
      %v404 = vadd.f32 0.0, %v403
      %v405 = vpop.f32.mrb[0].mxu0
      %v406 = vadd.f32 0.0, %v405
      %407 = vmatprep.mubr.bf16.mxu0 0
      %408 = vmatmul.mubr.bf16.gmra.mrb[0].mxu0 %v218
      %v409 = vpop.f32.mrb[0].mxu0
      %v410 = vadd.f32 0.0, %v409
      %v411 = vpop.f32.mrb[0].mxu0
      %v412 = vadd.f32 0.0, %v411
      %v413 = vpop.f32.mrb[0].mxu0
      %v414 = vadd.f32 0.0, %v413
      %v415 = vpop.f32.mrb[0].mxu0
      %v416 = vadd.f32 0.0, %v415
      %417 = vmatprep.mubr.bf16.mxu0 0
      %418 = vmatmul.mubr.bf16.gmra.mrb[0].mxu0 %v219
      %v419 = vpop.f32.mrb[0].mxu0
      %v420 = vadd.f32 0.0, %v419
      %v421 = vpop.f32.mrb[0].mxu0
      %v422 = vadd.f32 0.0, %v421
      %v423 = vpop.f32.mrb[0].mxu0
      %v424 = vadd.f32 0.0, %v423
      %v425 = vpop.f32.mrb[0].mxu0
      %v426 = vadd.f32 0.0, %v425
      %427 = vmatprep.mubr.bf16.mxu0 0
      %428 = vmatmul.mubr.bf16.gmra.mrb[0].mxu0 %v220
      %v429 = vpop.f32.mrb[0].mxu0
      %v430 = vadd.f32 0.0, %v429
      %v431 = vpop.f32.mrb[0].mxu0
      %v432 = vadd.f32 0.0, %v431
      %v433 = vpop.f32.mrb[0].mxu0
      %v434 = vadd.f32 0.0, %v433
      %v435 = vpop.f32.mrb[0].mxu0
      %v436 = vadd.f32 0.0, %v435
      %437 = vmatprep.mubr.bf16.mxu0 0
      %438 = vmatmul.mubr.bf16.gmra.mrb[0].mxu0 %v221
      %v439 = vpop.f32.mrb[0].mxu0
      %v440 = vadd.f32 0.0, %v439
      %v441 = vpop.f32.mrb[0].mxu0
      %v442 = vadd.f32 0.0, %v441
      %v443 = vpop.f32.mrb[0].mxu0
      %v444 = vadd.f32 0.0, %v443
      %v445 = vpop.f32.mrb[0].mxu0
      %v446 = vadd.f32 0.0, %v445
      %447 = vmatprep.mubr.bf16.mxu0 0
      %448 = vmatmul.mubr.bf16.gmra.mrb[0].mxu0 %v222
      %v449 = vpop.f32.mrb[0].mxu0
      %v450 = vadd.f32 0.0, %v449
      %v451 = vpop.f32.mrb[0].mxu0
      %v452 = vadd.f32 0.0, %v451
      %v453 = vpop.f32.mrb[0].mxu0
      %v454 = vadd.f32 0.0, %v453
      %v455 = vpop.f32.mrb[0].mxu0
      %v456 = vadd.f32 0.0, %v455
      %457 = vmatprep.mubr.bf16.mxu0 0
      %458 = vmatmul.mubr.bf16.gmra.mrb[0].mxu0 %v223
      %v459 = vpop.f32.mrb[0].mxu0
      %v460 = vadd.f32 0.0, %v459
      %v461 = vpop.f32.mrb[0].mxu0
      %v462 = vadd.f32 0.0, %v461
      %v463 = vpop.f32.mrb[0].mxu0
      %v464 = vadd.f32 0.0, %v463
      %v465 = vpop.f32.mrb[0].mxu0
      %v466 = vadd.f32 0.0, %v465
      %467 = vmatprep.mubr.bf16.mxu0 0
      %468 = vmatmul.mubr.bf16.gmra.mrb[0].mxu0 %v224
      %v469 = vpop.f32.mrb[0].mxu0
      %v470 = vadd.f32 0.0, %v469
      %v471 = vpop.f32.mrb[0].mxu0
      %v472 = vadd.f32 0.0, %v471
      %v473 = vpop.f32.mrb[0].mxu0
      %v474 = vadd.f32 0.0, %v473
      %v475 = vpop.f32.mrb[0].mxu0
      %v476 = vadd.f32 0.0, %v475
      %477 = vmatprep.mubr.bf16.mxu0 0
      %478 = vmatmul.mubr.bf16.gmra.mrb[0].mxu0 %v225
      %v479 = vpop.f32.mrb[0].mxu0
      %v480 = vadd.f32 0.0, %v479
      %v481 = vpop.f32.mrb[0].mxu0
      %v482 = vadd.f32 0.0, %v481
      %v483 = vpop.f32.mrb[0].mxu0
      %v484 = vadd.f32 0.0, %v483
      %v485 = vpop.f32.mrb[0].mxu0
      %v486 = vadd.f32 0.0, %v485
      %487 = vmatprep.mubr.bf16.mxu0 0
      %488 = vmatmul.mubr.bf16.gmra.mrb[0].mxu0 %v226
      %v489 = vpop.f32.mrb[0].mxu0
      %v490 = vadd.f32 0.0, %v489
      %v491 = vpop.f32.mrb[0].mxu0
      %v492 = vadd.f32 0.0, %v491
      %v493 = vpop.f32.mrb[0].mxu0
      %v494 = vadd.f32 0.0, %v493
      %v495 = vpop.f32.mrb[0].mxu0
      %v496 = vadd.f32 0.0, %v495
      %497 = vmatprep.mubr.bf16.mxu0 0
      %498 = vmatmul.mubr.bf16.gmra.mrb[0].mxu0 %v227
      %v499 = vpop.f32.mrb[0].mxu0
      %v500 = vadd.f32 0.0, %v499
      %v501 = vpop.f32.mrb[0].mxu0
      %v502 = vadd.f32 0.0, %v501
      %v503 = vpop.f32.mrb[0].mxu0
      %v504 = vadd.f32 0.0, %v503
      %v505 = vpop.f32.mrb[0].mxu0
      %v506 = vadd.f32 0.0, %v505
      %507 = vmatprep.mubr.bf16.mxu0 0
      %508 = vmatmul.mubr.bf16.gmra.mrb[0].mxu0 %v228
      %v509 = vpop.f32.mrb[0].mxu0
      %v510 = vadd.f32 0.0, %v509
      %v511 = vpop.f32.mrb[0].mxu0
      %v512 = vadd.f32 0.0, %v511
      %v513 = vpop.f32.mrb[0].mxu0
      %v514 = vadd.f32 0.0, %v513
      %v515 = vpop.f32.mrb[0].mxu0
      %v516 = vadd.f32 0.0, %v515
      %517 = vdwg.mxu0
      %518 = vst [vmem:[%s172] sm:$0xff] %v360
      %519 = vst [vmem:[%s172 + $0x8] sm:$0xff] %v362
      %520 = vst [vmem:[%s172 + $0x10] sm:$0xff] %v364
      %521 = vst [vmem:[%s172 + $0x18] sm:$0xff] %v366
      %522 = vst [vmem:[%s172 + $0x20] sm:$0xff] %v370
      %523 = vst [vmem:[%s172 + $0x28] sm:$0xff] %v372
      %524 = vst [vmem:[%s172 + $0x30] sm:$0xff] %v374
      %525 = vst [vmem:[%s172 + $0x38] sm:$0xff] %v376
      %526 = vst [vmem:[%s172 + $0x40] sm:$0xff] %v380
      %527 = vst [vmem:[%s172 + $0x48] sm:$0xff] %v382
      %528 = vst [vmem:[%s172 + $0x50] sm:$0xff] %v384
      %529 = vst [vmem:[%s172 + $0x58] sm:$0xff] %v386
      %530 = vst [vmem:[%s172 + $0x60] sm:$0xff] %v390
      %531 = vst [vmem:[%s172 + $0x68] sm:$0xff] %v392
      %532 = vst [vmem:[%s172 + $0x70] sm:$0xff] %v394
      %533 = vst [vmem:[%s172 + $0x78] sm:$0xff] %v396
      %534 = vst [vmem:[%s172 + $0x80] sm:$0xff] %v400
      %535 = vst [vmem:[%s172 + $0x88] sm:$0xff] %v402
      %536 = vst [vmem:[%s172 + $0x90] sm:$0xff] %v404
      %537 = vst [vmem:[%s172 + $0x98] sm:$0xff] %v406
      %538 = vst [vmem:[%s172 + $0xa0] sm:$0xff] %v410
      %539 = vst [vmem:[%s172 + $0xa8] sm:$0xff] %v412
      %540 = vst [vmem:[%s172 + $0xb0] sm:$0xff] %v414
      %541 = vst [vmem:[%s172 + $0xb8] sm:$0xff] %v416
      %542 = vst [vmem:[%s172 + $0xc0] sm:$0xff] %v420
      %543 = vst [vmem:[%s172 + $0xc8] sm:$0xff] %v422
      %544 = vst [vmem:[%s172 + $0xd0] sm:$0xff] %v424
      %545 = vst [vmem:[%s172 + $0xd8] sm:$0xff] %v426
      %546 = vst [vmem:[%s172 + $0xe0] sm:$0xff] %v430
      %547 = vst [vmem:[%s172 + $0xe8] sm:$0xff] %v432
      %548 = vst [vmem:[%s172 + $0xf0] sm:$0xff] %v434
      %549 = vst [vmem:[%s172 + $0xf8] sm:$0xff] %v436
      %550 = vst [vmem:[%s172 + $0x100] sm:$0xff] %v440
      %551 = vst [vmem:[%s172 + $0x108] sm:$0xff] %v442
      %552 = vst [vmem:[%s172 + $0x110] sm:$0xff] %v444
      %553 = vst [vmem:[%s172 + $0x118] sm:$0xff] %v446
      %554 = vst [vmem:[%s172 + $0x120] sm:$0xff] %v450
      %555 = vst [vmem:[%s172 + $0x128] sm:$0xff] %v452
      %556 = vst [vmem:[%s172 + $0x130] sm:$0xff] %v454
      %557 = vst [vmem:[%s172 + $0x138] sm:$0xff] %v456
      %558 = vst [vmem:[%s172 + $0x140] sm:$0xff] %v460
      %559 = vst [vmem:[%s172 + $0x148] sm:$0xff] %v462
      %560 = vst [vmem:[%s172 + $0x150] sm:$0xff] %v464
      %561 = vst [vmem:[%s172 + $0x158] sm:$0xff] %v466
      %562 = vst [vmem:[%s172 + $0x160] sm:$0xff] %v470
      %563 = vst [vmem:[%s172 + $0x168] sm:$0xff] %v472
      %564 = vst [vmem:[%s172 + $0x170] sm:$0xff] %v474
      %565 = vst [vmem:[%s172 + $0x178] sm:$0xff] %v476
      %566 = vst [vmem:[%s172 + $0x180] sm:$0xff] %v480
      %567 = vst [vmem:[%s172 + $0x188] sm:$0xff] %v482
      %568 = vst [vmem:[%s172 + $0x190] sm:$0xff] %v484
      %569 = vst [vmem:[%s172 + $0x198] sm:$0xff] %v486
      %570 = vst [vmem:[%s172 + $0x1a0] sm:$0xff] %v490
      %571 = vst [vmem:[%s172 + $0x1a8] sm:$0xff] %v492
      %572 = vst [vmem:[%s172 + $0x1b0] sm:$0xff] %v494
      %573 = vst [vmem:[%s172 + $0x1b8] sm:$0xff] %v496
      %574 = vst [vmem:[%s172 + $0x1c0] sm:$0xff] %v500
      %575 = vst [vmem:[%s172 + $0x1c8] sm:$0xff] %v502
      %576 = vst [vmem:[%s172 + $0x1d0] sm:$0xff] %v504
      %577 = vst [vmem:[%s172 + $0x1d8] sm:$0xff] %v506
      %578 = vst [vmem:[%s172 + $0x1e0] sm:$0xff] %v510
      %579 = vst [vmem:[%s172 + $0x1e8] sm:$0xff] %v512
      %580 = vst [vmem:[%s172 + $0x1f0] sm:$0xff] %v514
      %581 = vst [vmem:[%s172 + $0x1f8] sm:$0xff] %v516
      %v582 = vadd.f32 %v360, %v364
      %v583 = vadd.f32 %v582, %v370
      %v584 = vadd.f32 %v583, %v374
      %v585 = vadd.f32 %v584, %v380
      %v586 = vadd.f32 %v585, %v384
      %v587 = vadd.f32 %v586, %v390
      %v588 = vadd.f32 %v587, %v394
      %v589 = vadd.f32 %v588, %v400
      %v590 = vadd.f32 %v589, %v404
      %v591 = vadd.f32 %v590, %v410
      %v592 = vadd.f32 %v591, %v414
      %v593 = vadd.f32 %v592, %v420
      %v594 = vadd.f32 %v593, %v424
      %v595 = vadd.f32 %v594, %v430
      %v596 = vadd.f32 %v595, %v434
      %v597 = vadd.f32 %v596, %v440
      %v598 = vadd.f32 %v597, %v444
      %v599 = vadd.f32 %v598, %v450
      %v600 = vadd.f32 %v599, %v454
      %v601 = vadd.f32 %v600, %v460
      %v602 = vadd.f32 %v601, %v464
      %v603 = vadd.f32 %v602, %v470
      %v604 = vadd.f32 %v603, %v474
      %v605 = vadd.f32 %v604, %v480
      %v606 = vadd.f32 %v605, %v484
      %v607 = vadd.f32 %v606, %v490
      %v608 = vadd.f32 %v607, %v494
      %v609 = vadd.f32 %v608, %v500
      %v610 = vadd.f32 %v609, %v504
      %v611 = vadd.f32 %v610, %v510
      %v612 = vadd.f32 %v611, %v514
      %v613 = vrot.slane %v612, 4
      %v614 = vadd.f32 %v612, %v613
      %v615 = vrot.slane %v614, 2
      %v616 = vadd.f32 %v614, %v615
      %v617 = vrot.slane %v616, 1
      %v618 = vadd.f32 %v616, %v617
      %v619 = vadd.f32 %v362, %v366
      %v620 = vadd.f32 %v619, %v372
      %v621 = vadd.f32 %v620, %v376
      %v622 = vadd.f32 %v621, %v382
      %v623 = vadd.f32 %v622, %v386
      %v624 = vadd.f32 %v623, %v392
      %v625 = vadd.f32 %v624, %v396
      %v626 = vadd.f32 %v625, %v402
      %v627 = vadd.f32 %v626, %v406
      %v628 = vadd.f32 %v627, %v412
      %v629 = vadd.f32 %v628, %v416
      %v630 = vadd.f32 %v629, %v422
      %v631 = vadd.f32 %v630, %v426
      %v632 = vadd.f32 %v631, %v432
      %v633 = vadd.f32 %v632, %v436
      %v634 = vadd.f32 %v633, %v442
      %v635 = vadd.f32 %v634, %v446
      %v636 = vadd.f32 %v635, %v452
      %v637 = vadd.f32 %v636, %v456
      %v638 = vadd.f32 %v637, %v462
      %v639 = vadd.f32 %v638, %v466
      %v640 = vadd.f32 %v639, %v472
      %v641 = vadd.f32 %v640, %v476
      %v642 = vadd.f32 %v641, %v482
      %v643 = vadd.f32 %v642, %v486
      %v644 = vadd.f32 %v643, %v492
      %v645 = vadd.f32 %v644, %v496
      %v646 = vadd.f32 %v645, %v502
      %v647 = vadd.f32 %v646, %v506
      %v648 = vadd.f32 %v647, %v512
      %v649 = vadd.f32 %v648, %v516
      %v650 = vrot.slane %v649, 4
      %v651 = vadd.f32 %v649, %v650
      %v652 = vrot.slane %v651, 2
      %v653 = vadd.f32 %v651, %v652
      %v654 = vrot.slane %v653, 1
      %v655 = vadd.f32 %v653, %v654
      %v656 = vmul.f32 %v360, %v360
      %v657 = vmul.f32 %v362, %v362
      %v658 = vmul.f32 %v364, %v364
      %v659 = vmul.f32 %v366, %v366
      %v660 = vmul.f32 %v370, %v370
      %v661 = vmul.f32 %v372, %v372
      %v662 = vmul.f32 %v374, %v374
      %v663 = vmul.f32 %v376, %v376
      %v664 = vmul.f32 %v380, %v380
      %v665 = vmul.f32 %v382, %v382
      %v666 = vmul.f32 %v384, %v384
      %v667 = vmul.f32 %v386, %v386
      %v668 = vmul.f32 %v390, %v390
      %v669 = vmul.f32 %v392, %v392
      %v670 = vmul.f32 %v394, %v394
      %v671 = vmul.f32 %v396, %v396
      %v672 = vmul.f32 %v400, %v400
      %v673 = vmul.f32 %v402, %v402
      %v674 = vmul.f32 %v404, %v404
      %v675 = vmul.f32 %v406, %v406
      %v676 = vmul.f32 %v410, %v410
      %v677 = vmul.f32 %v412, %v412
      %v678 = vmul.f32 %v414, %v414
      %v679 = vmul.f32 %v416, %v416
      %v680 = vmul.f32 %v420, %v420
      %v681 = vmul.f32 %v422, %v422
      %v682 = vmul.f32 %v424, %v424
      %v683 = vmul.f32 %v426, %v426
      %v684 = vmul.f32 %v430, %v430
      %v685 = vmul.f32 %v432, %v432
      %v686 = vmul.f32 %v434, %v434
      %v687 = vmul.f32 %v436, %v436
      %v688 = vmul.f32 %v440, %v440
      %v689 = vmul.f32 %v442, %v442
      %v690 = vmul.f32 %v444, %v444
      %v691 = vmul.f32 %v446, %v446
      %v692 = vmul.f32 %v450, %v450
      %v693 = vmul.f32 %v452, %v452
      %v694 = vmul.f32 %v454, %v454
      %v695 = vmul.f32 %v456, %v456
      %v696 = vmul.f32 %v460, %v460
      %v697 = vmul.f32 %v462, %v462
      %v698 = vmul.f32 %v464, %v464
      %v699 = vmul.f32 %v466, %v466
      %v700 = vmul.f32 %v470, %v470
      %v701 = vmul.f32 %v472, %v472
      %v702 = vmul.f32 %v474, %v474
      %v703 = vmul.f32 %v476, %v476
      %v704 = vmul.f32 %v480, %v480
      %v705 = vmul.f32 %v482, %v482
      %v706 = vmul.f32 %v484, %v484
      %v707 = vmul.f32 %v486, %v486
      %v708 = vmul.f32 %v490, %v490
      %v709 = vmul.f32 %v492, %v492
      %v710 = vmul.f32 %v494, %v494
      %v711 = vmul.f32 %v496, %v496
      %v712 = vmul.f32 %v500, %v500
      %v713 = vmul.f32 %v502, %v502
      %v714 = vmul.f32 %v504, %v504
      %v715 = vmul.f32 %v506, %v506
      %v716 = vmul.f32 %v510, %v510
      %v717 = vmul.f32 %v512, %v512
      %v718 = vmul.f32 %v514, %v514
      %v719 = vmul.f32 %v516, %v516
      %v720 = vadd.f32 %v656, %v658
      %v721 = vadd.f32 %v720, %v660
      %v722 = vadd.f32 %v721, %v662
      %v723 = vadd.f32 %v722, %v664
      %v724 = vadd.f32 %v723, %v666
      %v725 = vadd.f32 %v724, %v668
      %v726 = vadd.f32 %v725, %v670
      %v727 = vadd.f32 %v726, %v672
      %v728 = vadd.f32 %v727, %v674
      %v729 = vadd.f32 %v728, %v676
      %v730 = vadd.f32 %v729, %v678
      %v731 = vadd.f32 %v730, %v680
      %v732 = vadd.f32 %v731, %v682
      %v733 = vadd.f32 %v732, %v684
      %v734 = vadd.f32 %v733, %v686
      %v735 = vadd.f32 %v734, %v688
      %v736 = vadd.f32 %v735, %v690
      %v737 = vadd.f32 %v736, %v692
      %v738 = vadd.f32 %v737, %v694
      %v739 = vadd.f32 %v738, %v696
      %v740 = vadd.f32 %v739, %v698
      %v741 = vadd.f32 %v740, %v700
      %v742 = vadd.f32 %v741, %v702
      %v743 = vadd.f32 %v742, %v704
      %v744 = vadd.f32 %v743, %v706
      %v745 = vadd.f32 %v744, %v708
      %v746 = vadd.f32 %v745, %v710
      %v747 = vadd.f32 %v746, %v712
      %v748 = vadd.f32 %v747, %v714
      %v749 = vadd.f32 %v748, %v716
      %v750 = vadd.f32 %v749, %v718
      %v751 = vrot.slane %v750, 4
      %v752 = vadd.f32 %v750, %v751
      %v753 = vrot.slane %v752, 2
      %v754 = vadd.f32 %v752, %v753
      %v755 = vrot.slane %v754, 1
      %v756 = vadd.f32 %v754, %v755
      %v757 = vadd.f32 %v657, %v659
      %v758 = vadd.f32 %v757, %v661
      %v759 = vadd.f32 %v758, %v663
      %v760 = vadd.f32 %v759, %v665
      %v761 = vadd.f32 %v760, %v667
      %v762 = vadd.f32 %v761, %v669
      %v763 = vadd.f32 %v762, %v671
      %v764 = vadd.f32 %v763, %v673
      %v765 = vadd.f32 %v764, %v675
      %v766 = vadd.f32 %v765, %v677
      %v767 = vadd.f32 %v766, %v679
      %v768 = vadd.f32 %v767, %v681
      %v769 = vadd.f32 %v768, %v683
      %v770 = vadd.f32 %v769, %v685
      %v771 = vadd.f32 %v770, %v687
      %v772 = vadd.f32 %v771, %v689
      %v773 = vadd.f32 %v772, %v691
      %v774 = vadd.f32 %v773, %v693
      %v775 = vadd.f32 %v774, %v695
      %v776 = vadd.f32 %v775, %v697
      %v777 = vadd.f32 %v776, %v699
      %v778 = vadd.f32 %v777, %v701
      %v779 = vadd.f32 %v778, %v703
      %v780 = vadd.f32 %v779, %v705
      %v781 = vadd.f32 %v780, %v707
      %v782 = vadd.f32 %v781, %v709
      %v783 = vadd.f32 %v782, %v711
      %v784 = vadd.f32 %v783, %v713
      %v785 = vadd.f32 %v784, %v715
      %v786 = vadd.f32 %v785, %v717
      %v787 = vadd.f32 %v786, %v719
      %v788 = vrot.slane %v787, 4
      %v789 = vadd.f32 %v787, %v788
      %v790 = vrot.slane %v789, 2
      %v791 = vadd.f32 %v789, %v790
      %v792 = vrot.slane %v791, 1
      %v793 = vadd.f32 %v791, %v792
      %vm794 = vcmask 1040384
      %v795 = vsel %vm794, %v618, %v756
      %v796 = vsel %vm794, %v655, %v793
      %vm797 = vcmask 1041408
      %v798 = vsel %vm797, %v795, 0.0
      %v799 = vsel %vm797, %v796, 0.0
      %v800 = vld [vmem:[%s3] sm:$0xff]
      %v801 = vld [vmem:[%s3 + $0x8] sm:$0xff]
      %v802 = vadd.f32 %v800, %v798
      %v803 = vadd.f32 %v801, %v799
      %804 = vst [vmem:[%s3] sm:$0xff] %v802
      %805 = vst [vmem:[%s3 + $0x8] sm:$0xff] %v803
      %s806 = smul.u32 32, %s15
      %p807 = scmp.lt.s32.totalorder %s806, 63
      %s808 = scalar_select %p807, %s806, 63
      %s809 = smul.addr %s808, 2
      %s810 = smul.addr %s809, 8
      %s811 = scalar_lea.vmem %s2, %s810
      // Predicated region
      $region33: #{mlp_forward.6} parent=27 // pred_check
        %p812 = pneg %p80
      $region34: #{mlp_forward.6} parent=27 // pred_check_branch
        %814 = sbr.rel (%p812) target = $region36
      $region35: #{mlp_forward.6} parent=27 // pred_region
        %s815 = smul.u32 32, %s15
      $region36: #{mlp_forward.6} parent=27 // pred_fallthru
        _
      // Predicated region
      $region37: #{mlp_forward.6} parent=27 // pred_check
        %p816 = pneg %p101
      $region38: #{mlp_forward.6} parent=27 // pred_check_branch
        %818 = sbr.rel (%p816) target = $region40
      $region39: #{mlp_forward.6} parent=27 // pred_region
        _
      $region40: #{mlp_forward.6} parent=27 // pred_fallthru
        _
      // Predicated region
      $region41: #{mlp_forward.6} parent=27 // pred_check
        %p819 = pneg %p101
      $region42: #{mlp_forward.6} parent=27 // pred_check_branch
        %821 = sbr.rel (%p819) target = $region44
      $region43: #{mlp_forward.6} parent=27 // pred_region
        _
      $region44: #{mlp_forward.6} parent=27 // pred_fallthru
        _
    $region28: #{mlp_forward.6} parent=5 // pred_fallthru
      _
    %p822 = scmp.le.s32.totalorder 2, %s10
    // Predicated region
    $region45: #{mlp_forward.6} parent=5 // pred_check
      %p823 = pneg %p822
    $region46: #{mlp_forward.6} parent=5 // pred_check_branch
      %825 = sbr.rel (%p823) target = $region48
    $region47: #{mlp_forward.6} parent=5 // pred_region
      %s826 = ssub.s32 %s10, 2
      // Predicated region
      $region49: #{mlp_forward.6} parent=47 // pred_check
        %p827 = pneg %p86
      $region50: #{mlp_forward.6} parent=47 // pred_check_branch
        %829 = sbr.rel (%p827) target = $region52
      $region51: #{mlp_forward.6} parent=47 // pred_region
        %s830 = smul.u32 32, %s16
        %p831 = scmp.lt.s32.totalorder %s830, 63
        %s832 = scalar_select %p831, %s830, 63
        %s833 = smul.addr %s832, 2
        %s834 = smul.addr %s833, 8
        %s835 = scalar_lea.vmem %s2, %s834
      $region52: #{mlp_forward.6} parent=47 // pred_fallthru
        _
    $region48: #{mlp_forward.6} parent=5 // pred_fallthru
      _
  $region6: #{mlp_forward.6} parent=0 // loop_footer
    %s14 = sadd.s32 1, %s10
  $region7: #{mlp_forward.6} parent=0 // loop_footer_branch
    %9 = sbr.rel target = $region3
  $region8: #{mlp_forward.6} parent=0 // loop_exit
    _

// kernel: mlp_forward.7
$region0: #{mlp_forward.7}
  #allocation0 [shape = 'u32[]', space=smem, size = 0x4, offset = 0x4, fixed_abs, tag = 'smem constant byte address 0x4 - core index']
  #allocation1 [shape = 'u32[144,128]{1,0:T(1,128)}', space=vmem, size = 0x12000, scoped, tag = 'internal scratch']
  %s0 = inlined_call_operand.vmem [shape: f32[512,256], index: 0, kind: input, shape index: {}]
  %s1 = inlined_call_operand.vmem [shape: f32[8,256], index: 1, kind: input, shape index: {}]
  %s2 = inlined_call_operand.vmem [shape: f32[1,256], index: 2, kind: input, shape index: {}]
  %s3 = inlined_call_operand.vmem [shape: f32[1,256], index: 3, kind: input, shape index: {}]
  %s4 = inlined_call_operand.vmem [shape: f32[512,256], index: 4, kind: output, shape index: {}]
  %s5 = sld [smem:[#allocation0]]
  $region49: #{mlp_forward.7} parent=0
    _
  %s7 = ssub.s32 1, %s5
  %s8 = scalar_select 0, %s7, %s5
  loop: start=0, step=1, limit=4
  $region2: #{mlp_forward.7} parent=0 // loop_pre_header
    _
  $region3: #{mlp_forward.7} parent=0 // loop_header
    %s10 = sphi 0, %s14
    %p11 = scmp.ge.s32.totalorder %s10, 4
    %s20 = sphi 0, %s22
    %s23 = sphi 0, %s20
    %s24 = sphi 0, %s23
    %s40 = sphi 0, %s24
    %s44 = sphi 0, %s44
    %s46 = sphi 0, %s44
    %s47 = sphi 0, %s46
    %s61 = sphi 0, %s47
    %s65 = sphi 0, %s65
    %s67 = sphi 0, %s65
    %s68 = sphi 0, %s67
    %s82 = sphi 0, %s68
    %s86 = sphi 0, %s86
    %s88 = sphi 0, %s86
    %s89 = sphi 0, %s88
    %s103 = sphi 0, %s89
    %s109 = sphi 0, %s111
    %s112 = sphi 0, %s109
    %s113 = sphi 0, %s112
    %s129 = sphi 0, %s113
  $region4: #{mlp_forward.7} parent=0 // loop_header_branch
    %13 = sbr.rel (%p11) target = $region8
  $region5: #{mlp_forward.7} parent=0 // loop_body
    %s15 = ssub.s32 %s10, 1
    %s16 = ssub.s32 %s10, 2
    %s17 = sadd.s32 %s10, 1
    %s18 = ssub.s32 %s10, %s17
    %p19 = scmp.eq.s32.totalorder %s18, 0
    %s21 = sadd.s32 %s20, 1
    %s22 = scalar_select %p19, %s20, %s21
    %p25 = pneg %p19
    %p26 = scmp.eq.s32.totalorder %s10, 1
    %p27 = por %p25, %p26
    %p28 = scmp.ne.s32.totalorder %s20, %s23
    %p29 = scmp.eq.s32.totalorder %s10, 0
    %p30 = por %p28, %p29
    %p31 = scmp.ne.s32.totalorder %s20, %s23
    %p32 = scmp.eq.s32.totalorder %s15, 1
    %p33 = por %p31, %p32
    %p34 = scmp.ne.s32.totalorder %s23, %s24
    %p35 = scmp.eq.s32.totalorder %s15, 0
    %p36 = por %p34, %p35
    %p37 = scmp.ne.s32.totalorder %s23, %s24
    %p38 = scmp.eq.s32.totalorder %s16, 1
    %p39 = por %p37, %p38
    %p41 = scmp.ne.s32.totalorder %s24, %s40
    %p42 = scmp.eq.s32.totalorder %s16, 0
    %p43 = por %p41, %p42
    %s45 = sadd.s32 %s44, 1
    %p48 = scmp.eq.s32.totalorder %s10, 1
    %p49 = scmp.ne.s32.totalorder %s44, %s46
    %p50 = scmp.eq.s32.totalorder %s10, 0
    %p51 = por %p49, %p50
    %p52 = scmp.ne.s32.totalorder %s44, %s46
    %p53 = scmp.eq.s32.totalorder %s15, 1
    %p54 = por %p52, %p53
    %p55 = scmp.ne.s32.totalorder %s46, %s47
    %p56 = scmp.eq.s32.totalorder %s15, 0
    %p57 = por %p55, %p56
    %p58 = scmp.ne.s32.totalorder %s46, %s47
    %p59 = scmp.eq.s32.totalorder %s16, 1
    %p60 = por %p58, %p59
    %p62 = scmp.ne.s32.totalorder %s47, %s61
    %p63 = scmp.eq.s32.totalorder %s16, 0
    %p64 = por %p62, %p63
    %s66 = sadd.s32 %s65, 1
    %p69 = scmp.eq.s32.totalorder %s10, 1
    %p70 = scmp.ne.s32.totalorder %s65, %s67
    %p71 = scmp.eq.s32.totalorder %s10, 0
    %p72 = por %p70, %p71
    %p73 = scmp.ne.s32.totalorder %s65, %s67
    %p74 = scmp.eq.s32.totalorder %s15, 1
    %p75 = por %p73, %p74
    %p76 = scmp.ne.s32.totalorder %s67, %s68
    %p77 = scmp.eq.s32.totalorder %s15, 0
    %p78 = por %p76, %p77
    %p79 = scmp.ne.s32.totalorder %s67, %s68
    %p80 = scmp.eq.s32.totalorder %s16, 1
    %p81 = por %p79, %p80
    %p83 = scmp.ne.s32.totalorder %s68, %s82
    %p84 = scmp.eq.s32.totalorder %s16, 0
    %p85 = por %p83, %p84
    %s87 = sadd.s32 %s86, 1
    %p90 = scmp.eq.s32.totalorder %s10, 1
    %p91 = scmp.ne.s32.totalorder %s86, %s88
    %p92 = scmp.eq.s32.totalorder %s10, 0
    %p93 = por %p91, %p92
    %p94 = scmp.ne.s32.totalorder %s86, %s88
    %p95 = scmp.eq.s32.totalorder %s15, 1
    %p96 = por %p94, %p95
    %p97 = scmp.ne.s32.totalorder %s88, %s89
    %p98 = scmp.eq.s32.totalorder %s15, 0
    %p99 = por %p97, %p98
    %p100 = scmp.ne.s32.totalorder %s88, %s89
    %p101 = scmp.eq.s32.totalorder %s16, 1
    %p102 = por %p100, %p101
    %p104 = scmp.ne.s32.totalorder %s89, %s103
    %p105 = scmp.eq.s32.totalorder %s16, 0
    %p106 = por %p104, %p105
    %s107 = ssub.s32 %s10, %s17
    %p108 = scmp.eq.s32.totalorder %s107, 0
    %s110 = sadd.s32 %s109, 1
    %s111 = scalar_select %p108, %s109, %s110
    %p114 = pneg %p108
    %p115 = scmp.eq.s32.totalorder %s10, 1
    %p116 = por %p114, %p115
    %p117 = scmp.ne.s32.totalorder %s109, %s112
    %p118 = scmp.eq.s32.totalorder %s10, 0
    %p119 = por %p117, %p118
    %p120 = scmp.ne.s32.totalorder %s109, %s112
    %p121 = scmp.eq.s32.totalorder %s15, 1
    %p122 = por %p120, %p121
    %p123 = scmp.ne.s32.totalorder %s112, %s113
    %p124 = scmp.eq.s32.totalorder %s15, 0
    %p125 = por %p123, %p124
    %p126 = scmp.ne.s32.totalorder %s112, %s113
    %p127 = scmp.eq.s32.totalorder %s16, 1
    %p128 = por %p126, %p127
    %p130 = scmp.ne.s32.totalorder %s113, %s129
    %p131 = scmp.eq.s32.totalorder %s16, 0
    %p132 = por %p130, %p131
    %p133 = scmp.le.s32.totalorder 1, %s10
    %p134 = scmp.lt.s32.totalorder %s10, 3
    %p135 = pnand %p133, %p134
    %p136 = pneg %p135
    // Predicated region
    $region9: #{mlp_forward.7} parent=5 // pred_check
      _
    $region10: #{mlp_forward.7} parent=5 // pred_check_branch
      %138 = sbr.rel (%p135) target = $region12
    $region11: #{mlp_forward.7} parent=5 // pred_region
      %s139 = ssub.s32 %s10, 1
      // Predicated region
      $region13: #{mlp_forward.7} parent=11 // pred_check
        %p140 = pneg %p57
      $region14: #{mlp_forward.7} parent=11 // pred_check_branch
        %142 = sbr.rel (%p140) target = $region16
      $region15: #{mlp_forward.7} parent=11 // pred_region
        _
      $region16: #{mlp_forward.7} parent=11 // pred_fallthru
        _
      // Predicated region
      $region17: #{mlp_forward.7} parent=11 // pred_check
        %p143 = pneg %p78
      $region18: #{mlp_forward.7} parent=11 // pred_check_branch
        %145 = sbr.rel (%p143) target = $region20
      $region19: #{mlp_forward.7} parent=11 // pred_region
        _
      $region20: #{mlp_forward.7} parent=11 // pred_fallthru
        _
      // Predicated region
      $region21: #{mlp_forward.7} parent=11 // pred_check
        %p146 = pneg %p99
      $region22: #{mlp_forward.7} parent=11 // pred_check_branch
        %148 = sbr.rel (%p146) target = $region24
      $region23: #{mlp_forward.7} parent=11 // pred_region
        _
      $region24: #{mlp_forward.7} parent=11 // pred_fallthru
        _
    $region12: #{mlp_forward.7} parent=5 // pred_fallthru
      _
    %p149 = scmp.lt.s32.totalorder %s10, 2
    // Predicated region
    $region25: #{mlp_forward.7} parent=5 // pred_check
      %p150 = pneg %p149
    $region26: #{mlp_forward.7} parent=5 // pred_check_branch
      %152 = sbr.rel (%p150) target = $region28
    $region27: #{mlp_forward.7} parent=5 // pred_region
      // Predicated region
      $region29: #{mlp_forward.7} parent=27 // pred_check
        %p153 = pneg %p30
      $region30: #{mlp_forward.7} parent=27 // pred_check_branch
        %155 = sbr.rel (%p153) target = $region32
      $region31: #{mlp_forward.7} parent=27 // pred_region
        %s156 = smul.u32 32, %s10
        %p157 = scmp.lt.s32.totalorder %s156, 63
        %s158 = scalar_select %p157, %s156, 63
        %s159 = smul.addr %s158, 2
        %s160 = smul.addr %s159, 8
        %s161 = scalar_lea.vmem %s0, %s160
        %s162 = smul.u32 32, %s10
      $region32: #{mlp_forward.7} parent=27 // pred_fallthru
        _
    $region28: #{mlp_forward.7} parent=5 // pred_fallthru
      _
    %p163 = scmp.le.s32.totalorder 1, %s10
    %p164 = scmp.lt.s32.totalorder %s10, 3
    %p165 = pnand %p163, %p164
    %p166 = pneg %p165
    // Predicated region
    $region33: #{mlp_forward.7} parent=5 // pred_check
      _
    $region34: #{mlp_forward.7} parent=5 // pred_check_branch
      %168 = sbr.rel (%p165) target = $region36
    $region35: #{mlp_forward.7} parent=5 // pred_region
      %s169 = ssub.s32 %s10, 1
      %s170 = smul.u32 32, %s15
      %p171 = scmp.lt.s32.totalorder %s170, 63
      %s172 = scalar_select %p171, %s170, 63
      %s173 = smul.addr %s172, 2
      %s174 = smul.addr %s173, 8
      %s175 = scalar_lea.vmem %s0, %s174
      %p176 = pneg %p36
      %p177 = pneg %p33
      %p178 = pneg %p57
      %p179 = pneg %p54
      %p180 = pneg %p78
      %p181 = pneg %p75
      %p182 = pneg %p99
      %p183 = pneg %p96
      %p184 = pneg %p125
      %p185 = pneg %p122
      %s186 = smul.u32 32, %s15
      %p187 = scmp.lt.s32.totalorder %s186, 63
      %s188 = scalar_select %p187, %s186, 63
      %s189 = smul.addr %s188, 2
      %s190 = smul.addr %s189, 8
      %s191 = scalar_lea.vmem %s4, %s190
      %s192 = smul.u32 32, %s15
      %p193 = scmp.lt.s32.totalorder %s192, 63
      %s194 = scalar_select %p193, %s192, 63
      %s195 = smul.addr %s194, 2
      %s196 = smul.addr %s195, 8
      %s197 = scalar_lea.vmem %s0, %s196
      %s198 = smul.u32 32, %s15
      %s199 = smul.u32 32, %s15
      %p200 = scmp.lt.s32.totalorder %s199, 63
      %s201 = scalar_select %p200, %s199, 63
      %s202 = smul.addr %s201, 2
      %s203 = smul.addr %s202, 8
      %s204 = scalar_lea.vmem %s4, %s203
      %s205 = smul.u32 32, %s15
      %v206 = vld [vmem:[%s1] ss:$8 sm:$0x3]
      %v207 = vmul.f32 %v206, 0.002
      %s208 = scalar_lea.vmem %s1, 1
      %v209 = vld [vmem:[%s208] ss:$8 sm:$0x3]
      %v210 = vmul.f32 %v209, 0.002
      %v211 = vmul.f32 %v207, %v207
      %v212 = vsub.f32 %v210, %v211
      %v213 = vadd.f32 %v212, 1e-05
      %v214 = vrsqrt.pop %v213
      %v215 = vld [vmem:[%s197] sm:$0xff]
      %v216 = vld [vmem:[%s197 + $0x8] sm:$0xff]
      %v217 = vld [vmem:[%s197 + $0x10] sm:$0xff]
      %v218 = vld [vmem:[%s197 + $0x18] sm:$0xff]
      %v219 = vld [vmem:[%s197 + $0x20] sm:$0xff]
      %v220 = vld [vmem:[%s197 + $0x28] sm:$0xff]
      %v221 = vld [vmem:[%s197 + $0x30] sm:$0xff]
      %v222 = vld [vmem:[%s197 + $0x38] sm:$0xff]
      %v223 = vld [vmem:[%s197 + $0x40] sm:$0xff]
      %v224 = vld [vmem:[%s197 + $0x48] sm:$0xff]
      %v225 = vld [vmem:[%s197 + $0x50] sm:$0xff]
      %v226 = vld [vmem:[%s197 + $0x58] sm:$0xff]
      %v227 = vld [vmem:[%s197 + $0x60] sm:$0xff]
      %v228 = vld [vmem:[%s197 + $0x68] sm:$0xff]
      %v229 = vld [vmem:[%s197 + $0x70] sm:$0xff]
      %v230 = vld [vmem:[%s197 + $0x78] sm:$0xff]
      %v231 = vld [vmem:[%s197 + $0x80] sm:$0xff]
      %v232 = vld [vmem:[%s197 + $0x88] sm:$0xff]
      %v233 = vld [vmem:[%s197 + $0x90] sm:$0xff]
      %v234 = vld [vmem:[%s197 + $0x98] sm:$0xff]
      %v235 = vld [vmem:[%s197 + $0xa0] sm:$0xff]
      %v236 = vld [vmem:[%s197 + $0xa8] sm:$0xff]
      %v237 = vld [vmem:[%s197 + $0xb0] sm:$0xff]
      %v238 = vld [vmem:[%s197 + $0xb8] sm:$0xff]
      %v239 = vld [vmem:[%s197 + $0xc0] sm:$0xff]
      %v240 = vld [vmem:[%s197 + $0xc8] sm:$0xff]
      %v241 = vld [vmem:[%s197 + $0xd0] sm:$0xff]
      %v242 = vld [vmem:[%s197 + $0xd8] sm:$0xff]
      %v243 = vld [vmem:[%s197 + $0xe0] sm:$0xff]
      %v244 = vld [vmem:[%s197 + $0xe8] sm:$0xff]
      %v245 = vld [vmem:[%s197 + $0xf0] sm:$0xff]
      %v246 = vld [vmem:[%s197 + $0xf8] sm:$0xff]
      %v247 = vld [vmem:[%s197 + $0x100] sm:$0xff]
      %v248 = vld [vmem:[%s197 + $0x108] sm:$0xff]
      %v249 = vld [vmem:[%s197 + $0x110] sm:$0xff]
      %v250 = vld [vmem:[%s197 + $0x118] sm:$0xff]
      %v251 = vld [vmem:[%s197 + $0x120] sm:$0xff]
      %v252 = vld [vmem:[%s197 + $0x128] sm:$0xff]
      %v253 = vld [vmem:[%s197 + $0x130] sm:$0xff]
      %v254 = vld [vmem:[%s197 + $0x138] sm:$0xff]
      %v255 = vld [vmem:[%s197 + $0x140] sm:$0xff]
      %v256 = vld [vmem:[%s197 + $0x148] sm:$0xff]
      %v257 = vld [vmem:[%s197 + $0x150] sm:$0xff]
      %v258 = vld [vmem:[%s197 + $0x158] sm:$0xff]
      %v259 = vld [vmem:[%s197 + $0x160] sm:$0xff]
      %v260 = vld [vmem:[%s197 + $0x168] sm:$0xff]
      %v261 = vld [vmem:[%s197 + $0x170] sm:$0xff]
      %v262 = vld [vmem:[%s197 + $0x178] sm:$0xff]
      %v263 = vld [vmem:[%s197 + $0x180] sm:$0xff]
      %v264 = vld [vmem:[%s197 + $0x188] sm:$0xff]
      %v265 = vld [vmem:[%s197 + $0x190] sm:$0xff]
      %v266 = vld [vmem:[%s197 + $0x198] sm:$0xff]
      %v267 = vld [vmem:[%s197 + $0x1a0] sm:$0xff]
      %v268 = vld [vmem:[%s197 + $0x1a8] sm:$0xff]
      %v269 = vld [vmem:[%s197 + $0x1b0] sm:$0xff]
      %v270 = vld [vmem:[%s197 + $0x1b8] sm:$0xff]
      %v271 = vld [vmem:[%s197 + $0x1c0] sm:$0xff]
      %v272 = vld [vmem:[%s197 + $0x1c8] sm:$0xff]
      %v273 = vld [vmem:[%s197 + $0x1d0] sm:$0xff]
      %v274 = vld [vmem:[%s197 + $0x1d8] sm:$0xff]
      %v275 = vld [vmem:[%s197 + $0x1e0] sm:$0xff]
      %v276 = vld [vmem:[%s197 + $0x1e8] sm:$0xff]
      %v277 = vld [vmem:[%s197 + $0x1f0] sm:$0xff]
      %v278 = vld [vmem:[%s197 + $0x1f8] sm:$0xff]
      %v280 = vlaneseq
      %v281 = vshrl.u32 %v280, 7
      %v282 = vsub.s32 0, %v281
      %v283 = vrot.slane %v207, %v282
      %v284 = vlaneseq
      %v285 = vshrl.u32 %v284, 7
      %v286 = vsub.s32 1, %v285
      %v287 = vrot.slane %v207, %v286
      %v290 = vsub.f32 %v215, %v283
      %v291 = vsub.f32 %v216, %v287
      %v292 = vsub.f32 %v217, %v283
      %v293 = vsub.f32 %v218, %v287
      %v294 = vsub.f32 %v219, %v283
      %v295 = vsub.f32 %v220, %v287
      %v296 = vsub.f32 %v221, %v283
      %v297 = vsub.f32 %v222, %v287
      %v298 = vsub.f32 %v223, %v283
      %v299 = vsub.f32 %v224, %v287
      %v300 = vsub.f32 %v225, %v283
      %v301 = vsub.f32 %v226, %v287
      %v302 = vsub.f32 %v227, %v283
      %v303 = vsub.f32 %v228, %v287
      %v304 = vsub.f32 %v229, %v283
      %v305 = vsub.f32 %v230, %v287
      %v306 = vsub.f32 %v231, %v283
      %v307 = vsub.f32 %v232, %v287
      %v308 = vsub.f32 %v233, %v283
      %v309 = vsub.f32 %v234, %v287
      %v310 = vsub.f32 %v235, %v283
      %v311 = vsub.f32 %v236, %v287
      %v312 = vsub.f32 %v237, %v283
      %v313 = vsub.f32 %v238, %v287
      %v314 = vsub.f32 %v239, %v283
      %v315 = vsub.f32 %v240, %v287
      %v316 = vsub.f32 %v241, %v283
      %v317 = vsub.f32 %v242, %v287
      %v318 = vsub.f32 %v243, %v283
      %v319 = vsub.f32 %v244, %v287
      %v320 = vsub.f32 %v245, %v283
      %v321 = vsub.f32 %v246, %v287
      %v322 = vsub.f32 %v247, %v283
      %v323 = vsub.f32 %v248, %v287
      %v324 = vsub.f32 %v249, %v283
      %v325 = vsub.f32 %v250, %v287
      %v326 = vsub.f32 %v251, %v283
      %v327 = vsub.f32 %v252, %v287
      %v328 = vsub.f32 %v253, %v283
      %v329 = vsub.f32 %v254, %v287
      %v330 = vsub.f32 %v255, %v283
      %v331 = vsub.f32 %v256, %v287
      %v332 = vsub.f32 %v257, %v283
      %v333 = vsub.f32 %v258, %v287
      %v334 = vsub.f32 %v259, %v283
      %v335 = vsub.f32 %v260, %v287
      %v336 = vsub.f32 %v261, %v283
      %v337 = vsub.f32 %v262, %v287
      %v338 = vsub.f32 %v263, %v283
      %v339 = vsub.f32 %v264, %v287
      %v340 = vsub.f32 %v265, %v283
      %v341 = vsub.f32 %v266, %v287
      %v342 = vsub.f32 %v267, %v283
      %v343 = vsub.f32 %v268, %v287
      %v344 = vsub.f32 %v269, %v283
      %v345 = vsub.f32 %v270, %v287
      %v346 = vsub.f32 %v271, %v283
      %v347 = vsub.f32 %v272, %v287
      %v348 = vsub.f32 %v273, %v283
      %v349 = vsub.f32 %v274, %v287
      %v350 = vsub.f32 %v275, %v283
      %v351 = vsub.f32 %v276, %v287
      %v352 = vsub.f32 %v277, %v283
      %v353 = vsub.f32 %v278, %v287
      %v355 = vlaneseq
      %v356 = vshrl.u32 %v355, 7
      %v357 = vsub.s32 0, %v356
      %v358 = vrot.slane %v214, %v357
      %v359 = vlaneseq
      %v360 = vshrl.u32 %v359, 7
      %v361 = vsub.s32 1, %v360
      %v362 = vrot.slane %v214, %v361
      %v365 = vmul.f32 %v290, %v358
      %v366 = vmul.f32 %v291, %v362
      %v367 = vmul.f32 %v292, %v358
      %v368 = vmul.f32 %v293, %v362
      %v369 = vmul.f32 %v294, %v358
      %v370 = vmul.f32 %v295, %v362
      %v371 = vmul.f32 %v296, %v358
      %v372 = vmul.f32 %v297, %v362
      %v373 = vmul.f32 %v298, %v358
      %v374 = vmul.f32 %v299, %v362
      %v375 = vmul.f32 %v300, %v358
      %v376 = vmul.f32 %v301, %v362
      %v377 = vmul.f32 %v302, %v358
      %v378 = vmul.f32 %v303, %v362
      %v379 = vmul.f32 %v304, %v358
      %v380 = vmul.f32 %v305, %v362
      %v381 = vmul.f32 %v306, %v358
      %v382 = vmul.f32 %v307, %v362
      %v383 = vmul.f32 %v308, %v358
      %v384 = vmul.f32 %v309, %v362
      %v385 = vmul.f32 %v310, %v358
      %v386 = vmul.f32 %v311, %v362
      %v387 = vmul.f32 %v312, %v358
      %v388 = vmul.f32 %v313, %v362
      %v389 = vmul.f32 %v314, %v358
      %v390 = vmul.f32 %v315, %v362
      %v391 = vmul.f32 %v316, %v358
      %v392 = vmul.f32 %v317, %v362
      %v393 = vmul.f32 %v318, %v358
      %v394 = vmul.f32 %v319, %v362
      %v395 = vmul.f32 %v320, %v358
      %v396 = vmul.f32 %v321, %v362
      %v397 = vmul.f32 %v322, %v358
      %v398 = vmul.f32 %v323, %v362
      %v399 = vmul.f32 %v324, %v358
      %v400 = vmul.f32 %v325, %v362
      %v401 = vmul.f32 %v326, %v358
      %v402 = vmul.f32 %v327, %v362
      %v403 = vmul.f32 %v328, %v358
      %v404 = vmul.f32 %v329, %v362
      %v405 = vmul.f32 %v330, %v358
      %v406 = vmul.f32 %v331, %v362
      %v407 = vmul.f32 %v332, %v358
      %v408 = vmul.f32 %v333, %v362
      %v409 = vmul.f32 %v334, %v358
      %v410 = vmul.f32 %v335, %v362
      %v411 = vmul.f32 %v336, %v358
      %v412 = vmul.f32 %v337, %v362
      %v413 = vmul.f32 %v338, %v358
      %v414 = vmul.f32 %v339, %v362
      %v415 = vmul.f32 %v340, %v358
      %v416 = vmul.f32 %v341, %v362
      %v417 = vmul.f32 %v342, %v358
      %v418 = vmul.f32 %v343, %v362
      %v419 = vmul.f32 %v344, %v358
      %v420 = vmul.f32 %v345, %v362
      %v421 = vmul.f32 %v346, %v358
      %v422 = vmul.f32 %v347, %v362
      %v423 = vmul.f32 %v348, %v358
      %v424 = vmul.f32 %v349, %v362
      %v425 = vmul.f32 %v350, %v358
      %v426 = vmul.f32 %v351, %v362
      %v427 = vmul.f32 %v352, %v358
      %v428 = vmul.f32 %v353, %v362
      %v429 = vld [vmem:[%s2] sm:$0x3]
      %v431 = vlaneseq
      %v432 = vshrl.u32 %v431, 7
      %v433 = vsub.s32 0, %v432
      %v434 = vrot.slane %v429, %v433
      %v435 = vlaneseq
      %v436 = vshrl.u32 %v435, 7
      %v437 = vsub.s32 1, %v436
      %v438 = vrot.slane %v429, %v437
      %v441 = vmul.f32 %v365, %v434
      %v442 = vmul.f32 %v366, %v438
      %v443 = vmul.f32 %v367, %v434
      %v444 = vmul.f32 %v368, %v438
      %v445 = vmul.f32 %v369, %v434
      %v446 = vmul.f32 %v370, %v438
      %v447 = vmul.f32 %v371, %v434
      %v448 = vmul.f32 %v372, %v438
      %v449 = vmul.f32 %v373, %v434
      %v450 = vmul.f32 %v374, %v438
      %v451 = vmul.f32 %v375, %v434
      %v452 = vmul.f32 %v376, %v438
      %v453 = vmul.f32 %v377, %v434
      %v454 = vmul.f32 %v378, %v438
      %v455 = vmul.f32 %v379, %v434
      %v456 = vmul.f32 %v380, %v438
      %v457 = vmul.f32 %v381, %v434
      %v458 = vmul.f32 %v382, %v438
      %v459 = vmul.f32 %v383, %v434
      %v460 = vmul.f32 %v384, %v438
      %v461 = vmul.f32 %v385, %v434
      %v462 = vmul.f32 %v386, %v438
      %v463 = vmul.f32 %v387, %v434
      %v464 = vmul.f32 %v388, %v438
      %v465 = vmul.f32 %v389, %v434
      %v466 = vmul.f32 %v390, %v438
      %v467 = vmul.f32 %v391, %v434
      %v468 = vmul.f32 %v392, %v438
      %v469 = vmul.f32 %v393, %v434
      %v470 = vmul.f32 %v394, %v438
      %v471 = vmul.f32 %v395, %v434
      %v472 = vmul.f32 %v396, %v438
      %v473 = vmul.f32 %v397, %v434
      %v474 = vmul.f32 %v398, %v438
      %v475 = vmul.f32 %v399, %v434
      %v476 = vmul.f32 %v400, %v438
      %v477 = vmul.f32 %v401, %v434
      %v478 = vmul.f32 %v402, %v438
      %v479 = vmul.f32 %v403, %v434
      %v480 = vmul.f32 %v404, %v438
      %v481 = vmul.f32 %v405, %v434
      %v482 = vmul.f32 %v406, %v438
      %v483 = vmul.f32 %v407, %v434
      %v484 = vmul.f32 %v408, %v438
      %v485 = vmul.f32 %v409, %v434
      %v486 = vmul.f32 %v410, %v438
      %v487 = vmul.f32 %v411, %v434
      %v488 = vmul.f32 %v412, %v438
      %v489 = vmul.f32 %v413, %v434
      %v490 = vmul.f32 %v414, %v438
      %v491 = vmul.f32 %v415, %v434
      %v492 = vmul.f32 %v416, %v438
      %v493 = vmul.f32 %v417, %v434
      %v494 = vmul.f32 %v418, %v438
      %v495 = vmul.f32 %v419, %v434
      %v496 = vmul.f32 %v420, %v438
      %v497 = vmul.f32 %v421, %v434
      %v498 = vmul.f32 %v422, %v438
      %v499 = vmul.f32 %v423, %v434
      %v500 = vmul.f32 %v424, %v438
      %v501 = vmul.f32 %v425, %v434
      %v502 = vmul.f32 %v426, %v438
      %v503 = vmul.f32 %v427, %v434
      %v504 = vmul.f32 %v428, %v438
      %v505 = vld [vmem:[%s3] sm:$0x3]
      %v507 = vlaneseq
      %v508 = vshrl.u32 %v507, 7
      %v509 = vsub.s32 0, %v508
      %v510 = vrot.slane %v505, %v509
      %v511 = vlaneseq
      %v512 = vshrl.u32 %v511, 7
      %v513 = vsub.s32 1, %v512
      %v514 = vrot.slane %v505, %v513
      %v517 = vadd.f32 %v441, %v510
      %v518 = vadd.f32 %v442, %v514
      %v519 = vadd.f32 %v443, %v510
      %v520 = vadd.f32 %v444, %v514
      %v521 = vadd.f32 %v445, %v510
      %v522 = vadd.f32 %v446, %v514
      %v523 = vadd.f32 %v447, %v510
      %v524 = vadd.f32 %v448, %v514
      %v525 = vadd.f32 %v449, %v510
      %v526 = vadd.f32 %v450, %v514
      %v527 = vadd.f32 %v451, %v510
      %v528 = vadd.f32 %v452, %v514
      %v529 = vadd.f32 %v453, %v510
      %v530 = vadd.f32 %v454, %v514
      %v531 = vadd.f32 %v455, %v510
      %v532 = vadd.f32 %v456, %v514
      %v533 = vadd.f32 %v457, %v510
      %v534 = vadd.f32 %v458, %v514
      %v535 = vadd.f32 %v459, %v510
      %v536 = vadd.f32 %v460, %v514
      %v537 = vadd.f32 %v461, %v510
      %v538 = vadd.f32 %v462, %v514
      %v539 = vadd.f32 %v463, %v510
      %v540 = vadd.f32 %v464, %v514
      %v541 = vadd.f32 %v465, %v510
      %v542 = vadd.f32 %v466, %v514
      %v543 = vadd.f32 %v467, %v510
      %v544 = vadd.f32 %v468, %v514
      %v545 = vadd.f32 %v469, %v510
      %v546 = vadd.f32 %v470, %v514
      %v547 = vadd.f32 %v471, %v510
      %v548 = vadd.f32 %v472, %v514
      %v549 = vadd.f32 %v473, %v510
      %v550 = vadd.f32 %v474, %v514
      %v551 = vadd.f32 %v475, %v510
      %v552 = vadd.f32 %v476, %v514
      %v553 = vadd.f32 %v477, %v510
      %v554 = vadd.f32 %v478, %v514
      %v555 = vadd.f32 %v479, %v510
      %v556 = vadd.f32 %v480, %v514
      %v557 = vadd.f32 %v481, %v510
      %v558 = vadd.f32 %v482, %v514
      %v559 = vadd.f32 %v483, %v510
      %v560 = vadd.f32 %v484, %v514
      %v561 = vadd.f32 %v485, %v510
      %v562 = vadd.f32 %v486, %v514
      %v563 = vadd.f32 %v487, %v510
      %v564 = vadd.f32 %v488, %v514
      %v565 = vadd.f32 %v489, %v510
      %v566 = vadd.f32 %v490, %v514
      %v567 = vadd.f32 %v491, %v510
      %v568 = vadd.f32 %v492, %v514
      %v569 = vadd.f32 %v493, %v510
      %v570 = vadd.f32 %v494, %v514
      %v571 = vadd.f32 %v495, %v510
      %v572 = vadd.f32 %v496, %v514
      %v573 = vadd.f32 %v497, %v510
      %v574 = vadd.f32 %v498, %v514
      %v575 = vadd.f32 %v499, %v510
      %v576 = vadd.f32 %v500, %v514
      %v577 = vadd.f32 %v501, %v510
      %v578 = vadd.f32 %v502, %v514
      %v579 = vadd.f32 %v503, %v510
      %v580 = vadd.f32 %v504, %v514
      %vm581 = vcmp.gt.f32.partialorder %v517, 0.0
      %vm582 = vcmp.gt.f32.partialorder %v518, 0.0
      %vm583 = vcmp.gt.f32.partialorder %v519, 0.0
      %vm584 = vcmp.gt.f32.partialorder %v520, 0.0
      %vm585 = vcmp.gt.f32.partialorder %v521, 0.0
      %vm586 = vcmp.gt.f32.partialorder %v522, 0.0
      %vm587 = vcmp.gt.f32.partialorder %v523, 0.0
      %vm588 = vcmp.gt.f32.partialorder %v524, 0.0
      %vm589 = vcmp.gt.f32.partialorder %v525, 0.0
      %vm590 = vcmp.gt.f32.partialorder %v526, 0.0
      %vm591 = vcmp.gt.f32.partialorder %v527, 0.0
      %vm592 = vcmp.gt.f32.partialorder %v528, 0.0
      %vm593 = vcmp.gt.f32.partialorder %v529, 0.0
      %vm594 = vcmp.gt.f32.partialorder %v530, 0.0
      %vm595 = vcmp.gt.f32.partialorder %v531, 0.0
      %vm596 = vcmp.gt.f32.partialorder %v532, 0.0
      %vm597 = vcmp.gt.f32.partialorder %v533, 0.0
      %vm598 = vcmp.gt.f32.partialorder %v534, 0.0
      %vm599 = vcmp.gt.f32.partialorder %v535, 0.0
      %vm600 = vcmp.gt.f32.partialorder %v536, 0.0
      %vm601 = vcmp.gt.f32.partialorder %v537, 0.0
      %vm602 = vcmp.gt.f32.partialorder %v538, 0.0
      %vm603 = vcmp.gt.f32.partialorder %v539, 0.0
      %vm604 = vcmp.gt.f32.partialorder %v540, 0.0
      %vm605 = vcmp.gt.f32.partialorder %v541, 0.0
      %vm606 = vcmp.gt.f32.partialorder %v542, 0.0
      %vm607 = vcmp.gt.f32.partialorder %v543, 0.0
      %vm608 = vcmp.gt.f32.partialorder %v544, 0.0
      %vm609 = vcmp.gt.f32.partialorder %v545, 0.0
      %vm610 = vcmp.gt.f32.partialorder %v546, 0.0
      %vm611 = vcmp.gt.f32.partialorder %v547, 0.0
      %vm612 = vcmp.gt.f32.partialorder %v548, 0.0
      %vm613 = vcmp.gt.f32.partialorder %v549, 0.0
      %vm614 = vcmp.gt.f32.partialorder %v550, 0.0
      %vm615 = vcmp.gt.f32.partialorder %v551, 0.0
      %vm616 = vcmp.gt.f32.partialorder %v552, 0.0
      %vm617 = vcmp.gt.f32.partialorder %v553, 0.0
      %vm618 = vcmp.gt.f32.partialorder %v554, 0.0
      %vm619 = vcmp.gt.f32.partialorder %v555, 0.0
      %vm620 = vcmp.gt.f32.partialorder %v556, 0.0
      %vm621 = vcmp.gt.f32.partialorder %v557, 0.0
      %vm622 = vcmp.gt.f32.partialorder %v558, 0.0
      %vm623 = vcmp.gt.f32.partialorder %v559, 0.0
      %vm624 = vcmp.gt.f32.partialorder %v560, 0.0
      %vm625 = vcmp.gt.f32.partialorder %v561, 0.0
      %vm626 = vcmp.gt.f32.partialorder %v562, 0.0
      %vm627 = vcmp.gt.f32.partialorder %v563, 0.0
      %vm628 = vcmp.gt.f32.partialorder %v564, 0.0
      %vm629 = vcmp.gt.f32.partialorder %v565, 0.0
      %vm630 = vcmp.gt.f32.partialorder %v566, 0.0
      %vm631 = vcmp.gt.f32.partialorder %v567, 0.0
      %vm632 = vcmp.gt.f32.partialorder %v568, 0.0
      %vm633 = vcmp.gt.f32.partialorder %v569, 0.0
      %vm634 = vcmp.gt.f32.partialorder %v570, 0.0
      %vm635 = vcmp.gt.f32.partialorder %v571, 0.0
      %vm636 = vcmp.gt.f32.partialorder %v572, 0.0
      %vm637 = vcmp.gt.f32.partialorder %v573, 0.0
      %vm638 = vcmp.gt.f32.partialorder %v574, 0.0
      %vm639 = vcmp.gt.f32.partialorder %v575, 0.0
      %vm640 = vcmp.gt.f32.partialorder %v576, 0.0
      %vm641 = vcmp.gt.f32.partialorder %v577, 0.0
      %vm642 = vcmp.gt.f32.partialorder %v578, 0.0
      %vm643 = vcmp.gt.f32.partialorder %v579, 0.0
      %vm644 = vcmp.gt.f32.partialorder %v580, 0.0
      %v645 = vmul.f32 %v517, 1.442695
      %v646 = vpow.pop %v645
      %v647 = vmul.f32 %v518, 1.442695
      %v648 = vpow.pop %v647
      %v649 = vmul.f32 %v519, 1.442695
      %v650 = vpow.pop %v649
      %v651 = vmul.f32 %v520, 1.442695
      %v652 = vpow.pop %v651
      %v653 = vmul.f32 %v521, 1.442695
      %v654 = vpow.pop %v653
      %v655 = vmul.f32 %v522, 1.442695
      %v656 = vpow.pop %v655
      %v657 = vmul.f32 %v523, 1.442695
      %v658 = vpow.pop %v657
      %v659 = vmul.f32 %v524, 1.442695
      %v660 = vpow.pop %v659
      %v661 = vmul.f32 %v525, 1.442695
      %v662 = vpow.pop %v661
      %v663 = vmul.f32 %v526, 1.442695
      %v664 = vpow.pop %v663
      %v665 = vmul.f32 %v527, 1.442695
      %v666 = vpow.pop %v665
      %v667 = vmul.f32 %v528, 1.442695
      %v668 = vpow.pop %v667
      %v669 = vmul.f32 %v529, 1.442695
      %v670 = vpow.pop %v669
      %v671 = vmul.f32 %v530, 1.442695
      %v672 = vpow.pop %v671
      %v673 = vmul.f32 %v531, 1.442695
      %v674 = vpow.pop %v673
      %v675 = vmul.f32 %v532, 1.442695
      %v676 = vpow.pop %v675
      %v677 = vmul.f32 %v533, 1.442695
      %v678 = vpow.pop %v677
      %v679 = vmul.f32 %v534, 1.442695
      %v680 = vpow.pop %v679
      %v681 = vmul.f32 %v535, 1.442695
      %v682 = vpow.pop %v681
      %v683 = vmul.f32 %v536, 1.442695
      %v684 = vpow.pop %v683
      %v685 = vmul.f32 %v537, 1.442695
      %v686 = vpow.pop %v685
      %v687 = vmul.f32 %v538, 1.442695
      %v688 = vpow.pop %v687
      %v689 = vmul.f32 %v539, 1.442695
      %v690 = vpow.pop %v689
      %v691 = vmul.f32 %v540, 1.442695
      %v692 = vpow.pop %v691
      %v693 = vmul.f32 %v541, 1.442695
      %v694 = vpow.pop %v693
      %v695 = vmul.f32 %v542, 1.442695
      %v696 = vpow.pop %v695
      %v697 = vmul.f32 %v543, 1.442695
      %v698 = vpow.pop %v697
      %v699 = vmul.f32 %v544, 1.442695
      %v700 = vpow.pop %v699
      %v701 = vmul.f32 %v545, 1.442695
      %v702 = vpow.pop %v701
      %v703 = vmul.f32 %v546, 1.442695
      %v704 = vpow.pop %v703
      %v705 = vmul.f32 %v547, 1.442695
      %v706 = vpow.pop %v705
      %v707 = vmul.f32 %v548, 1.442695
      %v708 = vpow.pop %v707
      %v709 = vmul.f32 %v549, 1.442695
      %v710 = vpow.pop %v709
      %v711 = vmul.f32 %v550, 1.442695
      %v712 = vpow.pop %v711
      %v713 = vmul.f32 %v551, 1.442695
      %v714 = vpow.pop %v713
      %v715 = vmul.f32 %v552, 1.442695
      %v716 = vpow.pop %v715
      %v717 = vmul.f32 %v553, 1.442695
      %v718 = vpow.pop %v717
      %v719 = vmul.f32 %v554, 1.442695
      %v720 = vpow.pop %v719
      %v721 = vmul.f32 %v555, 1.442695
      %v722 = vpow.pop %v721
      %v723 = vmul.f32 %v556, 1.442695
      %v724 = vpow.pop %v723
      %v725 = vmul.f32 %v557, 1.442695
      %v726 = vpow.pop %v725
      %v727 = vmul.f32 %v558, 1.442695
      %v728 = vpow.pop %v727
      %v729 = vmul.f32 %v559, 1.442695
      %v730 = vpow.pop %v729
      %v731 = vmul.f32 %v560, 1.442695
      %v732 = vpow.pop %v731
      %v733 = vmul.f32 %v561, 1.442695
      %v734 = vpow.pop %v733
      %v735 = vmul.f32 %v562, 1.442695
      %v736 = vpow.pop %v735
      %v737 = vmul.f32 %v563, 1.442695
      %v738 = vpow.pop %v737
      %v739 = vmul.f32 %v564, 1.442695
      %v740 = vpow.pop %v739
      %v741 = vmul.f32 %v565, 1.442695
      %v742 = vpow.pop %v741
      %v743 = vmul.f32 %v566, 1.442695
      %v744 = vpow.pop %v743
      %v745 = vmul.f32 %v567, 1.442695
      %v746 = vpow.pop %v745
      %v747 = vmul.f32 %v568, 1.442695
      %v748 = vpow.pop %v747
      %v749 = vmul.f32 %v569, 1.442695
      %v750 = vpow.pop %v749
      %v751 = vmul.f32 %v570, 1.442695
      %v752 = vpow.pop %v751
      %v753 = vmul.f32 %v571, 1.442695
      %v754 = vpow.pop %v753
      %v755 = vmul.f32 %v572, 1.442695
      %v756 = vpow.pop %v755
      %v757 = vmul.f32 %v573, 1.442695
      %v758 = vpow.pop %v757
      %v759 = vmul.f32 %v574, 1.442695
      %v760 = vpow.pop %v759
      %v761 = vmul.f32 %v575, 1.442695
      %v762 = vpow.pop %v761
      %v763 = vmul.f32 %v576, 1.442695
      %v764 = vpow.pop %v763
      %v765 = vmul.f32 %v577, 1.442695
      %v766 = vpow.pop %v765
      %v767 = vmul.f32 %v578, 1.442695
      %v768 = vpow.pop %v767
      %v769 = vmul.f32 %v579, 1.442695
      %v770 = vpow.pop %v769
      %v771 = vmul.f32 %v580, 1.442695
      %v772 = vpow.pop %v771
      %v773 = vsub.f32 %v646, 1.0
      %v774 = vsub.f32 %v648, 1.0
      %v775 = vsub.f32 %v650, 1.0
      %v776 = vsub.f32 %v652, 1.0
      %v777 = vsub.f32 %v654, 1.0
      %v778 = vsub.f32 %v656, 1.0
      %v779 = vsub.f32 %v658, 1.0
      %v780 = vsub.f32 %v660, 1.0
      %v781 = vsub.f32 %v662, 1.0
      %v782 = vsub.f32 %v664, 1.0
      %v783 = vsub.f32 %v666, 1.0
      %v784 = vsub.f32 %v668, 1.0
      %v785 = vsub.f32 %v670, 1.0
      %v786 = vsub.f32 %v672, 1.0
      %v787 = vsub.f32 %v674, 1.0
      %v788 = vsub.f32 %v676, 1.0
      %v789 = vsub.f32 %v678, 1.0
      %v790 = vsub.f32 %v680, 1.0
      %v791 = vsub.f32 %v682, 1.0
      %v792 = vsub.f32 %v684, 1.0
      %v793 = vsub.f32 %v686, 1.0
      %v794 = vsub.f32 %v688, 1.0
      %v795 = vsub.f32 %v690, 1.0
      %v796 = vsub.f32 %v692, 1.0
      %v797 = vsub.f32 %v694, 1.0
      %v798 = vsub.f32 %v696, 1.0
      %v799 = vsub.f32 %v698, 1.0
      %v800 = vsub.f32 %v700, 1.0
      %v801 = vsub.f32 %v702, 1.0
      %v802 = vsub.f32 %v704, 1.0
      %v803 = vsub.f32 %v706, 1.0
      %v804 = vsub.f32 %v708, 1.0
      %v805 = vsub.f32 %v710, 1.0
      %v806 = vsub.f32 %v712, 1.0
      %v807 = vsub.f32 %v714, 1.0
      %v808 = vsub.f32 %v716, 1.0
      %v809 = vsub.f32 %v718, 1.0
      %v810 = vsub.f32 %v720, 1.0
      %v811 = vsub.f32 %v722, 1.0
      %v812 = vsub.f32 %v724, 1.0
      %v813 = vsub.f32 %v726, 1.0
      %v814 = vsub.f32 %v728, 1.0
      %v815 = vsub.f32 %v730, 1.0
      %v816 = vsub.f32 %v732, 1.0
      %v817 = vsub.f32 %v734, 1.0
      %v818 = vsub.f32 %v736, 1.0
      %v819 = vsub.f32 %v738, 1.0
      %v820 = vsub.f32 %v740, 1.0
      %v821 = vsub.f32 %v742, 1.0
      %v822 = vsub.f32 %v744, 1.0
      %v823 = vsub.f32 %v746, 1.0
      %v824 = vsub.f32 %v748, 1.0
      %v825 = vsub.f32 %v750, 1.0
      %v826 = vsub.f32 %v752, 1.0
      %v827 = vsub.f32 %v754, 1.0
      %v828 = vsub.f32 %v756, 1.0
      %v829 = vsub.f32 %v758, 1.0
      %v830 = vsub.f32 %v760, 1.0
      %v831 = vsub.f32 %v762, 1.0
      %v832 = vsub.f32 %v764, 1.0
      %v833 = vsub.f32 %v766, 1.0
      %v834 = vsub.f32 %v768, 1.0
      %v835 = vsub.f32 %v770, 1.0
      %v836 = vsub.f32 %v772, 1.0
      %v837 = vsel %vm581, %v517, %v773
      %v838 = vsel %vm582, %v518, %v774
      %v839 = vsel %vm583, %v519, %v775
      %v840 = vsel %vm584, %v520, %v776
      %v841 = vsel %vm585, %v521, %v777
      %v842 = vsel %vm586, %v522, %v778
      %v843 = vsel %vm587, %v523, %v779
      %v844 = vsel %vm588, %v524, %v780
      %v845 = vsel %vm589, %v525, %v781
      %v846 = vsel %vm590, %v526, %v782
      %v847 = vsel %vm591, %v527, %v783
      %v848 = vsel %vm592, %v528, %v784
      %v849 = vsel %vm593, %v529, %v785
      %v850 = vsel %vm594, %v530, %v786
      %v851 = vsel %vm595, %v531, %v787
      %v852 = vsel %vm596, %v532, %v788
      %v853 = vsel %vm597, %v533, %v789
      %v854 = vsel %vm598, %v534, %v790
      %v855 = vsel %vm599, %v535, %v791
      %v856 = vsel %vm600, %v536, %v792
      %v857 = vsel %vm601, %v537, %v793
      %v858 = vsel %vm602, %v538, %v794
      %v859 = vsel %vm603, %v539, %v795
      %v860 = vsel %vm604, %v540, %v796
      %v861 = vsel %vm605, %v541, %v797
      %v862 = vsel %vm606, %v542, %v798
      %v863 = vsel %vm607, %v543, %v799
      %v864 = vsel %vm608, %v544, %v800
      %v865 = vsel %vm609, %v545, %v801
      %v866 = vsel %vm610, %v546, %v802
      %v867 = vsel %vm611, %v547, %v803
      %v868 = vsel %vm612, %v548, %v804
      %v869 = vsel %vm613, %v549, %v805
      %v870 = vsel %vm614, %v550, %v806
      %v871 = vsel %vm615, %v551, %v807
      %v872 = vsel %vm616, %v552, %v808
      %v873 = vsel %vm617, %v553, %v809
      %v874 = vsel %vm618, %v554, %v810
      %v875 = vsel %vm619, %v555, %v811
      %v876 = vsel %vm620, %v556, %v812
      %v877 = vsel %vm621, %v557, %v813
      %v878 = vsel %vm622, %v558, %v814
      %v879 = vsel %vm623, %v559, %v815
      %v880 = vsel %vm624, %v560, %v816
      %v881 = vsel %vm625, %v561, %v817
      %v882 = vsel %vm626, %v562, %v818
      %v883 = vsel %vm627, %v563, %v819
      %v884 = vsel %vm628, %v564, %v820
      %v885 = vsel %vm629, %v565, %v821
      %v886 = vsel %vm630, %v566, %v822
      %v887 = vsel %vm631, %v567, %v823
      %v888 = vsel %vm632, %v568, %v824
      %v889 = vsel %vm633, %v569, %v825
      %v890 = vsel %vm634, %v570, %v826
      %v891 = vsel %vm635, %v571, %v827
      %v892 = vsel %vm636, %v572, %v828
      %v893 = vsel %vm637, %v573, %v829
      %v894 = vsel %vm638, %v574, %v830
      %v895 = vsel %vm639, %v575, %v831
      %v896 = vsel %vm640, %v576, %v832
      %v897 = vsel %vm641, %v577, %v833
      %v898 = vsel %vm642, %v578, %v834
      %v899 = vsel %vm643, %v579, %v835
      %v900 = vsel %vm644, %v580, %v836
      %s901 = smul.u32 %s15, 256
      %v902 = vlaneseq
      %v903 = vshrl.u32 %v902, 7
      %v904 = vadd.s32 %v903, 8
      %v905 = vadd.s32 %v903, 16
      %v906 = vadd.s32 %v903, 24
      %v907 = vadd.s32 %v903, 32
      %v908 = vadd.s32 %v903, 40
      %v909 = vadd.s32 %v903, 48
      %v910 = vadd.s32 %v903, 56
      %v911 = vadd.s32 %v903, 64
      %v912 = vadd.s32 %v903, 72
      %v913 = vadd.s32 %v903, 80
      %v914 = vadd.s32 %v903, 88
      %v915 = vadd.s32 %v903, 96
      %v916 = vadd.s32 %v903, 104
      %v917 = vadd.s32 %v903, 112
      %v918 = vadd.s32 %v903, 120
      %v919 = vadd.s32 %v903, 128
      %v920 = vadd.s32 %v903, 136
      %v921 = vadd.s32 %v903, 144
      %v922 = vadd.s32 %v903, 152
      %v923 = vadd.s32 %v903, 160
      %v924 = vadd.s32 %v903, 168
      %v925 = vadd.s32 %v903, 176
      %v926 = vadd.s32 %v903, 184
      %v927 = vadd.s32 %v903, 192
      %v928 = vadd.s32 %v903, 200
      %v929 = vadd.s32 %v903, 208
      %v930 = vadd.s32 %v903, 216
      %v931 = vadd.s32 %v903, 224
      %v932 = vadd.s32 %v903, 232
      %v933 = vadd.s32 %v903, 240
      %v934 = vadd.s32 %v903, 248
      %v935 = vstv %s901
      %v936 = vadd.s32 %v935, %v903
      %v937 = vadd.s32 %v935, %v904
      %v938 = vadd.s32 %v935, %v905
      %v939 = vadd.s32 %v935, %v906
      %v940 = vadd.s32 %v935, %v907
      %v941 = vadd.s32 %v935, %v908
      %v942 = vadd.s32 %v935, %v909
      %v943 = vadd.s32 %v935, %v910
      %v944 = vadd.s32 %v935, %v911
      %v945 = vadd.s32 %v935, %v912
      %v946 = vadd.s32 %v935, %v913
      %v947 = vadd.s32 %v935, %v914
      %v948 = vadd.s32 %v935, %v915
      %v949 = vadd.s32 %v935, %v916
      %v950 = vadd.s32 %v935, %v917
      %v951 = vadd.s32 %v935, %v918
      %v952 = vadd.s32 %v935, %v919
      %v953 = vadd.s32 %v935, %v920
      %v954 = vadd.s32 %v935, %v921
      %v955 = vadd.s32 %v935, %v922
      %v956 = vadd.s32 %v935, %v923
      %v957 = vadd.s32 %v935, %v924
      %v958 = vadd.s32 %v935, %v925
      %v959 = vadd.s32 %v935, %v926
      %v960 = vadd.s32 %v935, %v927
      %v961 = vadd.s32 %v935, %v928
      %v962 = vadd.s32 %v935, %v929
      %v963 = vadd.s32 %v935, %v930
      %v964 = vadd.s32 %v935, %v931
      %v965 = vadd.s32 %v935, %v932
      %v966 = vadd.s32 %v935, %v933
      %v967 = vadd.s32 %v935, %v934
      %vm968 = vcmp.lt.s32.totalorder %v936, 500
      %vm969 = vcmp.lt.s32.totalorder %v937, 500
      %vm970 = vcmp.lt.s32.totalorder %v938, 500
      %vm971 = vcmp.lt.s32.totalorder %v939, 500
      %vm972 = vcmp.lt.s32.totalorder %v940, 500
      %vm973 = vcmp.lt.s32.totalorder %v941, 500
      %vm974 = vcmp.lt.s32.totalorder %v942, 500
      %vm975 = vcmp.lt.s32.totalorder %v943, 500
      %vm976 = vcmp.lt.s32.totalorder %v944, 500
      %vm977 = vcmp.lt.s32.totalorder %v945, 500
      %vm978 = vcmp.lt.s32.totalorder %v946, 500
      %vm979 = vcmp.lt.s32.totalorder %v947, 500
      %vm980 = vcmp.lt.s32.totalorder %v948, 500
      %vm981 = vcmp.lt.s32.totalorder %v949, 500
      %vm982 = vcmp.lt.s32.totalorder %v950, 500
      %vm983 = vcmp.lt.s32.totalorder %v951, 500
      %vm984 = vcmp.lt.s32.totalorder %v952, 500
      %vm985 = vcmp.lt.s32.totalorder %v953, 500
      %vm986 = vcmp.lt.s32.totalorder %v954, 500
      %vm987 = vcmp.lt.s32.totalorder %v955, 500
      %vm988 = vcmp.lt.s32.totalorder %v956, 500
      %vm989 = vcmp.lt.s32.totalorder %v957, 500
      %vm990 = vcmp.lt.s32.totalorder %v958, 500
      %vm991 = vcmp.lt.s32.totalorder %v959, 500
      %vm992 = vcmp.lt.s32.totalorder %v960, 500
      %vm993 = vcmp.lt.s32.totalorder %v961, 500
      %vm994 = vcmp.lt.s32.totalorder %v962, 500
      %vm995 = vcmp.lt.s32.totalorder %v963, 500
      %vm996 = vcmp.lt.s32.totalorder %v964, 500
      %vm997 = vcmp.lt.s32.totalorder %v965, 500
      %vm998 = vcmp.lt.s32.totalorder %v966, 500
      %vm999 = vcmp.lt.s32.totalorder %v967, 500
      %v1000 = vsel %vm968, %v837, 0.0
      %v1001 = vsel %vm968, %v838, 0.0
      %v1002 = vsel %vm969, %v839, 0.0
      %v1003 = vsel %vm969, %v840, 0.0
      %v1004 = vsel %vm970, %v841, 0.0
      %v1005 = vsel %vm970, %v842, 0.0
      %v1006 = vsel %vm971, %v843, 0.0
      %v1007 = vsel %vm971, %v844, 0.0
      %v1008 = vsel %vm972, %v845, 0.0
      %v1009 = vsel %vm972, %v846, 0.0
      %v1010 = vsel %vm973, %v847, 0.0
      %v1011 = vsel %vm973, %v848, 0.0
      %v1012 = vsel %vm974, %v849, 0.0
      %v1013 = vsel %vm974, %v850, 0.0
      %v1014 = vsel %vm975, %v851, 0.0
      %v1015 = vsel %vm975, %v852, 0.0
      %v1016 = vsel %vm976, %v853, 0.0
      %v1017 = vsel %vm976, %v854, 0.0
      %v1018 = vsel %vm977, %v855, 0.0
      %v1019 = vsel %vm977, %v856, 0.0
      %v1020 = vsel %vm978, %v857, 0.0
      %v1021 = vsel %vm978, %v858, 0.0
      %v1022 = vsel %vm979, %v859, 0.0
      %v1023 = vsel %vm979, %v860, 0.0
      %v1024 = vsel %vm980, %v861, 0.0
      %v1025 = vsel %vm980, %v862, 0.0
      %v1026 = vsel %vm981, %v863, 0.0
      %v1027 = vsel %vm981, %v864, 0.0
      %v1028 = vsel %vm982, %v865, 0.0
      %v1029 = vsel %vm982, %v866, 0.0
      %v1030 = vsel %vm983, %v867, 0.0
      %v1031 = vsel %vm983, %v868, 0.0
      %v1032 = vsel %vm984, %v869, 0.0
      %v1033 = vsel %vm984, %v870, 0.0
      %v1034 = vsel %vm985, %v871, 0.0
      %v1035 = vsel %vm985, %v872, 0.0
      %v1036 = vsel %vm986, %v873, 0.0
      %v1037 = vsel %vm986, %v874, 0.0
      %v1038 = vsel %vm987, %v875, 0.0
      %v1039 = vsel %vm987, %v876, 0.0
      %v1040 = vsel %vm988, %v877, 0.0
      %v1041 = vsel %vm988, %v878, 0.0
      %v1042 = vsel %vm989, %v879, 0.0
      %v1043 = vsel %vm989, %v880, 0.0
      %v1044 = vsel %vm990, %v881, 0.0
      %v1045 = vsel %vm990, %v882, 0.0
      %v1046 = vsel %vm991, %v883, 0.0
      %v1047 = vsel %vm991, %v884, 0.0
      %v1048 = vsel %vm992, %v885, 0.0
      %v1049 = vsel %vm992, %v886, 0.0
      %v1050 = vsel %vm993, %v887, 0.0
      %v1051 = vsel %vm993, %v888, 0.0
      %v1052 = vsel %vm994, %v889, 0.0
      %v1053 = vsel %vm994, %v890, 0.0
      %v1054 = vsel %vm995, %v891, 0.0
      %v1055 = vsel %vm995, %v892, 0.0
      %v1056 = vsel %vm996, %v893, 0.0
      %v1057 = vsel %vm996, %v894, 0.0
      %v1058 = vsel %vm997, %v895, 0.0
      %v1059 = vsel %vm997, %v896, 0.0
      %v1060 = vsel %vm998, %v897, 0.0
      %v1061 = vsel %vm998, %v898, 0.0
      %v1062 = vsel %vm999, %v899, 0.0
      %v1063 = vsel %vm999, %v900, 0.0
      %1064 = vst [vmem:[%s204] sm:$0xff] %v1000
      %1065 = vst [vmem:[%s204 + $0x8] sm:$0xff] %v1001
      %1066 = vst [vmem:[%s204 + $0x10] sm:$0xff] %v1002
      %1067 = vst [vmem:[%s204 + $0x18] sm:$0xff] %v1003
      %1068 = vst [vmem:[%s204 + $0x20] sm:$0xff] %v1004
      %1069 = vst [vmem:[%s204 + $0x28] sm:$0xff] %v1005
      %1070 = vst [vmem:[%s204 + $0x30] sm:$0xff] %v1006
      %1071 = vst [vmem:[%s204 + $0x38] sm:$0xff] %v1007
      %1072 = vst [vmem:[%s204 + $0x40] sm:$0xff] %v1008
      %1073 = vst [vmem:[%s204 + $0x48] sm:$0xff] %v1009
      %1074 = vst [vmem:[%s204 + $0x50] sm:$0xff] %v1010
      %1075 = vst [vmem:[%s204 + $0x58] sm:$0xff] %v1011
      %1076 = vst [vmem:[%s204 + $0x60] sm:$0xff] %v1012
      %1077 = vst [vmem:[%s204 + $0x68] sm:$0xff] %v1013
      %1078 = vst [vmem:[%s204 + $0x70] sm:$0xff] %v1014
      %1079 = vst [vmem:[%s204 + $0x78] sm:$0xff] %v1015
      %1080 = vst [vmem:[%s204 + $0x80] sm:$0xff] %v1016
      %1081 = vst [vmem:[%s204 + $0x88] sm:$0xff] %v1017
      %1082 = vst [vmem:[%s204 + $0x90] sm:$0xff] %v1018
      %1083 = vst [vmem:[%s204 + $0x98] sm:$0xff] %v1019
      %1084 = vst [vmem:[%s204 + $0xa0] sm:$0xff] %v1020
      %1085 = vst [vmem:[%s204 + $0xa8] sm:$0xff] %v1021
      %1086 = vst [vmem:[%s204 + $0xb0] sm:$0xff] %v1022
      %1087 = vst [vmem:[%s204 + $0xb8] sm:$0xff] %v1023
      %1088 = vst [vmem:[%s204 + $0xc0] sm:$0xff] %v1024
      %1089 = vst [vmem:[%s204 + $0xc8] sm:$0xff] %v1025
      %1090 = vst [vmem:[%s204 + $0xd0] sm:$0xff] %v1026
      %1091 = vst [vmem:[%s204 + $0xd8] sm:$0xff] %v1027
      %1092 = vst [vmem:[%s204 + $0xe0] sm:$0xff] %v1028
      %1093 = vst [vmem:[%s204 + $0xe8] sm:$0xff] %v1029
      %1094 = vst [vmem:[%s204 + $0xf0] sm:$0xff] %v1030
      %1095 = vst [vmem:[%s204 + $0xf8] sm:$0xff] %v1031
      %1096 = vst [vmem:[%s204 + $0x100] sm:$0xff] %v1032
      %1097 = vst [vmem:[%s204 + $0x108] sm:$0xff] %v1033
      %1098 = vst [vmem:[%s204 + $0x110] sm:$0xff] %v1034
      %1099 = vst [vmem:[%s204 + $0x118] sm:$0xff] %v1035
      %1100 = vst [vmem:[%s204 + $0x120] sm:$0xff] %v1036
      %1101 = vst [vmem:[%s204 + $0x128] sm:$0xff] %v1037
      %1102 = vst [vmem:[%s204 + $0x130] sm:$0xff] %v1038
      %1103 = vst [vmem:[%s204 + $0x138] sm:$0xff] %v1039
      %1104 = vst [vmem:[%s204 + $0x140] sm:$0xff] %v1040
      %1105 = vst [vmem:[%s204 + $0x148] sm:$0xff] %v1041
      %1106 = vst [vmem:[%s204 + $0x150] sm:$0xff] %v1042
      %1107 = vst [vmem:[%s204 + $0x158] sm:$0xff] %v1043
      %1108 = vst [vmem:[%s204 + $0x160] sm:$0xff] %v1044
      %1109 = vst [vmem:[%s204 + $0x168] sm:$0xff] %v1045
      %1110 = vst [vmem:[%s204 + $0x170] sm:$0xff] %v1046
      %1111 = vst [vmem:[%s204 + $0x178] sm:$0xff] %v1047
      %1112 = vst [vmem:[%s204 + $0x180] sm:$0xff] %v1048
      %1113 = vst [vmem:[%s204 + $0x188] sm:$0xff] %v1049
      %1114 = vst [vmem:[%s204 + $0x190] sm:$0xff] %v1050
      %1115 = vst [vmem:[%s204 + $0x198] sm:$0xff] %v1051
      %1116 = vst [vmem:[%s204 + $0x1a0] sm:$0xff] %v1052
      %1117 = vst [vmem:[%s204 + $0x1a8] sm:$0xff] %v1053
      %1118 = vst [vmem:[%s204 + $0x1b0] sm:$0xff] %v1054
      %1119 = vst [vmem:[%s204 + $0x1b8] sm:$0xff] %v1055
      %1120 = vst [vmem:[%s204 + $0x1c0] sm:$0xff] %v1056
      %1121 = vst [vmem:[%s204 + $0x1c8] sm:$0xff] %v1057
      %1122 = vst [vmem:[%s204 + $0x1d0] sm:$0xff] %v1058
      %1123 = vst [vmem:[%s204 + $0x1d8] sm:$0xff] %v1059
      %1124 = vst [vmem:[%s204 + $0x1e0] sm:$0xff] %v1060
      %1125 = vst [vmem:[%s204 + $0x1e8] sm:$0xff] %v1061
      %1126 = vst [vmem:[%s204 + $0x1f0] sm:$0xff] %v1062
      %1127 = vst [vmem:[%s204 + $0x1f8] sm:$0xff] %v1063
      %s1128 = smul.u32 32, %s15
      %p1129 = scmp.lt.s32.totalorder %s1128, 63
      %s1130 = scalar_select %p1129, %s1128, 63
      %s1131 = smul.addr %s1130, 2
      %s1132 = smul.addr %s1131, 8
      %s1133 = scalar_lea.vmem %s4, %s1132
      // Predicated region
      $region37: #{mlp_forward.7} parent=35 // pred_check
        %p1134 = pneg %p122
      $region38: #{mlp_forward.7} parent=35 // pred_check_branch
        %1136 = sbr.rel (%p1134) target = $region40
      $region39: #{mlp_forward.7} parent=35 // pred_region
        %s1137 = smul.u32 32, %s15
      $region40: #{mlp_forward.7} parent=35 // pred_fallthru
        _
    $region36: #{mlp_forward.7} parent=5 // pred_fallthru
      _
    %p1138 = scmp.le.s32.totalorder 2, %s10
    // Predicated region
    $region41: #{mlp_forward.7} parent=5 // pred_check
      %p1139 = pneg %p1138
    $region42: #{mlp_forward.7} parent=5 // pred_check_branch
      %1141 = sbr.rel (%p1139) target = $region44
    $region43: #{mlp_forward.7} parent=5 // pred_region
      %s1142 = ssub.s32 %s10, 2
      // Predicated region
      $region45: #{mlp_forward.7} parent=43 // pred_check
        %p1143 = pneg %p128
      $region46: #{mlp_forward.7} parent=43 // pred_check_branch
        %1145 = sbr.rel (%p1143) target = $region48
      $region47: #{mlp_forward.7} parent=43 // pred_region
        %s1146 = smul.u32 32, %s16
        %p1147 = scmp.lt.s32.totalorder %s1146, 63
        %s1148 = scalar_select %p1147, %s1146, 63
        %s1149 = smul.addr %s1148, 2
        %s1150 = smul.addr %s1149, 8
        %s1151 = scalar_lea.vmem %s4, %s1150
      $region48: #{mlp_forward.7} parent=43 // pred_fallthru
        _
    $region44: #{mlp_forward.7} parent=5 // pred_fallthru
      _
  $region6: #{mlp_forward.7} parent=0 // loop_footer
    %s14 = sadd.s32 1, %s10
  $region7: #{mlp_forward.7} parent=0 // loop_footer_branch
    %9 = sbr.rel target = $region3
  $region8: #{mlp_forward.7} parent=0 // loop_exit
    _

// kernel: mlp_forward.8
$region0: #{mlp_forward.8}
  #allocation0 [shape = 'u32[]', space=smem, size = 0x4, offset = 0x4, fixed_abs, tag = 'smem constant byte address 0x4 - core index']
  #allocation1 [shape = 'u32[144,128]{1,0:T(1,128)}', space=vmem, size = 0x12000, scoped, tag = 'internal scratch']
  %s0 = inlined_call_operand.vmem [shape: f32[512,256], index: 0, kind: input, shape index: {}]
  %s1 = inlined_call_operand.vmem [shape: bf16[256,256], index: 1, kind: input, shape index: {}]
  %s2 = inlined_call_operand.vmem [shape: f32[512,256], index: 2, kind: output, shape index: {0}]
  %s3 = inlined_call_operand.vmem [shape: f32[8,256], index: 3, kind: output, shape index: {1}]
  %4 = xla_tuple %s2, %s3
  %s5 = sld [smem:[#allocation0]]
  $region53: #{mlp_forward.8} parent=0
    _
  %s7 = ssub.s32 1, %s5
  %s8 = scalar_select 0, %s7, %s5
  loop: start=0, step=1, limit=4
  $region2: #{mlp_forward.8} parent=0 // loop_pre_header
    _
  $region3: #{mlp_forward.8} parent=0 // loop_header
    %s10 = sphi 0, %s14
    %p11 = scmp.ge.s32.totalorder %s10, 4
    %s20 = sphi 0, %s22
    %s23 = sphi 0, %s20
    %s24 = sphi 0, %s23
    %s40 = sphi 0, %s24
    %s44 = sphi 0, %s44
    %s46 = sphi 0, %s44
    %s47 = sphi 0, %s46
    %s61 = sphi 0, %s47
    %s67 = sphi 0, %s69
    %s70 = sphi 0, %s67
    %s71 = sphi 0, %s70
    %s87 = sphi 0, %s71
    %s91 = sphi 0, %s91
    %s93 = sphi 0, %s91
    %s94 = sphi 0, %s93
    %s108 = sphi 0, %s94
  $region4: #{mlp_forward.8} parent=0 // loop_header_branch
    %13 = sbr.rel (%p11) target = $region8
  $region5: #{mlp_forward.8} parent=0 // loop_body
    %s15 = ssub.s32 %s10, 1
    %s16 = ssub.s32 %s10, 2
    %s17 = sadd.s32 %s10, 1
    %s18 = ssub.s32 %s10, %s17
    %p19 = scmp.eq.s32.totalorder %s18, 0
    %s21 = sadd.s32 %s20, 1
    %s22 = scalar_select %p19, %s20, %s21
    %p25 = pneg %p19
    %p26 = scmp.eq.s32.totalorder %s10, 1
    %p27 = por %p25, %p26
    %p28 = scmp.ne.s32.totalorder %s20, %s23
    %p29 = scmp.eq.s32.totalorder %s10, 0
    %p30 = por %p28, %p29
    %p31 = scmp.ne.s32.totalorder %s20, %s23
    %p32 = scmp.eq.s32.totalorder %s15, 1
    %p33 = por %p31, %p32
    %p34 = scmp.ne.s32.totalorder %s23, %s24
    %p35 = scmp.eq.s32.totalorder %s15, 0
    %p36 = por %p34, %p35
    %p37 = scmp.ne.s32.totalorder %s23, %s24
    %p38 = scmp.eq.s32.totalorder %s16, 1
    %p39 = por %p37, %p38
    %p41 = scmp.ne.s32.totalorder %s24, %s40
    %p42 = scmp.eq.s32.totalorder %s16, 0
    %p43 = por %p41, %p42
    %s45 = sadd.s32 %s44, 1
    %p48 = scmp.eq.s32.totalorder %s10, 1
    %p49 = scmp.ne.s32.totalorder %s44, %s46
    %p50 = scmp.eq.s32.totalorder %s10, 0
    %p51 = por %p49, %p50
    %p52 = scmp.ne.s32.totalorder %s44, %s46
    %p53 = scmp.eq.s32.totalorder %s15, 1
    %p54 = por %p52, %p53
    %p55 = scmp.ne.s32.totalorder %s46, %s47
    %p56 = scmp.eq.s32.totalorder %s15, 0
    %p57 = por %p55, %p56
    %p58 = scmp.ne.s32.totalorder %s46, %s47
    %p59 = scmp.eq.s32.totalorder %s16, 1
    %p60 = por %p58, %p59
    %p62 = scmp.ne.s32.totalorder %s47, %s61
    %p63 = scmp.eq.s32.totalorder %s16, 0
    %p64 = por %p62, %p63
    %s65 = ssub.s32 %s10, %s17
    %p66 = scmp.eq.s32.totalorder %s65, 0
    %s68 = sadd.s32 %s67, 1
    %s69 = scalar_select %p66, %s67, %s68
    %p72 = pneg %p66
    %p73 = scmp.eq.s32.totalorder %s10, 1
    %p74 = por %p72, %p73
    %p75 = scmp.ne.s32.totalorder %s67, %s70
    %p76 = scmp.eq.s32.totalorder %s10, 0
    %p77 = por %p75, %p76
    %p78 = scmp.ne.s32.totalorder %s67, %s70
    %p79 = scmp.eq.s32.totalorder %s15, 1
    %p80 = por %p78, %p79
    %p81 = scmp.ne.s32.totalorder %s70, %s71
    %p82 = scmp.eq.s32.totalorder %s15, 0
    %p83 = por %p81, %p82
    %p84 = scmp.ne.s32.totalorder %s70, %s71
    %p85 = scmp.eq.s32.totalorder %s16, 1
    %p86 = por %p84, %p85
    %p88 = scmp.ne.s32.totalorder %s71, %s87
    %p89 = scmp.eq.s32.totalorder %s16, 0
    %p90 = por %p88, %p89
    %s92 = sadd.s32 %s91, 1
    %p95 = scmp.eq.s32.totalorder %s10, 1
    %p96 = scmp.ne.s32.totalorder %s91, %s93
    %p97 = scmp.eq.s32.totalorder %s10, 0
    %p98 = por %p96, %p97
    %p99 = scmp.ne.s32.totalorder %s91, %s93
    %p100 = scmp.eq.s32.totalorder %s15, 1
    %p101 = por %p99, %p100
    %p102 = scmp.ne.s32.totalorder %s93, %s94
    %p103 = scmp.eq.s32.totalorder %s15, 0
    %p104 = por %p102, %p103
    %p105 = scmp.ne.s32.totalorder %s93, %s94
    %p106 = scmp.eq.s32.totalorder %s16, 1
    %p107 = por %p105, %p106
    %p109 = scmp.ne.s32.totalorder %s94, %s108
    %p110 = scmp.eq.s32.totalorder %s16, 0
    %p111 = por %p109, %p110
    %p112 = scmp.le.s32.totalorder 1, %s10
    %p113 = scmp.lt.s32.totalorder %s10, 3
    %p114 = pnand %p112, %p113
    %p115 = pneg %p114
    // Predicated region
    $region9: #{mlp_forward.8} parent=5 // pred_check
      _
    $region10: #{mlp_forward.8} parent=5 // pred_check_branch
      %117 = sbr.rel (%p114) target = $region12
    $region11: #{mlp_forward.8} parent=5 // pred_region
      %s118 = ssub.s32 %s10, 1
      // Predicated region
      $region13: #{mlp_forward.8} parent=11 // pred_check
        %p119 = pneg %p57
      $region14: #{mlp_forward.8} parent=11 // pred_check_branch
        %121 = sbr.rel (%p119) target = $region16
      $region15: #{mlp_forward.8} parent=11 // pred_region
        _
      $region16: #{mlp_forward.8} parent=11 // pred_fallthru
        _
    $region12: #{mlp_forward.8} parent=5 // pred_fallthru
      _
    %p122 = scmp.lt.s32.totalorder %s10, 2
    // Predicated region
    $region17: #{mlp_forward.8} parent=5 // pred_check
      %p123 = pneg %p122
    $region18: #{mlp_forward.8} parent=5 // pred_check_branch
      %125 = sbr.rel (%p123) target = $region20
    $region19: #{mlp_forward.8} parent=5 // pred_region
      // Predicated region
      $region21: #{mlp_forward.8} parent=19 // pred_check
        %p126 = pneg %p30
      $region22: #{mlp_forward.8} parent=19 // pred_check_branch
        %128 = sbr.rel (%p126) target = $region24
      $region23: #{mlp_forward.8} parent=19 // pred_region
        %s129 = smul.u32 32, %s10
        %p130 = scmp.lt.s32.totalorder %s129, 63
        %s131 = scalar_select %p130, %s129, 63
        %s132 = smul.addr %s131, 2
        %s133 = smul.addr %s132, 8
        %s134 = scalar_lea.vmem %s0, %s133
        %s135 = smul.u32 32, %s10
      $region24: #{mlp_forward.8} parent=19 // pred_fallthru
        _
    $region20: #{mlp_forward.8} parent=5 // pred_fallthru
      _
    %p136 = scmp.le.s32.totalorder 1, %s10
    %p137 = scmp.lt.s32.totalorder %s10, 3
    %p138 = pnand %p136, %p137
    %p139 = pneg %p138
    // Predicated region
    $region25: #{mlp_forward.8} parent=5 // pred_check
      _
    $region26: #{mlp_forward.8} parent=5 // pred_check_branch
      %141 = sbr.rel (%p138) target = $region28
    $region27: #{mlp_forward.8} parent=5 // pred_region
      %s142 = ssub.s32 %s10, 1
      %s143 = smul.u32 32, %s15
      %p144 = scmp.lt.s32.totalorder %s143, 63
      %s145 = scalar_select %p144, %s143, 63
      %s146 = smul.addr %s145, 2
      %s147 = smul.addr %s146, 8
      %s148 = scalar_lea.vmem %s0, %s147
      %p149 = pneg %p36
      %p150 = pneg %p33
      %p151 = pneg %p57
      %p152 = pneg %p54
      %p153 = pneg %p83
      %p154 = pneg %p80
      %s155 = smul.u32 32, %s15
      %p156 = scmp.lt.s32.totalorder %s155, 63
      %s157 = scalar_select %p156, %s155, 63
      %s158 = smul.addr %s157, 2
      %s159 = smul.addr %s158, 8
      %s160 = scalar_lea.vmem %s2, %s159
      %p161 = pneg %p104
      %p162 = pneg %p101
      %s163 = smul.u32 32, %s15
      %p164 = scmp.lt.s32.totalorder %s163, 63
      %s165 = scalar_select %p164, %s163, 63
      %s166 = smul.addr %s165, 2
      %s167 = smul.addr %s166, 8
      %s168 = scalar_lea.vmem %s0, %s167
      %s169 = smul.u32 32, %s15
      %s170 = smul.u32 32, %s15
      %p171 = scmp.lt.s32.totalorder %s170, 63
      %s172 = scalar_select %p171, %s170, 63
      %s173 = smul.addr %s172, 2
      %s174 = smul.addr %s173, 8
      %s175 = scalar_lea.vmem %s2, %s174
      %s176 = smul.u32 32, %s15
      %p177 = scmp.eq.s32.totalorder %s15, 0
      // Predicated region
      $region29: #{mlp_forward.8} parent=27 // pred_check
        %p178 = pneg %p177
      $region30: #{mlp_forward.8} parent=27 // pred_check_branch
        %180 = sbr.rel (%p178) target = $region32
      $region31: #{mlp_forward.8} parent=27 // pred_region
        %181 = vst [vmem:[%s3] sm:$0xff] 0.0
        %182 = vst [vmem:[%s3 + $0x8] sm:$0xff] 0.0
      $region32: #{mlp_forward.8} parent=27 // pred_fallthru
        _
      %v183 = vld [vmem:[%s168] sm:$0xff]
      %v184 = vld [vmem:[%s168 + $0x8] sm:$0xff]
      %v185 = vld [vmem:[%s168 + $0x10] sm:$0xff]
      %v186 = vld [vmem:[%s168 + $0x18] sm:$0xff]
      %v187 = vld [vmem:[%s168 + $0x20] sm:$0xff]
      %v188 = vld [vmem:[%s168 + $0x28] sm:$0xff]
      %v189 = vld [vmem:[%s168 + $0x30] sm:$0xff]
      %v190 = vld [vmem:[%s168 + $0x38] sm:$0xff]
      %v191 = vld [vmem:[%s168 + $0x40] sm:$0xff]
      %v192 = vld [vmem:[%s168 + $0x48] sm:$0xff]
      %v193 = vld [vmem:[%s168 + $0x50] sm:$0xff]
      %v194 = vld [vmem:[%s168 + $0x58] sm:$0xff]
      %v195 = vld [vmem:[%s168 + $0x60] sm:$0xff]
      %v196 = vld [vmem:[%s168 + $0x68] sm:$0xff]
      %v197 = vld [vmem:[%s168 + $0x70] sm:$0xff]
      %v198 = vld [vmem:[%s168 + $0x78] sm:$0xff]
      %v199 = vld [vmem:[%s168 + $0x80] sm:$0xff]
      %v200 = vld [vmem:[%s168 + $0x88] sm:$0xff]
      %v201 = vld [vmem:[%s168 + $0x90] sm:$0xff]
      %v202 = vld [vmem:[%s168 + $0x98] sm:$0xff]
      %v203 = vld [vmem:[%s168 + $0xa0] sm:$0xff]
      %v204 = vld [vmem:[%s168 + $0xa8] sm:$0xff]
      %v205 = vld [vmem:[%s168 + $0xb0] sm:$0xff]
      %v206 = vld [vmem:[%s168 + $0xb8] sm:$0xff]
      %v207 = vld [vmem:[%s168 + $0xc0] sm:$0xff]
      %v208 = vld [vmem:[%s168 + $0xc8] sm:$0xff]
      %v209 = vld [vmem:[%s168 + $0xd0] sm:$0xff]
      %v210 = vld [vmem:[%s168 + $0xd8] sm:$0xff]
      %v211 = vld [vmem:[%s168 + $0xe0] sm:$0xff]
      %v212 = vld [vmem:[%s168 + $0xe8] sm:$0xff]
      %v213 = vld [vmem:[%s168 + $0xf0] sm:$0xff]
      %v214 = vld [vmem:[%s168 + $0xf8] sm:$0xff]
      %v215 = vld [vmem:[%s168 + $0x100] sm:$0xff]
      %v216 = vld [vmem:[%s168 + $0x108] sm:$0xff]
      %v217 = vld [vmem:[%s168 + $0x110] sm:$0xff]
      %v218 = vld [vmem:[%s168 + $0x118] sm:$0xff]
      %v219 = vld [vmem:[%s168 + $0x120] sm:$0xff]
      %v220 = vld [vmem:[%s168 + $0x128] sm:$0xff]
      %v221 = vld [vmem:[%s168 + $0x130] sm:$0xff]
      %v222 = vld [vmem:[%s168 + $0x138] sm:$0xff]
      %v223 = vld [vmem:[%s168 + $0x140] sm:$0xff]
      %v224 = vld [vmem:[%s168 + $0x148] sm:$0xff]
      %v225 = vld [vmem:[%s168 + $0x150] sm:$0xff]
      %v226 = vld [vmem:[%s168 + $0x158] sm:$0xff]
      %v227 = vld [vmem:[%s168 + $0x160] sm:$0xff]
      %v228 = vld [vmem:[%s168 + $0x168] sm:$0xff]
      %v229 = vld [vmem:[%s168 + $0x170] sm:$0xff]
      %v230 = vld [vmem:[%s168 + $0x178] sm:$0xff]
      %v231 = vld [vmem:[%s168 + $0x180] sm:$0xff]
      %v232 = vld [vmem:[%s168 + $0x188] sm:$0xff]
      %v233 = vld [vmem:[%s168 + $0x190] sm:$0xff]
      %v234 = vld [vmem:[%s168 + $0x198] sm:$0xff]
      %v235 = vld [vmem:[%s168 + $0x1a0] sm:$0xff]
      %v236 = vld [vmem:[%s168 + $0x1a8] sm:$0xff]
      %v237 = vld [vmem:[%s168 + $0x1b0] sm:$0xff]
      %v238 = vld [vmem:[%s168 + $0x1b8] sm:$0xff]
      %v239 = vld [vmem:[%s168 + $0x1c0] sm:$0xff]
      %v240 = vld [vmem:[%s168 + $0x1c8] sm:$0xff]
      %v241 = vld [vmem:[%s168 + $0x1d0] sm:$0xff]
      %v242 = vld [vmem:[%s168 + $0x1d8] sm:$0xff]
      %v243 = vld [vmem:[%s168 + $0x1e0] sm:$0xff]
      %v244 = vld [vmem:[%s168 + $0x1e8] sm:$0xff]
      %v245 = vld [vmem:[%s168 + $0x1f0] sm:$0xff]
      %v246 = vld [vmem:[%s168 + $0x1f8] sm:$0xff]
      %v247 = vpack.c.bf16 %v185, %v183
      %v248 = vpack.c.bf16 %v186, %v184
      %v249 = vpack.c.bf16 %v189, %v187
      %v250 = vpack.c.bf16 %v190, %v188
      %v251 = vpack.c.bf16 %v193, %v191
      %v252 = vpack.c.bf16 %v194, %v192
      %v253 = vpack.c.bf16 %v197, %v195
      %v254 = vpack.c.bf16 %v198, %v196
      %v255 = vpack.c.bf16 %v201, %v199
      %v256 = vpack.c.bf16 %v202, %v200
      %v257 = vpack.c.bf16 %v205, %v203
      %v258 = vpack.c.bf16 %v206, %v204
      %v259 = vpack.c.bf16 %v209, %v207
      %v260 = vpack.c.bf16 %v210, %v208
      %v261 = vpack.c.bf16 %v213, %v211
      %v262 = vpack.c.bf16 %v214, %v212
      %v263 = vpack.c.bf16 %v217, %v215
      %v264 = vpack.c.bf16 %v218, %v216
      %v265 = vpack.c.bf16 %v221, %v219
      %v266 = vpack.c.bf16 %v222, %v220
      %v267 = vpack.c.bf16 %v225, %v223
      %v268 = vpack.c.bf16 %v226, %v224
      %v269 = vpack.c.bf16 %v229, %v227
      %v270 = vpack.c.bf16 %v230, %v228
      %v271 = vpack.c.bf16 %v233, %v231
      %v272 = vpack.c.bf16 %v234, %v232
      %v273 = vpack.c.bf16 %v237, %v235
      %v274 = vpack.c.bf16 %v238, %v236
      %v275 = vpack.c.bf16 %v241, %v239
      %v276 = vpack.c.bf16 %v242, %v240
      %v277 = vpack.c.bf16 %v245, %v243
      %v278 = vpack.c.bf16 %v246, %v244
      %v279 = vld [vmem:[%s1] sm:$0xff]
      %v280 = vld [vmem:[%s1 + $0x8] sm:$0xff]
      %v281 = vld [vmem:[%s1 + $0x10] sm:$0xff]
      %v282 = vld [vmem:[%s1 + $0x18] sm:$0xff]
      %v283 = vld [vmem:[%s1 + $0x20] sm:$0xff]
      %v284 = vld [vmem:[%s1 + $0x28] sm:$0xff]
      %v285 = vld [vmem:[%s1 + $0x30] sm:$0xff]
      %v286 = vld [vmem:[%s1 + $0x38] sm:$0xff]
      %v287 = vld [vmem:[%s1 + $0x40] sm:$0xff]
      %v288 = vld [vmem:[%s1 + $0x48] sm:$0xff]
      %v289 = vld [vmem:[%s1 + $0x50] sm:$0xff]
      %v290 = vld [vmem:[%s1 + $0x58] sm:$0xff]
      %v291 = vld [vmem:[%s1 + $0x60] sm:$0xff]
      %v292 = vld [vmem:[%s1 + $0x68] sm:$0xff]
      %v293 = vld [vmem:[%s1 + $0x70] sm:$0xff]
      %v294 = vld [vmem:[%s1 + $0x78] sm:$0xff]
      %v295 = vld [vmem:[%s1 + $0x80] sm:$0xff]
      %v296 = vld [vmem:[%s1 + $0x88] sm:$0xff]
      %v297 = vld [vmem:[%s1 + $0x90] sm:$0xff]
      %v298 = vld [vmem:[%s1 + $0x98] sm:$0xff]
      %v299 = vld [vmem:[%s1 + $0xa0] sm:$0xff]
      %v300 = vld [vmem:[%s1 + $0xa8] sm:$0xff]
      %v301 = vld [vmem:[%s1 + $0xb0] sm:$0xff]
      %v302 = vld [vmem:[%s1 + $0xb8] sm:$0xff]
      %v303 = vld [vmem:[%s1 + $0xc0] sm:$0xff]
      %v304 = vld [vmem:[%s1 + $0xc8] sm:$0xff]
      %v305 = vld [vmem:[%s1 + $0xd0] sm:$0xff]
      %v306 = vld [vmem:[%s1 + $0xd8] sm:$0xff]
      %v307 = vld [vmem:[%s1 + $0xe0] sm:$0xff]
      %v308 = vld [vmem:[%s1 + $0xe8] sm:$0xff]
      %v309 = vld [vmem:[%s1 + $0xf0] sm:$0xff]
      %v310 = vld [vmem:[%s1 + $0xf8] sm:$0xff]
      %v343 = vunpack.c.l.b16 %v279
      %v344 = vunpack.c.h.b16 %v279
      %v345 = vunpack.c.l.b16 %v280
      %v346 = vunpack.c.h.b16 %v280
      %v347 = vunpack.c.l.b16 %v281
      %v348 = vunpack.c.h.b16 %v281
      %v349 = vunpack.c.l.b16 %v282
      %v350 = vunpack.c.h.b16 %v282
      %v351 = vunpack.c.l.b16 %v283
      %v352 = vunpack.c.h.b16 %v283
      %v353 = vunpack.c.l.b16 %v284
      %v354 = vunpack.c.h.b16 %v284
      %v355 = vunpack.c.l.b16 %v285
      %v356 = vunpack.c.h.b16 %v285
      %v357 = vunpack.c.l.b16 %v286
      %v358 = vunpack.c.h.b16 %v286
      %v359 = vunpack.c.l.b16 %v287
      %v360 = vunpack.c.h.b16 %v287
      %v361 = vunpack.c.l.b16 %v288
      %v362 = vunpack.c.h.b16 %v288
      %v363 = vunpack.c.l.b16 %v289
      %v364 = vunpack.c.h.b16 %v289
      %v365 = vunpack.c.l.b16 %v290
      %v366 = vunpack.c.h.b16 %v290
      %v367 = vunpack.c.l.b16 %v291
      %v368 = vunpack.c.h.b16 %v291
      %v369 = vunpack.c.l.b16 %v292
      %v370 = vunpack.c.h.b16 %v292
      %v371 = vunpack.c.l.b16 %v293
      %v372 = vunpack.c.h.b16 %v293
      %v373 = vunpack.c.l.b16 %v294
      %v374 = vunpack.c.h.b16 %v294
      %v375 = vunpack.c.l.b16 %v295
      %v376 = vunpack.c.h.b16 %v295
      %v377 = vunpack.c.l.b16 %v296
      %v378 = vunpack.c.h.b16 %v296
      %v379 = vunpack.c.l.b16 %v297
      %v380 = vunpack.c.h.b16 %v297
      %v381 = vunpack.c.l.b16 %v298
      %v382 = vunpack.c.h.b16 %v298
      %v383 = vunpack.c.l.b16 %v299
      %v384 = vunpack.c.h.b16 %v299
      %v385 = vunpack.c.l.b16 %v300
      %v386 = vunpack.c.h.b16 %v300
      %v387 = vunpack.c.l.b16 %v301
      %v388 = vunpack.c.h.b16 %v301
      %v389 = vunpack.c.l.b16 %v302
      %v390 = vunpack.c.h.b16 %v302
      %v391 = vunpack.c.l.b16 %v303
      %v392 = vunpack.c.h.b16 %v303
      %v393 = vunpack.c.l.b16 %v304
      %v394 = vunpack.c.h.b16 %v304
      %v395 = vunpack.c.l.b16 %v305
      %v396 = vunpack.c.h.b16 %v305
      %v397 = vunpack.c.l.b16 %v306
      %v398 = vunpack.c.h.b16 %v306
      %v399 = vunpack.c.l.b16 %v307
      %v400 = vunpack.c.h.b16 %v307
      %v401 = vunpack.c.l.b16 %v308
      %v402 = vunpack.c.h.b16 %v308
      %v403 = vunpack.c.l.b16 %v309
      %v404 = vunpack.c.h.b16 %v309
      %v405 = vunpack.c.l.b16 %v310
      %v406 = vunpack.c.h.b16 %v310
      %v407 = vpack.c.b16 %v345, %v343
      %v408 = vpack.c.b16 %v346, %v344
      %v409 = vpack.c.b16 %v349, %v347
      %v410 = vpack.c.b16 %v350, %v348
      %v411 = vpack.c.b16 %v353, %v351
      %v412 = vpack.c.b16 %v354, %v352
      %v413 = vpack.c.b16 %v357, %v355
      %v414 = vpack.c.b16 %v358, %v356
      %v415 = vpack.c.b16 %v361, %v359
      %v416 = vpack.c.b16 %v362, %v360
      %v417 = vpack.c.b16 %v365, %v363
      %v418 = vpack.c.b16 %v366, %v364
      %v419 = vpack.c.b16 %v369, %v367
      %v420 = vpack.c.b16 %v370, %v368
      %v421 = vpack.c.b16 %v373, %v371
      %v422 = vpack.c.b16 %v374, %v372
      %v423 = vpack.c.b16 %v377, %v375
      %v424 = vpack.c.b16 %v378, %v376
      %v425 = vpack.c.b16 %v381, %v379
      %v426 = vpack.c.b16 %v382, %v380
      %v427 = vpack.c.b16 %v385, %v383
      %v428 = vpack.c.b16 %v386, %v384
      %v429 = vpack.c.b16 %v389, %v387
      %v430 = vpack.c.b16 %v390, %v388
      %v431 = vpack.c.b16 %v393, %v391
      %v432 = vpack.c.b16 %v394, %v392
      %v433 = vpack.c.b16 %v397, %v395
      %v434 = vpack.c.b16 %v398, %v396
      %v435 = vpack.c.b16 %v401, %v399
      %v436 = vpack.c.b16 %v402, %v400
      %v437 = vpack.c.b16 %v405, %v403
      %v438 = vpack.c.b16 %v406, %v404
      %471 = vmatprep.subr.bf16.mxu0 %v408
      %472 = vmatpush1.bf16.msra.mxu0 %v407
      %473 = vmatprep.subr.bf16.mxu0 %v410
      %474 = vmatpush1.bf16.msra.mxu0 %v409
      %475 = vmatprep.subr.bf16.mxu0 %v412
      %476 = vmatpush1.bf16.msra.mxu0 %v411
      %477 = vmatprep.subr.bf16.mxu0 %v414
      %478 = vmatpush1.bf16.msra.mxu0 %v413
      %479 = vmatprep.subr.bf16.mxu0 %v416
      %480 = vmatpush1.bf16.msra.mxu0 %v415
      %481 = vmatprep.subr.bf16.mxu0 %v418
      %482 = vmatpush1.bf16.msra.mxu0 %v417
      %483 = vmatprep.subr.bf16.mxu0 %v420
      %484 = vmatpush1.bf16.msra.mxu0 %v419
      %485 = vmatprep.subr.bf16.mxu0 %v422
      %486 = vmatpush1.bf16.msra.mxu0 %v421
      %487 = vmatprep.subr.bf16.mxu0 %v424
      %488 = vmatpush1.bf16.msra.mxu0 %v423
      %489 = vmatprep.subr.bf16.mxu0 %v426
      %490 = vmatpush1.bf16.msra.mxu0 %v425
      %491 = vmatprep.subr.bf16.mxu0 %v428
      %492 = vmatpush1.bf16.msra.mxu0 %v427
      %493 = vmatprep.subr.bf16.mxu0 %v430
      %494 = vmatpush1.bf16.msra.mxu0 %v429
      %495 = vmatprep.subr.bf16.mxu0 %v432
      %496 = vmatpush1.bf16.msra.mxu0 %v431
      %497 = vmatprep.subr.bf16.mxu0 %v434
      %498 = vmatpush1.bf16.msra.mxu0 %v433
      %499 = vmatprep.subr.bf16.mxu0 %v436
      %500 = vmatpush1.bf16.msra.mxu0 %v435
      %501 = vmatprep.subr.bf16.mxu0 %v438
      %502 = vmatpush1.bf16.msra.mxu0 %v437
      %503 = vmatprep.mubr.bf16.mxu0 %v248
      %504 = vmatmul.mubr.bf16.gmra.mrb[0].mxu0 %v247
      %v505 = vpop.f32.mrb[0].mxu0
      %v506 = vadd.f32 0.0, %v505
      %v507 = vpop.f32.mrb[0].mxu0
      %v508 = vadd.f32 0.0, %v507
      %v509 = vpop.f32.mrb[0].mxu0
      %v510 = vadd.f32 0.0, %v509
      %v511 = vpop.f32.mrb[0].mxu0
      %v512 = vadd.f32 0.0, %v511
      %513 = vmatprep.mubr.bf16.mxu0 %v250
      %514 = vmatmul.mubr.bf16.gmra.mrb[0].mxu0 %v249
      %v515 = vpop.f32.mrb[0].mxu0
      %v516 = vadd.f32 0.0, %v515
      %v517 = vpop.f32.mrb[0].mxu0
      %v518 = vadd.f32 0.0, %v517
      %v519 = vpop.f32.mrb[0].mxu0
      %v520 = vadd.f32 0.0, %v519
      %v521 = vpop.f32.mrb[0].mxu0
      %v522 = vadd.f32 0.0, %v521
      %523 = vmatprep.mubr.bf16.mxu0 %v252
      %524 = vmatmul.mubr.bf16.gmra.mrb[0].mxu0 %v251
      %v525 = vpop.f32.mrb[0].mxu0
      %v526 = vadd.f32 0.0, %v525
      %v527 = vpop.f32.mrb[0].mxu0
      %v528 = vadd.f32 0.0, %v527
      %v529 = vpop.f32.mrb[0].mxu0
      %v530 = vadd.f32 0.0, %v529
      %v531 = vpop.f32.mrb[0].mxu0
      %v532 = vadd.f32 0.0, %v531
      %533 = vmatprep.mubr.bf16.mxu0 %v254
      %534 = vmatmul.mubr.bf16.gmra.mrb[0].mxu0 %v253
      %v535 = vpop.f32.mrb[0].mxu0
      %v536 = vadd.f32 0.0, %v535
      %v537 = vpop.f32.mrb[0].mxu0
      %v538 = vadd.f32 0.0, %v537
      %v539 = vpop.f32.mrb[0].mxu0
      %v540 = vadd.f32 0.0, %v539
      %v541 = vpop.f32.mrb[0].mxu0
      %v542 = vadd.f32 0.0, %v541
      %543 = vmatprep.mubr.bf16.mxu0 %v256
      %544 = vmatmul.mubr.bf16.gmra.mrb[0].mxu0 %v255
      %v545 = vpop.f32.mrb[0].mxu0
      %v546 = vadd.f32 0.0, %v545
      %v547 = vpop.f32.mrb[0].mxu0
      %v548 = vadd.f32 0.0, %v547
      %v549 = vpop.f32.mrb[0].mxu0
      %v550 = vadd.f32 0.0, %v549
      %v551 = vpop.f32.mrb[0].mxu0
      %v552 = vadd.f32 0.0, %v551
      %553 = vmatprep.mubr.bf16.mxu0 %v258
      %554 = vmatmul.mubr.bf16.gmra.mrb[0].mxu0 %v257
      %v555 = vpop.f32.mrb[0].mxu0
      %v556 = vadd.f32 0.0, %v555
      %v557 = vpop.f32.mrb[0].mxu0
      %v558 = vadd.f32 0.0, %v557
      %v559 = vpop.f32.mrb[0].mxu0
      %v560 = vadd.f32 0.0, %v559
      %v561 = vpop.f32.mrb[0].mxu0
      %v562 = vadd.f32 0.0, %v561
      %563 = vmatprep.mubr.bf16.mxu0 %v260
      %564 = vmatmul.mubr.bf16.gmra.mrb[0].mxu0 %v259
      %v565 = vpop.f32.mrb[0].mxu0
      %v566 = vadd.f32 0.0, %v565
      %v567 = vpop.f32.mrb[0].mxu0
      %v568 = vadd.f32 0.0, %v567
      %v569 = vpop.f32.mrb[0].mxu0
      %v570 = vadd.f32 0.0, %v569
      %v571 = vpop.f32.mrb[0].mxu0
      %v572 = vadd.f32 0.0, %v571
      %573 = vmatprep.mubr.bf16.mxu0 %v262
      %574 = vmatmul.mubr.bf16.gmra.mrb[0].mxu0 %v261
      %v575 = vpop.f32.mrb[0].mxu0
      %v576 = vadd.f32 0.0, %v575
      %v577 = vpop.f32.mrb[0].mxu0
      %v578 = vadd.f32 0.0, %v577
      %v579 = vpop.f32.mrb[0].mxu0
      %v580 = vadd.f32 0.0, %v579
      %v581 = vpop.f32.mrb[0].mxu0
      %v582 = vadd.f32 0.0, %v581
      %583 = vmatprep.mubr.bf16.mxu0 %v264
      %584 = vmatmul.mubr.bf16.gmra.mrb[0].mxu0 %v263
      %v585 = vpop.f32.mrb[0].mxu0
      %v586 = vadd.f32 0.0, %v585
      %v587 = vpop.f32.mrb[0].mxu0
      %v588 = vadd.f32 0.0, %v587
      %v589 = vpop.f32.mrb[0].mxu0
      %v590 = vadd.f32 0.0, %v589
      %v591 = vpop.f32.mrb[0].mxu0
      %v592 = vadd.f32 0.0, %v591
      %593 = vmatprep.mubr.bf16.mxu0 %v266
      %594 = vmatmul.mubr.bf16.gmra.mrb[0].mxu0 %v265
      %v595 = vpop.f32.mrb[0].mxu0
      %v596 = vadd.f32 0.0, %v595
      %v597 = vpop.f32.mrb[0].mxu0
      %v598 = vadd.f32 0.0, %v597
      %v599 = vpop.f32.mrb[0].mxu0
      %v600 = vadd.f32 0.0, %v599
      %v601 = vpop.f32.mrb[0].mxu0
      %v602 = vadd.f32 0.0, %v601
      %603 = vmatprep.mubr.bf16.mxu0 %v268
      %604 = vmatmul.mubr.bf16.gmra.mrb[0].mxu0 %v267
      %v605 = vpop.f32.mrb[0].mxu0
      %v606 = vadd.f32 0.0, %v605
      %v607 = vpop.f32.mrb[0].mxu0
      %v608 = vadd.f32 0.0, %v607
      %v609 = vpop.f32.mrb[0].mxu0
      %v610 = vadd.f32 0.0, %v609
      %v611 = vpop.f32.mrb[0].mxu0
      %v612 = vadd.f32 0.0, %v611
      %613 = vmatprep.mubr.bf16.mxu0 %v270
      %614 = vmatmul.mubr.bf16.gmra.mrb[0].mxu0 %v269
      %v615 = vpop.f32.mrb[0].mxu0
      %v616 = vadd.f32 0.0, %v615
      %v617 = vpop.f32.mrb[0].mxu0
      %v618 = vadd.f32 0.0, %v617
      %v619 = vpop.f32.mrb[0].mxu0
      %v620 = vadd.f32 0.0, %v619
      %v621 = vpop.f32.mrb[0].mxu0
      %v622 = vadd.f32 0.0, %v621
      %623 = vmatprep.mubr.bf16.mxu0 %v272
      %624 = vmatmul.mubr.bf16.gmra.mrb[0].mxu0 %v271
      %v625 = vpop.f32.mrb[0].mxu0
      %v626 = vadd.f32 0.0, %v625
      %v627 = vpop.f32.mrb[0].mxu0
      %v628 = vadd.f32 0.0, %v627
      %v629 = vpop.f32.mrb[0].mxu0
      %v630 = vadd.f32 0.0, %v629
      %v631 = vpop.f32.mrb[0].mxu0
      %v632 = vadd.f32 0.0, %v631
      %633 = vmatprep.mubr.bf16.mxu0 %v274
      %634 = vmatmul.mubr.bf16.gmra.mrb[0].mxu0 %v273
      %v635 = vpop.f32.mrb[0].mxu0
      %v636 = vadd.f32 0.0, %v635
      %v637 = vpop.f32.mrb[0].mxu0
      %v638 = vadd.f32 0.0, %v637
      %v639 = vpop.f32.mrb[0].mxu0
      %v640 = vadd.f32 0.0, %v639
      %v641 = vpop.f32.mrb[0].mxu0
      %v642 = vadd.f32 0.0, %v641
      %643 = vmatprep.mubr.bf16.mxu0 %v276
      %644 = vmatmul.mubr.bf16.gmra.mrb[0].mxu0 %v275
      %v645 = vpop.f32.mrb[0].mxu0
      %v646 = vadd.f32 0.0, %v645
      %v647 = vpop.f32.mrb[0].mxu0
      %v648 = vadd.f32 0.0, %v647
      %v649 = vpop.f32.mrb[0].mxu0
      %v650 = vadd.f32 0.0, %v649
      %v651 = vpop.f32.mrb[0].mxu0
      %v652 = vadd.f32 0.0, %v651
      %653 = vmatprep.mubr.bf16.mxu0 %v278
      %654 = vmatmul.mubr.bf16.gmra.mrb[0].mxu0 %v277
      %v655 = vpop.f32.mrb[0].mxu0
      %v656 = vadd.f32 0.0, %v655
      %v657 = vpop.f32.mrb[0].mxu0
      %v658 = vadd.f32 0.0, %v657
      %v659 = vpop.f32.mrb[0].mxu0
      %v660 = vadd.f32 0.0, %v659
      %v661 = vpop.f32.mrb[0].mxu0
      %v662 = vadd.f32 0.0, %v661
      %663 = vdwg.mxu0
      %664 = vst [vmem:[%s175] sm:$0xff] %v506
      %665 = vst [vmem:[%s175 + $0x8] sm:$0xff] %v508
      %666 = vst [vmem:[%s175 + $0x10] sm:$0xff] %v510
      %667 = vst [vmem:[%s175 + $0x18] sm:$0xff] %v512
      %668 = vst [vmem:[%s175 + $0x20] sm:$0xff] %v516
      %669 = vst [vmem:[%s175 + $0x28] sm:$0xff] %v518
      %670 = vst [vmem:[%s175 + $0x30] sm:$0xff] %v520
      %671 = vst [vmem:[%s175 + $0x38] sm:$0xff] %v522
      %672 = vst [vmem:[%s175 + $0x40] sm:$0xff] %v526
      %673 = vst [vmem:[%s175 + $0x48] sm:$0xff] %v528
      %674 = vst [vmem:[%s175 + $0x50] sm:$0xff] %v530
      %675 = vst [vmem:[%s175 + $0x58] sm:$0xff] %v532
      %676 = vst [vmem:[%s175 + $0x60] sm:$0xff] %v536
      %677 = vst [vmem:[%s175 + $0x68] sm:$0xff] %v538
      %678 = vst [vmem:[%s175 + $0x70] sm:$0xff] %v540
      %679 = vst [vmem:[%s175 + $0x78] sm:$0xff] %v542
      %680 = vst [vmem:[%s175 + $0x80] sm:$0xff] %v546
      %681 = vst [vmem:[%s175 + $0x88] sm:$0xff] %v548
      %682 = vst [vmem:[%s175 + $0x90] sm:$0xff] %v550
      %683 = vst [vmem:[%s175 + $0x98] sm:$0xff] %v552
      %684 = vst [vmem:[%s175 + $0xa0] sm:$0xff] %v556
      %685 = vst [vmem:[%s175 + $0xa8] sm:$0xff] %v558
      %686 = vst [vmem:[%s175 + $0xb0] sm:$0xff] %v560
      %687 = vst [vmem:[%s175 + $0xb8] sm:$0xff] %v562
      %688 = vst [vmem:[%s175 + $0xc0] sm:$0xff] %v566
      %689 = vst [vmem:[%s175 + $0xc8] sm:$0xff] %v568
      %690 = vst [vmem:[%s175 + $0xd0] sm:$0xff] %v570
      %691 = vst [vmem:[%s175 + $0xd8] sm:$0xff] %v572
      %692 = vst [vmem:[%s175 + $0xe0] sm:$0xff] %v576
      %693 = vst [vmem:[%s175 + $0xe8] sm:$0xff] %v578
      %694 = vst [vmem:[%s175 + $0xf0] sm:$0xff] %v580
      %695 = vst [vmem:[%s175 + $0xf8] sm:$0xff] %v582
      %696 = vst [vmem:[%s175 + $0x100] sm:$0xff] %v586
      %697 = vst [vmem:[%s175 + $0x108] sm:$0xff] %v588
      %698 = vst [vmem:[%s175 + $0x110] sm:$0xff] %v590
      %699 = vst [vmem:[%s175 + $0x118] sm:$0xff] %v592
      %700 = vst [vmem:[%s175 + $0x120] sm:$0xff] %v596
      %701 = vst [vmem:[%s175 + $0x128] sm:$0xff] %v598
      %702 = vst [vmem:[%s175 + $0x130] sm:$0xff] %v600
      %703 = vst [vmem:[%s175 + $0x138] sm:$0xff] %v602
      %704 = vst [vmem:[%s175 + $0x140] sm:$0xff] %v606
      %705 = vst [vmem:[%s175 + $0x148] sm:$0xff] %v608
      %706 = vst [vmem:[%s175 + $0x150] sm:$0xff] %v610
      %707 = vst [vmem:[%s175 + $0x158] sm:$0xff] %v612
      %708 = vst [vmem:[%s175 + $0x160] sm:$0xff] %v616
      %709 = vst [vmem:[%s175 + $0x168] sm:$0xff] %v618
      %710 = vst [vmem:[%s175 + $0x170] sm:$0xff] %v620
      %711 = vst [vmem:[%s175 + $0x178] sm:$0xff] %v622
      %712 = vst [vmem:[%s175 + $0x180] sm:$0xff] %v626
      %713 = vst [vmem:[%s175 + $0x188] sm:$0xff] %v628
      %714 = vst [vmem:[%s175 + $0x190] sm:$0xff] %v630
      %715 = vst [vmem:[%s175 + $0x198] sm:$0xff] %v632
      %716 = vst [vmem:[%s175 + $0x1a0] sm:$0xff] %v636
      %717 = vst [vmem:[%s175 + $0x1a8] sm:$0xff] %v638
      %718 = vst [vmem:[%s175 + $0x1b0] sm:$0xff] %v640
      %719 = vst [vmem:[%s175 + $0x1b8] sm:$0xff] %v642
      %720 = vst [vmem:[%s175 + $0x1c0] sm:$0xff] %v646
      %721 = vst [vmem:[%s175 + $0x1c8] sm:$0xff] %v648
      %722 = vst [vmem:[%s175 + $0x1d0] sm:$0xff] %v650
      %723 = vst [vmem:[%s175 + $0x1d8] sm:$0xff] %v652
      %724 = vst [vmem:[%s175 + $0x1e0] sm:$0xff] %v656
      %725 = vst [vmem:[%s175 + $0x1e8] sm:$0xff] %v658
      %726 = vst [vmem:[%s175 + $0x1f0] sm:$0xff] %v660
      %727 = vst [vmem:[%s175 + $0x1f8] sm:$0xff] %v662
      %v728 = vadd.f32 %v506, %v510
      %v729 = vadd.f32 %v728, %v516
      %v730 = vadd.f32 %v729, %v520
      %v731 = vadd.f32 %v730, %v526
      %v732 = vadd.f32 %v731, %v530
      %v733 = vadd.f32 %v732, %v536
      %v734 = vadd.f32 %v733, %v540
      %v735 = vadd.f32 %v734, %v546
      %v736 = vadd.f32 %v735, %v550
      %v737 = vadd.f32 %v736, %v556
      %v738 = vadd.f32 %v737, %v560
      %v739 = vadd.f32 %v738, %v566
      %v740 = vadd.f32 %v739, %v570
      %v741 = vadd.f32 %v740, %v576
      %v742 = vadd.f32 %v741, %v580
      %v743 = vadd.f32 %v742, %v586
      %v744 = vadd.f32 %v743, %v590
      %v745 = vadd.f32 %v744, %v596
      %v746 = vadd.f32 %v745, %v600
      %v747 = vadd.f32 %v746, %v606
      %v748 = vadd.f32 %v747, %v610
      %v749 = vadd.f32 %v748, %v616
      %v750 = vadd.f32 %v749, %v620
      %v751 = vadd.f32 %v750, %v626
      %v752 = vadd.f32 %v751, %v630
      %v753 = vadd.f32 %v752, %v636
      %v754 = vadd.f32 %v753, %v640
      %v755 = vadd.f32 %v754, %v646
      %v756 = vadd.f32 %v755, %v650
      %v757 = vadd.f32 %v756, %v656
      %v758 = vadd.f32 %v757, %v660
      %v759 = vrot.slane %v758, 4
      %v760 = vadd.f32 %v758, %v759
      %v761 = vrot.slane %v760, 2
      %v762 = vadd.f32 %v760, %v761
      %v763 = vrot.slane %v762, 1
      %v764 = vadd.f32 %v762, %v763
      %v765 = vadd.f32 %v508, %v512
      %v766 = vadd.f32 %v765, %v518
      %v767 = vadd.f32 %v766, %v522
      %v768 = vadd.f32 %v767, %v528
      %v769 = vadd.f32 %v768, %v532
      %v770 = vadd.f32 %v769, %v538
      %v771 = vadd.f32 %v770, %v542
      %v772 = vadd.f32 %v771, %v548
      %v773 = vadd.f32 %v772, %v552
      %v774 = vadd.f32 %v773, %v558
      %v775 = vadd.f32 %v774, %v562
      %v776 = vadd.f32 %v775, %v568
      %v777 = vadd.f32 %v776, %v572
      %v778 = vadd.f32 %v777, %v578
      %v779 = vadd.f32 %v778, %v582
      %v780 = vadd.f32 %v779, %v588
      %v781 = vadd.f32 %v780, %v592
      %v782 = vadd.f32 %v781, %v598
      %v783 = vadd.f32 %v782, %v602
      %v784 = vadd.f32 %v783, %v608
      %v785 = vadd.f32 %v784, %v612
      %v786 = vadd.f32 %v785, %v618
      %v787 = vadd.f32 %v786, %v622
      %v788 = vadd.f32 %v787, %v628
      %v789 = vadd.f32 %v788, %v632
      %v790 = vadd.f32 %v789, %v638
      %v791 = vadd.f32 %v790, %v642
      %v792 = vadd.f32 %v791, %v648
      %v793 = vadd.f32 %v792, %v652
      %v794 = vadd.f32 %v793, %v658
      %v795 = vadd.f32 %v794, %v662
      %v796 = vrot.slane %v795, 4
      %v797 = vadd.f32 %v795, %v796
      %v798 = vrot.slane %v797, 2
      %v799 = vadd.f32 %v797, %v798
      %v800 = vrot.slane %v799, 1
      %v801 = vadd.f32 %v799, %v800
      %v802 = vmul.f32 %v506, %v506
      %v803 = vmul.f32 %v508, %v508
      %v804 = vmul.f32 %v510, %v510
      %v805 = vmul.f32 %v512, %v512
      %v806 = vmul.f32 %v516, %v516
      %v807 = vmul.f32 %v518, %v518
      %v808 = vmul.f32 %v520, %v520
      %v809 = vmul.f32 %v522, %v522
      %v810 = vmul.f32 %v526, %v526
      %v811 = vmul.f32 %v528, %v528
      %v812 = vmul.f32 %v530, %v530
      %v813 = vmul.f32 %v532, %v532
      %v814 = vmul.f32 %v536, %v536
      %v815 = vmul.f32 %v538, %v538
      %v816 = vmul.f32 %v540, %v540
      %v817 = vmul.f32 %v542, %v542
      %v818 = vmul.f32 %v546, %v546
      %v819 = vmul.f32 %v548, %v548
      %v820 = vmul.f32 %v550, %v550
      %v821 = vmul.f32 %v552, %v552
      %v822 = vmul.f32 %v556, %v556
      %v823 = vmul.f32 %v558, %v558
      %v824 = vmul.f32 %v560, %v560
      %v825 = vmul.f32 %v562, %v562
      %v826 = vmul.f32 %v566, %v566
      %v827 = vmul.f32 %v568, %v568
      %v828 = vmul.f32 %v570, %v570
      %v829 = vmul.f32 %v572, %v572
      %v830 = vmul.f32 %v576, %v576
      %v831 = vmul.f32 %v578, %v578
      %v832 = vmul.f32 %v580, %v580
      %v833 = vmul.f32 %v582, %v582
      %v834 = vmul.f32 %v586, %v586
      %v835 = vmul.f32 %v588, %v588
      %v836 = vmul.f32 %v590, %v590
      %v837 = vmul.f32 %v592, %v592
      %v838 = vmul.f32 %v596, %v596
      %v839 = vmul.f32 %v598, %v598
      %v840 = vmul.f32 %v600, %v600
      %v841 = vmul.f32 %v602, %v602
      %v842 = vmul.f32 %v606, %v606
      %v843 = vmul.f32 %v608, %v608
      %v844 = vmul.f32 %v610, %v610
      %v845 = vmul.f32 %v612, %v612
      %v846 = vmul.f32 %v616, %v616
      %v847 = vmul.f32 %v618, %v618
      %v848 = vmul.f32 %v620, %v620
      %v849 = vmul.f32 %v622, %v622
      %v850 = vmul.f32 %v626, %v626
      %v851 = vmul.f32 %v628, %v628
      %v852 = vmul.f32 %v630, %v630
      %v853 = vmul.f32 %v632, %v632
      %v854 = vmul.f32 %v636, %v636
      %v855 = vmul.f32 %v638, %v638
      %v856 = vmul.f32 %v640, %v640
      %v857 = vmul.f32 %v642, %v642
      %v858 = vmul.f32 %v646, %v646
      %v859 = vmul.f32 %v648, %v648
      %v860 = vmul.f32 %v650, %v650
      %v861 = vmul.f32 %v652, %v652
      %v862 = vmul.f32 %v656, %v656
      %v863 = vmul.f32 %v658, %v658
      %v864 = vmul.f32 %v660, %v660
      %v865 = vmul.f32 %v662, %v662
      %v866 = vadd.f32 %v802, %v804
      %v867 = vadd.f32 %v866, %v806
      %v868 = vadd.f32 %v867, %v808
      %v869 = vadd.f32 %v868, %v810
      %v870 = vadd.f32 %v869, %v812
      %v871 = vadd.f32 %v870, %v814
      %v872 = vadd.f32 %v871, %v816
      %v873 = vadd.f32 %v872, %v818
      %v874 = vadd.f32 %v873, %v820
      %v875 = vadd.f32 %v874, %v822
      %v876 = vadd.f32 %v875, %v824
      %v877 = vadd.f32 %v876, %v826
      %v878 = vadd.f32 %v877, %v828
      %v879 = vadd.f32 %v878, %v830
      %v880 = vadd.f32 %v879, %v832
      %v881 = vadd.f32 %v880, %v834
      %v882 = vadd.f32 %v881, %v836
      %v883 = vadd.f32 %v882, %v838
      %v884 = vadd.f32 %v883, %v840
      %v885 = vadd.f32 %v884, %v842
      %v886 = vadd.f32 %v885, %v844
      %v887 = vadd.f32 %v886, %v846
      %v888 = vadd.f32 %v887, %v848
      %v889 = vadd.f32 %v888, %v850
      %v890 = vadd.f32 %v889, %v852
      %v891 = vadd.f32 %v890, %v854
      %v892 = vadd.f32 %v891, %v856
      %v893 = vadd.f32 %v892, %v858
      %v894 = vadd.f32 %v893, %v860
      %v895 = vadd.f32 %v894, %v862
      %v896 = vadd.f32 %v895, %v864
      %v897 = vrot.slane %v896, 4
      %v898 = vadd.f32 %v896, %v897
      %v899 = vrot.slane %v898, 2
      %v900 = vadd.f32 %v898, %v899
      %v901 = vrot.slane %v900, 1
      %v902 = vadd.f32 %v900, %v901
      %v903 = vadd.f32 %v803, %v805
      %v904 = vadd.f32 %v903, %v807
      %v905 = vadd.f32 %v904, %v809
      %v906 = vadd.f32 %v905, %v811
      %v907 = vadd.f32 %v906, %v813
      %v908 = vadd.f32 %v907, %v815
      %v909 = vadd.f32 %v908, %v817
      %v910 = vadd.f32 %v909, %v819
      %v911 = vadd.f32 %v910, %v821
      %v912 = vadd.f32 %v911, %v823
      %v913 = vadd.f32 %v912, %v825
      %v914 = vadd.f32 %v913, %v827
      %v915 = vadd.f32 %v914, %v829
      %v916 = vadd.f32 %v915, %v831
      %v917 = vadd.f32 %v916, %v833
      %v918 = vadd.f32 %v917, %v835
      %v919 = vadd.f32 %v918, %v837
      %v920 = vadd.f32 %v919, %v839
      %v921 = vadd.f32 %v920, %v841
      %v922 = vadd.f32 %v921, %v843
      %v923 = vadd.f32 %v922, %v845
      %v924 = vadd.f32 %v923, %v847
      %v925 = vadd.f32 %v924, %v849
      %v926 = vadd.f32 %v925, %v851
      %v927 = vadd.f32 %v926, %v853
      %v928 = vadd.f32 %v927, %v855
      %v929 = vadd.f32 %v928, %v857
      %v930 = vadd.f32 %v929, %v859
      %v931 = vadd.f32 %v930, %v861
      %v932 = vadd.f32 %v931, %v863
      %v933 = vadd.f32 %v932, %v865
      %v934 = vrot.slane %v933, 4
      %v935 = vadd.f32 %v933, %v934
      %v936 = vrot.slane %v935, 2
      %v937 = vadd.f32 %v935, %v936
      %v938 = vrot.slane %v937, 1
      %v939 = vadd.f32 %v937, %v938
      %vm940 = vcmask 1040384
      %v941 = vsel %vm940, %v764, %v902
      %v942 = vsel %vm940, %v801, %v939
      %vm943 = vcmask 1041408
      %v944 = vsel %vm943, %v941, 0.0
      %v945 = vsel %vm943, %v942, 0.0
      %v946 = vld [vmem:[%s3] sm:$0xff]
      %v947 = vld [vmem:[%s3 + $0x8] sm:$0xff]
      %v948 = vadd.f32 %v946, %v944
      %v949 = vadd.f32 %v947, %v945
      %950 = vst [vmem:[%s3] sm:$0xff] %v948
      %951 = vst [vmem:[%s3 + $0x8] sm:$0xff] %v949
      %s952 = smul.u32 32, %s15
      %p953 = scmp.lt.s32.totalorder %s952, 63
      %s954 = scalar_select %p953, %s952, 63
      %s955 = smul.addr %s954, 2
      %s956 = smul.addr %s955, 8
      %s957 = scalar_lea.vmem %s2, %s956
      // Predicated region
      $region33: #{mlp_forward.8} parent=27 // pred_check
        %p958 = pneg %p80
      $region34: #{mlp_forward.8} parent=27 // pred_check_branch
        %960 = sbr.rel (%p958) target = $region36
      $region35: #{mlp_forward.8} parent=27 // pred_region
        %s961 = smul.u32 32, %s15
      $region36: #{mlp_forward.8} parent=27 // pred_fallthru
        _
      // Predicated region
      $region37: #{mlp_forward.8} parent=27 // pred_check
        %p962 = pneg %p101
      $region38: #{mlp_forward.8} parent=27 // pred_check_branch
        %964 = sbr.rel (%p962) target = $region40
      $region39: #{mlp_forward.8} parent=27 // pred_region
        _
      $region40: #{mlp_forward.8} parent=27 // pred_fallthru
        _
      // Predicated region
      $region41: #{mlp_forward.8} parent=27 // pred_check
        %p965 = pneg %p101
      $region42: #{mlp_forward.8} parent=27 // pred_check_branch
        %967 = sbr.rel (%p965) target = $region44
      $region43: #{mlp_forward.8} parent=27 // pred_region
        _
      $region44: #{mlp_forward.8} parent=27 // pred_fallthru
        _
    $region28: #{mlp_forward.8} parent=5 // pred_fallthru
      _
    %p968 = scmp.le.s32.totalorder 2, %s10
    // Predicated region
    $region45: #{mlp_forward.8} parent=5 // pred_check
      %p969 = pneg %p968
    $region46: #{mlp_forward.8} parent=5 // pred_check_branch
      %971 = sbr.rel (%p969) target = $region48
    $region47: #{mlp_forward.8} parent=5 // pred_region
      %s972 = ssub.s32 %s10, 2
      // Predicated region
      $region49: #{mlp_forward.8} parent=47 // pred_check
        %p973 = pneg %p86
      $region50: #{mlp_forward.8} parent=47 // pred_check_branch
        %975 = sbr.rel (%p973) target = $region52
      $region51: #{mlp_forward.8} parent=47 // pred_region
        %s976 = smul.u32 32, %s16
        %p977 = scmp.lt.s32.totalorder %s976, 63
        %s978 = scalar_select %p977, %s976, 63
        %s979 = smul.addr %s978, 2
        %s980 = smul.addr %s979, 8
        %s981 = scalar_lea.vmem %s2, %s980
      $region52: #{mlp_forward.8} parent=47 // pred_fallthru
        _
    $region48: #{mlp_forward.8} parent=5 // pred_fallthru
      _
  $region6: #{mlp_forward.8} parent=0 // loop_footer
    %s14 = sadd.s32 1, %s10
  $region7: #{mlp_forward.8} parent=0 // loop_footer_branch
    %9 = sbr.rel target = $region3
  $region8: #{mlp_forward.8} parent=0 // loop_exit
    _

// kernel: mlp_forward.10
$region0: #{mlp_forward.10}
  #allocation0 [shape = 'u32[]', space=smem, size = 0x4, offset = 0x4, fixed_abs, tag = 'smem constant byte address 0x4 - core index']
  #allocation1 [shape = 'u32[144,128]{1,0:T(1,128)}', space=vmem, size = 0x12000, scoped, tag = 'internal scratch']
  %s0 = inlined_call_operand.vmem [shape: f32[512,256], index: 0, kind: input, shape index: {}]
  %s1 = inlined_call_operand.vmem [shape: bf16[256,128], index: 1, kind: input, shape index: {}]
  %s2 = inlined_call_operand.vmem [shape: f32[512,128], index: 2, kind: output, shape index: {0}]
  %s3 = inlined_call_operand.vmem [shape: f32[8,128], index: 3, kind: output, shape index: {1}]
  %4 = xla_tuple %s2, %s3
  %s5 = sld [smem:[#allocation0]]
  $region53: #{mlp_forward.10} parent=0
    _
  %s7 = ssub.s32 1, %s5
  %s8 = scalar_select 0, %s7, %s5
  loop: start=0, step=1, limit=4
  $region2: #{mlp_forward.10} parent=0 // loop_pre_header
    _
  $region3: #{mlp_forward.10} parent=0 // loop_header
    %s10 = sphi 0, %s14
    %p11 = scmp.ge.s32.totalorder %s10, 4
    %s20 = sphi 0, %s22
    %s23 = sphi 0, %s20
    %s24 = sphi 0, %s23
    %s40 = sphi 0, %s24
    %s44 = sphi 0, %s44
    %s46 = sphi 0, %s44
    %s47 = sphi 0, %s46
    %s61 = sphi 0, %s47
    %s67 = sphi 0, %s69
    %s70 = sphi 0, %s67
    %s71 = sphi 0, %s70
    %s87 = sphi 0, %s71
    %s91 = sphi 0, %s91
    %s93 = sphi 0, %s91
    %s94 = sphi 0, %s93
    %s108 = sphi 0, %s94
  $region4: #{mlp_forward.10} parent=0 // loop_header_branch
    %13 = sbr.rel (%p11) target = $region8
  $region5: #{mlp_forward.10} parent=0 // loop_body
    %s15 = ssub.s32 %s10, 1
    %s16 = ssub.s32 %s10, 2
    %s17 = sadd.s32 %s10, 1
    %s18 = ssub.s32 %s10, %s17
    %p19 = scmp.eq.s32.totalorder %s18, 0
    %s21 = sadd.s32 %s20, 1
    %s22 = scalar_select %p19, %s20, %s21
    %p25 = pneg %p19
    %p26 = scmp.eq.s32.totalorder %s10, 1
    %p27 = por %p25, %p26
    %p28 = scmp.ne.s32.totalorder %s20, %s23
    %p29 = scmp.eq.s32.totalorder %s10, 0
    %p30 = por %p28, %p29
    %p31 = scmp.ne.s32.totalorder %s20, %s23
    %p32 = scmp.eq.s32.totalorder %s15, 1
    %p33 = por %p31, %p32
    %p34 = scmp.ne.s32.totalorder %s23, %s24
    %p35 = scmp.eq.s32.totalorder %s15, 0
    %p36 = por %p34, %p35
    %p37 = scmp.ne.s32.totalorder %s23, %s24
    %p38 = scmp.eq.s32.totalorder %s16, 1
    %p39 = por %p37, %p38
    %p41 = scmp.ne.s32.totalorder %s24, %s40
    %p42 = scmp.eq.s32.totalorder %s16, 0
    %p43 = por %p41, %p42
    %s45 = sadd.s32 %s44, 1
    %p48 = scmp.eq.s32.totalorder %s10, 1
    %p49 = scmp.ne.s32.totalorder %s44, %s46
    %p50 = scmp.eq.s32.totalorder %s10, 0
    %p51 = por %p49, %p50
    %p52 = scmp.ne.s32.totalorder %s44, %s46
    %p53 = scmp.eq.s32.totalorder %s15, 1
    %p54 = por %p52, %p53
    %p55 = scmp.ne.s32.totalorder %s46, %s47
    %p56 = scmp.eq.s32.totalorder %s15, 0
    %p57 = por %p55, %p56
    %p58 = scmp.ne.s32.totalorder %s46, %s47
    %p59 = scmp.eq.s32.totalorder %s16, 1
    %p60 = por %p58, %p59
    %p62 = scmp.ne.s32.totalorder %s47, %s61
    %p63 = scmp.eq.s32.totalorder %s16, 0
    %p64 = por %p62, %p63
    %s65 = ssub.s32 %s10, %s17
    %p66 = scmp.eq.s32.totalorder %s65, 0
    %s68 = sadd.s32 %s67, 1
    %s69 = scalar_select %p66, %s67, %s68
    %p72 = pneg %p66
    %p73 = scmp.eq.s32.totalorder %s10, 1
    %p74 = por %p72, %p73
    %p75 = scmp.ne.s32.totalorder %s67, %s70
    %p76 = scmp.eq.s32.totalorder %s10, 0
    %p77 = por %p75, %p76
    %p78 = scmp.ne.s32.totalorder %s67, %s70
    %p79 = scmp.eq.s32.totalorder %s15, 1
    %p80 = por %p78, %p79
    %p81 = scmp.ne.s32.totalorder %s70, %s71
    %p82 = scmp.eq.s32.totalorder %s15, 0
    %p83 = por %p81, %p82
    %p84 = scmp.ne.s32.totalorder %s70, %s71
    %p85 = scmp.eq.s32.totalorder %s16, 1
    %p86 = por %p84, %p85
    %p88 = scmp.ne.s32.totalorder %s71, %s87
    %p89 = scmp.eq.s32.totalorder %s16, 0
    %p90 = por %p88, %p89
    %s92 = sadd.s32 %s91, 1
    %p95 = scmp.eq.s32.totalorder %s10, 1
    %p96 = scmp.ne.s32.totalorder %s91, %s93
    %p97 = scmp.eq.s32.totalorder %s10, 0
    %p98 = por %p96, %p97
    %p99 = scmp.ne.s32.totalorder %s91, %s93
    %p100 = scmp.eq.s32.totalorder %s15, 1
    %p101 = por %p99, %p100
    %p102 = scmp.ne.s32.totalorder %s93, %s94
    %p103 = scmp.eq.s32.totalorder %s15, 0
    %p104 = por %p102, %p103
    %p105 = scmp.ne.s32.totalorder %s93, %s94
    %p106 = scmp.eq.s32.totalorder %s16, 1
    %p107 = por %p105, %p106
    %p109 = scmp.ne.s32.totalorder %s94, %s108
    %p110 = scmp.eq.s32.totalorder %s16, 0
    %p111 = por %p109, %p110
    %p112 = scmp.le.s32.totalorder 1, %s10
    %p113 = scmp.lt.s32.totalorder %s10, 3
    %p114 = pnand %p112, %p113
    %p115 = pneg %p114
    // Predicated region
    $region9: #{mlp_forward.10} parent=5 // pred_check
      _
    $region10: #{mlp_forward.10} parent=5 // pred_check_branch
      %117 = sbr.rel (%p114) target = $region12
    $region11: #{mlp_forward.10} parent=5 // pred_region
      %s118 = ssub.s32 %s10, 1
      // Predicated region
      $region13: #{mlp_forward.10} parent=11 // pred_check
        %p119 = pneg %p57
      $region14: #{mlp_forward.10} parent=11 // pred_check_branch
        %121 = sbr.rel (%p119) target = $region16
      $region15: #{mlp_forward.10} parent=11 // pred_region
        _
      $region16: #{mlp_forward.10} parent=11 // pred_fallthru
        _
    $region12: #{mlp_forward.10} parent=5 // pred_fallthru
      _
    %p122 = scmp.lt.s32.totalorder %s10, 2
    // Predicated region
    $region17: #{mlp_forward.10} parent=5 // pred_check
      %p123 = pneg %p122
    $region18: #{mlp_forward.10} parent=5 // pred_check_branch
      %125 = sbr.rel (%p123) target = $region20
    $region19: #{mlp_forward.10} parent=5 // pred_region
      // Predicated region
      $region21: #{mlp_forward.10} parent=19 // pred_check
        %p126 = pneg %p30
      $region22: #{mlp_forward.10} parent=19 // pred_check_branch
        %128 = sbr.rel (%p126) target = $region24
      $region23: #{mlp_forward.10} parent=19 // pred_region
        %s129 = smul.u32 32, %s10
        %p130 = scmp.lt.s32.totalorder %s129, 63
        %s131 = scalar_select %p130, %s129, 63
        %s132 = smul.addr %s131, 2
        %s133 = smul.addr %s132, 8
        %s134 = scalar_lea.vmem %s0, %s133
        %s135 = smul.u32 32, %s10
      $region24: #{mlp_forward.10} parent=19 // pred_fallthru
        _
    $region20: #{mlp_forward.10} parent=5 // pred_fallthru
      _
    %p136 = scmp.le.s32.totalorder 1, %s10
    %p137 = scmp.lt.s32.totalorder %s10, 3
    %p138 = pnand %p136, %p137
    %p139 = pneg %p138
    // Predicated region
    $region25: #{mlp_forward.10} parent=5 // pred_check
      _
    $region26: #{mlp_forward.10} parent=5 // pred_check_branch
      %141 = sbr.rel (%p138) target = $region28
    $region27: #{mlp_forward.10} parent=5 // pred_region
      %s142 = ssub.s32 %s10, 1
      %s143 = smul.u32 32, %s15
      %p144 = scmp.lt.s32.totalorder %s143, 63
      %s145 = scalar_select %p144, %s143, 63
      %s146 = smul.addr %s145, 2
      %s147 = smul.addr %s146, 8
      %s148 = scalar_lea.vmem %s0, %s147
      %p149 = pneg %p36
      %p150 = pneg %p33
      %p151 = pneg %p57
      %p152 = pneg %p54
      %p153 = pneg %p83
      %p154 = pneg %p80
      %s155 = smul.u32 32, %s15
      %p156 = scmp.lt.s32.totalorder %s155, 63
      %s157 = scalar_select %p156, %s155, 63
      %s158 = smul.addr %s157, 8
      %s159 = scalar_lea.vmem %s2, %s158
      %p160 = pneg %p104
      %p161 = pneg %p101
      %s162 = smul.u32 32, %s15
      %p163 = scmp.lt.s32.totalorder %s162, 63
      %s164 = scalar_select %p163, %s162, 63
      %s165 = smul.addr %s164, 2
      %s166 = smul.addr %s165, 8
      %s167 = scalar_lea.vmem %s0, %s166
      %s168 = smul.u32 32, %s15
      %s169 = smul.u32 32, %s15
      %p170 = scmp.lt.s32.totalorder %s169, 63
      %s171 = scalar_select %p170, %s169, 63
      %s172 = smul.addr %s171, 8
      %s173 = scalar_lea.vmem %s2, %s172
      %s174 = smul.u32 32, %s15
      %p176 = scmp.eq.s32.totalorder %s15, 0
      // Predicated region
      $region29: #{mlp_forward.10} parent=27 // pred_check
        %p177 = pneg %p176
      $region30: #{mlp_forward.10} parent=27 // pred_check_branch
        %179 = sbr.rel (%p177) target = $region32
      $region31: #{mlp_forward.10} parent=27 // pred_region
        %180 = vst [vmem:[%s3] sm:$0xff] 0.0
      $region32: #{mlp_forward.10} parent=27 // pred_fallthru
        _
      %v181 = vld [vmem:[%s167] sm:$0xff]
      %v182 = vld [vmem:[%s167 + $0x8] sm:$0xff]
      %v183 = vld [vmem:[%s167 + $0x10] sm:$0xff]
      %v184 = vld [vmem:[%s167 + $0x18] sm:$0xff]
      %v185 = vld [vmem:[%s167 + $0x20] sm:$0xff]
      %v186 = vld [vmem:[%s167 + $0x28] sm:$0xff]
      %v187 = vld [vmem:[%s167 + $0x30] sm:$0xff]
      %v188 = vld [vmem:[%s167 + $0x38] sm:$0xff]
      %v189 = vld [vmem:[%s167 + $0x40] sm:$0xff]
      %v190 = vld [vmem:[%s167 + $0x48] sm:$0xff]
      %v191 = vld [vmem:[%s167 + $0x50] sm:$0xff]
      %v192 = vld [vmem:[%s167 + $0x58] sm:$0xff]
      %v193 = vld [vmem:[%s167 + $0x60] sm:$0xff]
      %v194 = vld [vmem:[%s167 + $0x68] sm:$0xff]
      %v195 = vld [vmem:[%s167 + $0x70] sm:$0xff]
      %v196 = vld [vmem:[%s167 + $0x78] sm:$0xff]
      %v197 = vld [vmem:[%s167 + $0x80] sm:$0xff]
      %v198 = vld [vmem:[%s167 + $0x88] sm:$0xff]
      %v199 = vld [vmem:[%s167 + $0x90] sm:$0xff]
      %v200 = vld [vmem:[%s167 + $0x98] sm:$0xff]
      %v201 = vld [vmem:[%s167 + $0xa0] sm:$0xff]
      %v202 = vld [vmem:[%s167 + $0xa8] sm:$0xff]
      %v203 = vld [vmem:[%s167 + $0xb0] sm:$0xff]
      %v204 = vld [vmem:[%s167 + $0xb8] sm:$0xff]
      %v205 = vld [vmem:[%s167 + $0xc0] sm:$0xff]
      %v206 = vld [vmem:[%s167 + $0xc8] sm:$0xff]
      %v207 = vld [vmem:[%s167 + $0xd0] sm:$0xff]
      %v208 = vld [vmem:[%s167 + $0xd8] sm:$0xff]
      %v209 = vld [vmem:[%s167 + $0xe0] sm:$0xff]
      %v210 = vld [vmem:[%s167 + $0xe8] sm:$0xff]
      %v211 = vld [vmem:[%s167 + $0xf0] sm:$0xff]
      %v212 = vld [vmem:[%s167 + $0xf8] sm:$0xff]
      %v213 = vld [vmem:[%s167 + $0x100] sm:$0xff]
      %v214 = vld [vmem:[%s167 + $0x108] sm:$0xff]
      %v215 = vld [vmem:[%s167 + $0x110] sm:$0xff]
      %v216 = vld [vmem:[%s167 + $0x118] sm:$0xff]
      %v217 = vld [vmem:[%s167 + $0x120] sm:$0xff]
      %v218 = vld [vmem:[%s167 + $0x128] sm:$0xff]
      %v219 = vld [vmem:[%s167 + $0x130] sm:$0xff]
      %v220 = vld [vmem:[%s167 + $0x138] sm:$0xff]
      %v221 = vld [vmem:[%s167 + $0x140] sm:$0xff]
      %v222 = vld [vmem:[%s167 + $0x148] sm:$0xff]
      %v223 = vld [vmem:[%s167 + $0x150] sm:$0xff]
      %v224 = vld [vmem:[%s167 + $0x158] sm:$0xff]
      %v225 = vld [vmem:[%s167 + $0x160] sm:$0xff]
      %v226 = vld [vmem:[%s167 + $0x168] sm:$0xff]
      %v227 = vld [vmem:[%s167 + $0x170] sm:$0xff]
      %v228 = vld [vmem:[%s167 + $0x178] sm:$0xff]
      %v229 = vld [vmem:[%s167 + $0x180] sm:$0xff]
      %v230 = vld [vmem:[%s167 + $0x188] sm:$0xff]
      %v231 = vld [vmem:[%s167 + $0x190] sm:$0xff]
      %v232 = vld [vmem:[%s167 + $0x198] sm:$0xff]
      %v233 = vld [vmem:[%s167 + $0x1a0] sm:$0xff]
      %v234 = vld [vmem:[%s167 + $0x1a8] sm:$0xff]
      %v235 = vld [vmem:[%s167 + $0x1b0] sm:$0xff]
      %v236 = vld [vmem:[%s167 + $0x1b8] sm:$0xff]
      %v237 = vld [vmem:[%s167 + $0x1c0] sm:$0xff]
      %v238 = vld [vmem:[%s167 + $0x1c8] sm:$0xff]
      %v239 = vld [vmem:[%s167 + $0x1d0] sm:$0xff]
      %v240 = vld [vmem:[%s167 + $0x1d8] sm:$0xff]
      %v241 = vld [vmem:[%s167 + $0x1e0] sm:$0xff]
      %v242 = vld [vmem:[%s167 + $0x1e8] sm:$0xff]
      %v243 = vld [vmem:[%s167 + $0x1f0] sm:$0xff]
      %v244 = vld [vmem:[%s167 + $0x1f8] sm:$0xff]
      %v245 = vpack.c.bf16 %v183, %v181
      %v246 = vpack.c.bf16 %v184, %v182
      %v247 = vpack.c.bf16 %v187, %v185
      %v248 = vpack.c.bf16 %v188, %v186
      %v249 = vpack.c.bf16 %v191, %v189
      %v250 = vpack.c.bf16 %v192, %v190
      %v251 = vpack.c.bf16 %v195, %v193
      %v252 = vpack.c.bf16 %v196, %v194
      %v253 = vpack.c.bf16 %v199, %v197
      %v254 = vpack.c.bf16 %v200, %v198
      %v255 = vpack.c.bf16 %v203, %v201
      %v256 = vpack.c.bf16 %v204, %v202
      %v257 = vpack.c.bf16 %v207, %v205
      %v258 = vpack.c.bf16 %v208, %v206
      %v259 = vpack.c.bf16 %v211, %v209
      %v260 = vpack.c.bf16 %v212, %v210
      %v261 = vpack.c.bf16 %v215, %v213
      %v262 = vpack.c.bf16 %v216, %v214
      %v263 = vpack.c.bf16 %v219, %v217
      %v264 = vpack.c.bf16 %v220, %v218
      %v265 = vpack.c.bf16 %v223, %v221
      %v266 = vpack.c.bf16 %v224, %v222
      %v267 = vpack.c.bf16 %v227, %v225
      %v268 = vpack.c.bf16 %v228, %v226
      %v269 = vpack.c.bf16 %v231, %v229
      %v270 = vpack.c.bf16 %v232, %v230
      %v271 = vpack.c.bf16 %v235, %v233
      %v272 = vpack.c.bf16 %v236, %v234
      %v273 = vpack.c.bf16 %v239, %v237
      %v274 = vpack.c.bf16 %v240, %v238
      %v275 = vpack.c.bf16 %v243, %v241
      %v276 = vpack.c.bf16 %v244, %v242
      %v277 = vld [vmem:[%s1] sm:$0xf]
      %v278 = vld [vmem:[%s1 + $0x4] sm:$0xf]
      %v279 = vld [vmem:[%s1 + $0x8] sm:$0xf]
      %v280 = vld [vmem:[%s1 + $0xc] sm:$0xf]
      %v281 = vld [vmem:[%s1 + $0x10] sm:$0xf]
      %v282 = vld [vmem:[%s1 + $0x14] sm:$0xf]
      %v283 = vld [vmem:[%s1 + $0x18] sm:$0xf]
      %v284 = vld [vmem:[%s1 + $0x1c] sm:$0xf]
      %v285 = vld [vmem:[%s1 + $0x20] sm:$0xf]
      %v286 = vld [vmem:[%s1 + $0x24] sm:$0xf]
      %v287 = vld [vmem:[%s1 + $0x28] sm:$0xf]
      %v288 = vld [vmem:[%s1 + $0x2c] sm:$0xf]
      %v289 = vld [vmem:[%s1 + $0x30] sm:$0xf]
      %v290 = vld [vmem:[%s1 + $0x34] sm:$0xf]
      %v291 = vld [vmem:[%s1 + $0x38] sm:$0xf]
      %v292 = vld [vmem:[%s1 + $0x3c] sm:$0xf]
      %v293 = vld [vmem:[%s1 + $0x40] sm:$0xf]
      %v294 = vld [vmem:[%s1 + $0x44] sm:$0xf]
      %v295 = vld [vmem:[%s1 + $0x48] sm:$0xf]
      %v296 = vld [vmem:[%s1 + $0x4c] sm:$0xf]
      %v297 = vld [vmem:[%s1 + $0x50] sm:$0xf]
      %v298 = vld [vmem:[%s1 + $0x54] sm:$0xf]
      %v299 = vld [vmem:[%s1 + $0x58] sm:$0xf]
      %v300 = vld [vmem:[%s1 + $0x5c] sm:$0xf]
      %v301 = vld [vmem:[%s1 + $0x60] sm:$0xf]
      %v302 = vld [vmem:[%s1 + $0x64] sm:$0xf]
      %v303 = vld [vmem:[%s1 + $0x68] sm:$0xf]
      %v304 = vld [vmem:[%s1 + $0x6c] sm:$0xf]
      %v305 = vld [vmem:[%s1 + $0x70] sm:$0xf]
      %v306 = vld [vmem:[%s1 + $0x74] sm:$0xf]
      %v307 = vld [vmem:[%s1 + $0x78] sm:$0xf]
      %v308 = vld [vmem:[%s1 + $0x7c] sm:$0xf]
      %v341 = vunpack.c.l.b16 %v277
      %v342 = vunpack.c.l.b16 %v278
      %v343 = vunpack.c.l.b16 %v279
      %v344 = vunpack.c.l.b16 %v280
      %v345 = vunpack.c.l.b16 %v281
      %v346 = vunpack.c.l.b16 %v282
      %v347 = vunpack.c.l.b16 %v283
      %v348 = vunpack.c.l.b16 %v284
      %v349 = vunpack.c.l.b16 %v285
      %v350 = vunpack.c.l.b16 %v286
      %v351 = vunpack.c.l.b16 %v287
      %v352 = vunpack.c.l.b16 %v288
      %v353 = vunpack.c.l.b16 %v289
      %v354 = vunpack.c.l.b16 %v290
      %v355 = vunpack.c.l.b16 %v291
      %v356 = vunpack.c.l.b16 %v292
      %v357 = vunpack.c.l.b16 %v293
      %v358 = vunpack.c.l.b16 %v294
      %v359 = vunpack.c.l.b16 %v295
      %v360 = vunpack.c.l.b16 %v296
      %v361 = vunpack.c.l.b16 %v297
      %v362 = vunpack.c.l.b16 %v298
      %v363 = vunpack.c.l.b16 %v299
      %v364 = vunpack.c.l.b16 %v300
      %v365 = vunpack.c.l.b16 %v301
      %v366 = vunpack.c.l.b16 %v302
      %v367 = vunpack.c.l.b16 %v303
      %v368 = vunpack.c.l.b16 %v304
      %v369 = vunpack.c.l.b16 %v305
      %v370 = vunpack.c.l.b16 %v306
      %v371 = vunpack.c.l.b16 %v307
      %v372 = vunpack.c.l.b16 %v308
      %v373 = vpack.c.b16 %v342, %v341
      %v374 = vpack.c.b16 %v344, %v343
      %v375 = vpack.c.b16 %v346, %v345
      %v376 = vpack.c.b16 %v348, %v347
      %v377 = vpack.c.b16 %v350, %v349
      %v378 = vpack.c.b16 %v352, %v351
      %v379 = vpack.c.b16 %v354, %v353
      %v380 = vpack.c.b16 %v356, %v355
      %v381 = vpack.c.b16 %v358, %v357
      %v382 = vpack.c.b16 %v360, %v359
      %v383 = vpack.c.b16 %v362, %v361
      %v384 = vpack.c.b16 %v364, %v363
      %v385 = vpack.c.b16 %v366, %v365
      %v386 = vpack.c.b16 %v368, %v367
      %v387 = vpack.c.b16 %v370, %v369
      %v388 = vpack.c.b16 %v372, %v371
      %405 = vmatprep.subr.bf16.mxu0 0
      %406 = vmatpush1.bf16.msra.mxu0 %v373
      %407 = vmatprep.subr.bf16.mxu0 0
      %408 = vmatpush1.bf16.msra.mxu0 %v374
      %409 = vmatprep.subr.bf16.mxu0 0
      %410 = vmatpush1.bf16.msra.mxu0 %v375
      %411 = vmatprep.subr.bf16.mxu0 0
      %412 = vmatpush1.bf16.msra.mxu0 %v376
      %413 = vmatprep.subr.bf16.mxu0 0
      %414 = vmatpush1.bf16.msra.mxu0 %v377
      %415 = vmatprep.subr.bf16.mxu0 0
      %416 = vmatpush1.bf16.msra.mxu0 %v378
      %417 = vmatprep.subr.bf16.mxu0 0
      %418 = vmatpush1.bf16.msra.mxu0 %v379
      %419 = vmatprep.subr.bf16.mxu0 0
      %420 = vmatpush1.bf16.msra.mxu0 %v380
      %421 = vmatprep.subr.bf16.mxu0 0
      %422 = vmatpush1.bf16.msra.mxu0 %v381
      %423 = vmatprep.subr.bf16.mxu0 0
      %424 = vmatpush1.bf16.msra.mxu0 %v382
      %425 = vmatprep.subr.bf16.mxu0 0
      %426 = vmatpush1.bf16.msra.mxu0 %v383
      %427 = vmatprep.subr.bf16.mxu0 0
      %428 = vmatpush1.bf16.msra.mxu0 %v384
      %429 = vmatprep.subr.bf16.mxu0 0
      %430 = vmatpush1.bf16.msra.mxu0 %v385
      %431 = vmatprep.subr.bf16.mxu0 0
      %432 = vmatpush1.bf16.msra.mxu0 %v386
      %433 = vmatprep.subr.bf16.mxu0 0
      %434 = vmatpush1.bf16.msra.mxu0 %v387
      %435 = vmatprep.subr.bf16.mxu0 0
      %436 = vmatpush1.bf16.msra.mxu0 %v388
      %437 = vmatprep.mubr.bf16.mxu0 %v246
      %438 = vmatmul.mubr.bf16.gmra.mrb[0].mxu0 %v245
      %v439 = vpop.f32.mrb[0].mxu0
      %v440 = vadd.f32 0.0, %v439
      %v441 = vpop.f32.mrb[0].mxu0
      %v442 = vpop.f32.mrb[0].mxu0
      %v443 = vadd.f32 0.0, %v442
      %v444 = vpop.f32.mrb[0].mxu0
      %445 = vmatprep.mubr.bf16.mxu0 %v248
      %446 = vmatmul.mubr.bf16.gmra.mrb[0].mxu0 %v247
      %v447 = vpop.f32.mrb[0].mxu0
      %v448 = vadd.f32 0.0, %v447
      %v449 = vpop.f32.mrb[0].mxu0
      %v450 = vpop.f32.mrb[0].mxu0
      %v451 = vadd.f32 0.0, %v450
      %v452 = vpop.f32.mrb[0].mxu0
      %453 = vmatprep.mubr.bf16.mxu0 %v250
      %454 = vmatmul.mubr.bf16.gmra.mrb[0].mxu0 %v249
      %v455 = vpop.f32.mrb[0].mxu0
      %v456 = vadd.f32 0.0, %v455
      %v457 = vpop.f32.mrb[0].mxu0
      %v458 = vpop.f32.mrb[0].mxu0
      %v459 = vadd.f32 0.0, %v458
      %v460 = vpop.f32.mrb[0].mxu0
      %461 = vmatprep.mubr.bf16.mxu0 %v252
      %462 = vmatmul.mubr.bf16.gmra.mrb[0].mxu0 %v251
      %v463 = vpop.f32.mrb[0].mxu0
      %v464 = vadd.f32 0.0, %v463
      %v465 = vpop.f32.mrb[0].mxu0
      %v466 = vpop.f32.mrb[0].mxu0
      %v467 = vadd.f32 0.0, %v466
      %v468 = vpop.f32.mrb[0].mxu0
      %469 = vmatprep.mubr.bf16.mxu0 %v254
      %470 = vmatmul.mubr.bf16.gmra.mrb[0].mxu0 %v253
      %v471 = vpop.f32.mrb[0].mxu0
      %v472 = vadd.f32 0.0, %v471
      %v473 = vpop.f32.mrb[0].mxu0
      %v474 = vpop.f32.mrb[0].mxu0
      %v475 = vadd.f32 0.0, %v474
      %v476 = vpop.f32.mrb[0].mxu0
      %477 = vmatprep.mubr.bf16.mxu0 %v256
      %478 = vmatmul.mubr.bf16.gmra.mrb[0].mxu0 %v255
      %v479 = vpop.f32.mrb[0].mxu0
      %v480 = vadd.f32 0.0, %v479
      %v481 = vpop.f32.mrb[0].mxu0
      %v482 = vpop.f32.mrb[0].mxu0
      %v483 = vadd.f32 0.0, %v482
      %v484 = vpop.f32.mrb[0].mxu0
      %485 = vmatprep.mubr.bf16.mxu0 %v258
      %486 = vmatmul.mubr.bf16.gmra.mrb[0].mxu0 %v257
      %v487 = vpop.f32.mrb[0].mxu0
      %v488 = vadd.f32 0.0, %v487
      %v489 = vpop.f32.mrb[0].mxu0
      %v490 = vpop.f32.mrb[0].mxu0
      %v491 = vadd.f32 0.0, %v490
      %v492 = vpop.f32.mrb[0].mxu0
      %493 = vmatprep.mubr.bf16.mxu0 %v260
      %494 = vmatmul.mubr.bf16.gmra.mrb[0].mxu0 %v259
      %v495 = vpop.f32.mrb[0].mxu0
      %v496 = vadd.f32 0.0, %v495
      %v497 = vpop.f32.mrb[0].mxu0
      %v498 = vpop.f32.mrb[0].mxu0
      %v499 = vadd.f32 0.0, %v498
      %v500 = vpop.f32.mrb[0].mxu0
      %501 = vmatprep.mubr.bf16.mxu0 %v262
      %502 = vmatmul.mubr.bf16.gmra.mrb[0].mxu0 %v261
      %v503 = vpop.f32.mrb[0].mxu0
      %v504 = vadd.f32 0.0, %v503
      %v505 = vpop.f32.mrb[0].mxu0
      %v506 = vpop.f32.mrb[0].mxu0
      %v507 = vadd.f32 0.0, %v506
      %v508 = vpop.f32.mrb[0].mxu0
      %509 = vmatprep.mubr.bf16.mxu0 %v264
      %510 = vmatmul.mubr.bf16.gmra.mrb[0].mxu0 %v263
      %v511 = vpop.f32.mrb[0].mxu0
      %v512 = vadd.f32 0.0, %v511
      %v513 = vpop.f32.mrb[0].mxu0
      %v514 = vpop.f32.mrb[0].mxu0
      %v515 = vadd.f32 0.0, %v514
      %v516 = vpop.f32.mrb[0].mxu0
      %517 = vmatprep.mubr.bf16.mxu0 %v266
      %518 = vmatmul.mubr.bf16.gmra.mrb[0].mxu0 %v265
      %v519 = vpop.f32.mrb[0].mxu0
      %v520 = vadd.f32 0.0, %v519
      %v521 = vpop.f32.mrb[0].mxu0
      %v522 = vpop.f32.mrb[0].mxu0
      %v523 = vadd.f32 0.0, %v522
      %v524 = vpop.f32.mrb[0].mxu0
      %525 = vmatprep.mubr.bf16.mxu0 %v268
      %526 = vmatmul.mubr.bf16.gmra.mrb[0].mxu0 %v267
      %v527 = vpop.f32.mrb[0].mxu0
      %v528 = vadd.f32 0.0, %v527
      %v529 = vpop.f32.mrb[0].mxu0
      %v530 = vpop.f32.mrb[0].mxu0
      %v531 = vadd.f32 0.0, %v530
      %v532 = vpop.f32.mrb[0].mxu0
      %533 = vmatprep.mubr.bf16.mxu0 %v270
      %534 = vmatmul.mubr.bf16.gmra.mrb[0].mxu0 %v269
      %v535 = vpop.f32.mrb[0].mxu0
      %v536 = vadd.f32 0.0, %v535
      %v537 = vpop.f32.mrb[0].mxu0
      %v538 = vpop.f32.mrb[0].mxu0
      %v539 = vadd.f32 0.0, %v538
      %v540 = vpop.f32.mrb[0].mxu0
      %541 = vmatprep.mubr.bf16.mxu0 %v272
      %542 = vmatmul.mubr.bf16.gmra.mrb[0].mxu0 %v271
      %v543 = vpop.f32.mrb[0].mxu0
      %v544 = vadd.f32 0.0, %v543
      %v545 = vpop.f32.mrb[0].mxu0
      %v546 = vpop.f32.mrb[0].mxu0
      %v547 = vadd.f32 0.0, %v546
      %v548 = vpop.f32.mrb[0].mxu0
      %549 = vmatprep.mubr.bf16.mxu0 %v274
      %550 = vmatmul.mubr.bf16.gmra.mrb[0].mxu0 %v273
      %v551 = vpop.f32.mrb[0].mxu0
      %v552 = vadd.f32 0.0, %v551
      %v553 = vpop.f32.mrb[0].mxu0
      %v554 = vpop.f32.mrb[0].mxu0
      %v555 = vadd.f32 0.0, %v554
      %v556 = vpop.f32.mrb[0].mxu0
      %557 = vmatprep.mubr.bf16.mxu0 %v276
      %558 = vmatmul.mubr.bf16.gmra.mrb[0].mxu0 %v275
      %v559 = vpop.f32.mrb[0].mxu0
      %v560 = vadd.f32 0.0, %v559
      %v561 = vpop.f32.mrb[0].mxu0
      %v562 = vpop.f32.mrb[0].mxu0
      %v563 = vadd.f32 0.0, %v562
      %v564 = vpop.f32.mrb[0].mxu0
      %565 = vdwg.mxu0
      %566 = vst [vmem:[%s173] sm:$0xff] %v440
      %567 = vst [vmem:[%s173 + $0x8] sm:$0xff] %v443
      %568 = vst [vmem:[%s173 + $0x10] sm:$0xff] %v448
      %569 = vst [vmem:[%s173 + $0x18] sm:$0xff] %v451
      %570 = vst [vmem:[%s173 + $0x20] sm:$0xff] %v456
      %571 = vst [vmem:[%s173 + $0x28] sm:$0xff] %v459
      %572 = vst [vmem:[%s173 + $0x30] sm:$0xff] %v464
      %573 = vst [vmem:[%s173 + $0x38] sm:$0xff] %v467
      %574 = vst [vmem:[%s173 + $0x40] sm:$0xff] %v472
      %575 = vst [vmem:[%s173 + $0x48] sm:$0xff] %v475
      %576 = vst [vmem:[%s173 + $0x50] sm:$0xff] %v480
      %577 = vst [vmem:[%s173 + $0x58] sm:$0xff] %v483
      %578 = vst [vmem:[%s173 + $0x60] sm:$0xff] %v488
      %579 = vst [vmem:[%s173 + $0x68] sm:$0xff] %v491
      %580 = vst [vmem:[%s173 + $0x70] sm:$0xff] %v496
      %581 = vst [vmem:[%s173 + $0x78] sm:$0xff] %v499
      %582 = vst [vmem:[%s173 + $0x80] sm:$0xff] %v504
      %583 = vst [vmem:[%s173 + $0x88] sm:$0xff] %v507
      %584 = vst [vmem:[%s173 + $0x90] sm:$0xff] %v512
      %585 = vst [vmem:[%s173 + $0x98] sm:$0xff] %v515
      %586 = vst [vmem:[%s173 + $0xa0] sm:$0xff] %v520
      %587 = vst [vmem:[%s173 + $0xa8] sm:$0xff] %v523
      %588 = vst [vmem:[%s173 + $0xb0] sm:$0xff] %v528
      %589 = vst [vmem:[%s173 + $0xb8] sm:$0xff] %v531
      %590 = vst [vmem:[%s173 + $0xc0] sm:$0xff] %v536
      %591 = vst [vmem:[%s173 + $0xc8] sm:$0xff] %v539
      %592 = vst [vmem:[%s173 + $0xd0] sm:$0xff] %v544
      %593 = vst [vmem:[%s173 + $0xd8] sm:$0xff] %v547
      %594 = vst [vmem:[%s173 + $0xe0] sm:$0xff] %v552
      %595 = vst [vmem:[%s173 + $0xe8] sm:$0xff] %v555
      %596 = vst [vmem:[%s173 + $0xf0] sm:$0xff] %v560
      %597 = vst [vmem:[%s173 + $0xf8] sm:$0xff] %v563
      %v598 = vadd.f32 %v440, %v443
      %v599 = vadd.f32 %v598, %v448
      %v600 = vadd.f32 %v599, %v451
      %v601 = vadd.f32 %v600, %v456
      %v602 = vadd.f32 %v601, %v459
      %v603 = vadd.f32 %v602, %v464
      %v604 = vadd.f32 %v603, %v467
      %v605 = vadd.f32 %v604, %v472
      %v606 = vadd.f32 %v605, %v475
      %v607 = vadd.f32 %v606, %v480
      %v608 = vadd.f32 %v607, %v483
      %v609 = vadd.f32 %v608, %v488
      %v610 = vadd.f32 %v609, %v491
      %v611 = vadd.f32 %v610, %v496
      %v612 = vadd.f32 %v611, %v499
      %v613 = vadd.f32 %v612, %v504
      %v614 = vadd.f32 %v613, %v507
      %v615 = vadd.f32 %v614, %v512
      %v616 = vadd.f32 %v615, %v515
      %v617 = vadd.f32 %v616, %v520
      %v618 = vadd.f32 %v617, %v523
      %v619 = vadd.f32 %v618, %v528
      %v620 = vadd.f32 %v619, %v531
      %v621 = vadd.f32 %v620, %v536
      %v622 = vadd.f32 %v621, %v539
      %v623 = vadd.f32 %v622, %v544
      %v624 = vadd.f32 %v623, %v547
      %v625 = vadd.f32 %v624, %v552
      %v626 = vadd.f32 %v625, %v555
      %v627 = vadd.f32 %v626, %v560
      %v628 = vadd.f32 %v627, %v563
      %v629 = vrot.slane %v628, 4
      %v630 = vadd.f32 %v628, %v629
      %v631 = vrot.slane %v630, 2
      %v632 = vadd.f32 %v630, %v631
      %v633 = vrot.slane %v632, 1
      %v634 = vadd.f32 %v632, %v633
      %v635 = vmul.f32 %v440, %v440
      %v636 = vmul.f32 %v443, %v443
      %v637 = vmul.f32 %v448, %v448
      %v638 = vmul.f32 %v451, %v451
      %v639 = vmul.f32 %v456, %v456
      %v640 = vmul.f32 %v459, %v459
      %v641 = vmul.f32 %v464, %v464
      %v642 = vmul.f32 %v467, %v467
      %v643 = vmul.f32 %v472, %v472
      %v644 = vmul.f32 %v475, %v475
      %v645 = vmul.f32 %v480, %v480
      %v646 = vmul.f32 %v483, %v483
      %v647 = vmul.f32 %v488, %v488
      %v648 = vmul.f32 %v491, %v491
      %v649 = vmul.f32 %v496, %v496
      %v650 = vmul.f32 %v499, %v499
      %v651 = vmul.f32 %v504, %v504
      %v652 = vmul.f32 %v507, %v507
      %v653 = vmul.f32 %v512, %v512
      %v654 = vmul.f32 %v515, %v515
      %v655 = vmul.f32 %v520, %v520
      %v656 = vmul.f32 %v523, %v523
      %v657 = vmul.f32 %v528, %v528
      %v658 = vmul.f32 %v531, %v531
      %v659 = vmul.f32 %v536, %v536
      %v660 = vmul.f32 %v539, %v539
      %v661 = vmul.f32 %v544, %v544
      %v662 = vmul.f32 %v547, %v547
      %v663 = vmul.f32 %v552, %v552
      %v664 = vmul.f32 %v555, %v555
      %v665 = vmul.f32 %v560, %v560
      %v666 = vmul.f32 %v563, %v563
      %v667 = vadd.f32 %v635, %v636
      %v668 = vadd.f32 %v667, %v637
      %v669 = vadd.f32 %v668, %v638
      %v670 = vadd.f32 %v669, %v639
      %v671 = vadd.f32 %v670, %v640
      %v672 = vadd.f32 %v671, %v641
      %v673 = vadd.f32 %v672, %v642
      %v674 = vadd.f32 %v673, %v643
      %v675 = vadd.f32 %v674, %v644
      %v676 = vadd.f32 %v675, %v645
      %v677 = vadd.f32 %v676, %v646
      %v678 = vadd.f32 %v677, %v647
      %v679 = vadd.f32 %v678, %v648
      %v680 = vadd.f32 %v679, %v649
      %v681 = vadd.f32 %v680, %v650
      %v682 = vadd.f32 %v681, %v651
      %v683 = vadd.f32 %v682, %v652
      %v684 = vadd.f32 %v683, %v653
      %v685 = vadd.f32 %v684, %v654
      %v686 = vadd.f32 %v685, %v655
      %v687 = vadd.f32 %v686, %v656
      %v688 = vadd.f32 %v687, %v657
      %v689 = vadd.f32 %v688, %v658
      %v690 = vadd.f32 %v689, %v659
      %v691 = vadd.f32 %v690, %v660
      %v692 = vadd.f32 %v691, %v661
      %v693 = vadd.f32 %v692, %v662
      %v694 = vadd.f32 %v693, %v663
      %v695 = vadd.f32 %v694, %v664
      %v696 = vadd.f32 %v695, %v665
      %v697 = vadd.f32 %v696, %v666
      %v698 = vrot.slane %v697, 4
      %v699 = vadd.f32 %v697, %v698
      %v700 = vrot.slane %v699, 2
      %v701 = vadd.f32 %v699, %v700
      %v702 = vrot.slane %v701, 1
      %v703 = vadd.f32 %v701, %v702
      %vm704 = vcmask 1040384
      %v705 = vsel %vm704, %v634, %v703
      %vm706 = vcmask 1041408
      %v707 = vsel %vm706, %v705, 0.0
      %v708 = vld [vmem:[%s3] sm:$0xff]
      %v709 = vadd.f32 %v708, %v707
      %710 = vst [vmem:[%s3] sm:$0xff] %v709
      %s711 = smul.u32 32, %s15
      %p712 = scmp.lt.s32.totalorder %s711, 63
      %s713 = scalar_select %p712, %s711, 63
      %s714 = smul.addr %s713, 8
      %s715 = scalar_lea.vmem %s2, %s714
      // Predicated region
      $region33: #{mlp_forward.10} parent=27 // pred_check
        %p716 = pneg %p80
      $region34: #{mlp_forward.10} parent=27 // pred_check_branch
        %718 = sbr.rel (%p716) target = $region36
      $region35: #{mlp_forward.10} parent=27 // pred_region
        %s719 = smul.u32 32, %s15
      $region36: #{mlp_forward.10} parent=27 // pred_fallthru
        _
      // Predicated region
      $region37: #{mlp_forward.10} parent=27 // pred_check
        %p720 = pneg %p101
      $region38: #{mlp_forward.10} parent=27 // pred_check_branch
        %722 = sbr.rel (%p720) target = $region40
      $region39: #{mlp_forward.10} parent=27 // pred_region
        _
      $region40: #{mlp_forward.10} parent=27 // pred_fallthru
        _
      // Predicated region
      $region41: #{mlp_forward.10} parent=27 // pred_check
        %p723 = pneg %p101
      $region42: #{mlp_forward.10} parent=27 // pred_check_branch
        %725 = sbr.rel (%p723) target = $region44
      $region43: #{mlp_forward.10} parent=27 // pred_region
        _
      $region44: #{mlp_forward.10} parent=27 // pred_fallthru
        _
    $region28: #{mlp_forward.10} parent=5 // pred_fallthru
      _
    %p726 = scmp.le.s32.totalorder 2, %s10
    // Predicated region
    $region45: #{mlp_forward.10} parent=5 // pred_check
      %p727 = pneg %p726
    $region46: #{mlp_forward.10} parent=5 // pred_check_branch
      %729 = sbr.rel (%p727) target = $region48
    $region47: #{mlp_forward.10} parent=5 // pred_region
      %s730 = ssub.s32 %s10, 2
      // Predicated region
      $region49: #{mlp_forward.10} parent=47 // pred_check
        %p731 = pneg %p86
      $region50: #{mlp_forward.10} parent=47 // pred_check_branch
        %733 = sbr.rel (%p731) target = $region52
      $region51: #{mlp_forward.10} parent=47 // pred_region
        %s734 = smul.u32 32, %s16
        %p735 = scmp.lt.s32.totalorder %s734, 63
        %s736 = scalar_select %p735, %s734, 63
        %s737 = smul.addr %s736, 8
        %s738 = scalar_lea.vmem %s2, %s737
      $region52: #{mlp_forward.10} parent=47 // pred_fallthru
        _
    $region48: #{mlp_forward.10} parent=5 // pred_fallthru
      _
  $region6: #{mlp_forward.10} parent=0 // loop_footer
    %s14 = sadd.s32 1, %s10
  $region7: #{mlp_forward.10} parent=0 // loop_footer_branch
    %9 = sbr.rel target = $region3
  $region8: #{mlp_forward.10} parent=0 // loop_exit
    _

// kernel: mlp_forward.11
$region0: #{mlp_forward.11}
  #allocation0 [shape = 'u32[]', space=smem, size = 0x4, offset = 0x4, fixed_abs, tag = 'smem constant byte address 0x4 - core index']
  #allocation1 [shape = 'u32[144,128]{1,0:T(1,128)}', space=vmem, size = 0x12000, scoped, tag = 'internal scratch']
  %s0 = inlined_call_operand.vmem [shape: f32[512,128], index: 0, kind: input, shape index: {}]
  %s1 = inlined_call_operand.vmem [shape: f32[8,128], index: 1, kind: input, shape index: {}]
  %s2 = inlined_call_operand.vmem [shape: f32[1,128], index: 2, kind: input, shape index: {}]
  %s3 = inlined_call_operand.vmem [shape: f32[1,128], index: 3, kind: input, shape index: {}]
  %s4 = inlined_call_operand.vmem [shape: f32[512,128], index: 4, kind: output, shape index: {}]
  %s5 = sld [smem:[#allocation0]]
  $region49: #{mlp_forward.11} parent=0
    _
  %s7 = ssub.s32 1, %s5
  %s8 = scalar_select 0, %s7, %s5
  loop: start=0, step=1, limit=4
  $region2: #{mlp_forward.11} parent=0 // loop_pre_header
    _
  $region3: #{mlp_forward.11} parent=0 // loop_header
    %s10 = sphi 0, %s14
    %p11 = scmp.ge.s32.totalorder %s10, 4
    %s20 = sphi 0, %s22
    %s23 = sphi 0, %s20
    %s24 = sphi 0, %s23
    %s40 = sphi 0, %s24
    %s44 = sphi 0, %s44
    %s46 = sphi 0, %s44
    %s47 = sphi 0, %s46
    %s61 = sphi 0, %s47
    %s65 = sphi 0, %s65
    %s67 = sphi 0, %s65
    %s68 = sphi 0, %s67
    %s82 = sphi 0, %s68
    %s86 = sphi 0, %s86
    %s88 = sphi 0, %s86
    %s89 = sphi 0, %s88
    %s103 = sphi 0, %s89
    %s109 = sphi 0, %s111
    %s112 = sphi 0, %s109
    %s113 = sphi 0, %s112
    %s129 = sphi 0, %s113
  $region4: #{mlp_forward.11} parent=0 // loop_header_branch
    %13 = sbr.rel (%p11) target = $region8
  $region5: #{mlp_forward.11} parent=0 // loop_body
    %s15 = ssub.s32 %s10, 1
    %s16 = ssub.s32 %s10, 2
    %s17 = sadd.s32 %s10, 1
    %s18 = ssub.s32 %s10, %s17
    %p19 = scmp.eq.s32.totalorder %s18, 0
    %s21 = sadd.s32 %s20, 1
    %s22 = scalar_select %p19, %s20, %s21
    %p25 = pneg %p19
    %p26 = scmp.eq.s32.totalorder %s10, 1
    %p27 = por %p25, %p26
    %p28 = scmp.ne.s32.totalorder %s20, %s23
    %p29 = scmp.eq.s32.totalorder %s10, 0
    %p30 = por %p28, %p29
    %p31 = scmp.ne.s32.totalorder %s20, %s23
    %p32 = scmp.eq.s32.totalorder %s15, 1
    %p33 = por %p31, %p32
    %p34 = scmp.ne.s32.totalorder %s23, %s24
    %p35 = scmp.eq.s32.totalorder %s15, 0
    %p36 = por %p34, %p35
    %p37 = scmp.ne.s32.totalorder %s23, %s24
    %p38 = scmp.eq.s32.totalorder %s16, 1
    %p39 = por %p37, %p38
    %p41 = scmp.ne.s32.totalorder %s24, %s40
    %p42 = scmp.eq.s32.totalorder %s16, 0
    %p43 = por %p41, %p42
    %s45 = sadd.s32 %s44, 1
    %p48 = scmp.eq.s32.totalorder %s10, 1
    %p49 = scmp.ne.s32.totalorder %s44, %s46
    %p50 = scmp.eq.s32.totalorder %s10, 0
    %p51 = por %p49, %p50
    %p52 = scmp.ne.s32.totalorder %s44, %s46
    %p53 = scmp.eq.s32.totalorder %s15, 1
    %p54 = por %p52, %p53
    %p55 = scmp.ne.s32.totalorder %s46, %s47
    %p56 = scmp.eq.s32.totalorder %s15, 0
    %p57 = por %p55, %p56
    %p58 = scmp.ne.s32.totalorder %s46, %s47
    %p59 = scmp.eq.s32.totalorder %s16, 1
    %p60 = por %p58, %p59
    %p62 = scmp.ne.s32.totalorder %s47, %s61
    %p63 = scmp.eq.s32.totalorder %s16, 0
    %p64 = por %p62, %p63
    %s66 = sadd.s32 %s65, 1
    %p69 = scmp.eq.s32.totalorder %s10, 1
    %p70 = scmp.ne.s32.totalorder %s65, %s67
    %p71 = scmp.eq.s32.totalorder %s10, 0
    %p72 = por %p70, %p71
    %p73 = scmp.ne.s32.totalorder %s65, %s67
    %p74 = scmp.eq.s32.totalorder %s15, 1
    %p75 = por %p73, %p74
    %p76 = scmp.ne.s32.totalorder %s67, %s68
    %p77 = scmp.eq.s32.totalorder %s15, 0
    %p78 = por %p76, %p77
    %p79 = scmp.ne.s32.totalorder %s67, %s68
    %p80 = scmp.eq.s32.totalorder %s16, 1
    %p81 = por %p79, %p80
    %p83 = scmp.ne.s32.totalorder %s68, %s82
    %p84 = scmp.eq.s32.totalorder %s16, 0
    %p85 = por %p83, %p84
    %s87 = sadd.s32 %s86, 1
    %p90 = scmp.eq.s32.totalorder %s10, 1
    %p91 = scmp.ne.s32.totalorder %s86, %s88
    %p92 = scmp.eq.s32.totalorder %s10, 0
    %p93 = por %p91, %p92
    %p94 = scmp.ne.s32.totalorder %s86, %s88
    %p95 = scmp.eq.s32.totalorder %s15, 1
    %p96 = por %p94, %p95
    %p97 = scmp.ne.s32.totalorder %s88, %s89
    %p98 = scmp.eq.s32.totalorder %s15, 0
    %p99 = por %p97, %p98
    %p100 = scmp.ne.s32.totalorder %s88, %s89
    %p101 = scmp.eq.s32.totalorder %s16, 1
    %p102 = por %p100, %p101
    %p104 = scmp.ne.s32.totalorder %s89, %s103
    %p105 = scmp.eq.s32.totalorder %s16, 0
    %p106 = por %p104, %p105
    %s107 = ssub.s32 %s10, %s17
    %p108 = scmp.eq.s32.totalorder %s107, 0
    %s110 = sadd.s32 %s109, 1
    %s111 = scalar_select %p108, %s109, %s110
    %p114 = pneg %p108
    %p115 = scmp.eq.s32.totalorder %s10, 1
    %p116 = por %p114, %p115
    %p117 = scmp.ne.s32.totalorder %s109, %s112
    %p118 = scmp.eq.s32.totalorder %s10, 0
    %p119 = por %p117, %p118
    %p120 = scmp.ne.s32.totalorder %s109, %s112
    %p121 = scmp.eq.s32.totalorder %s15, 1
    %p122 = por %p120, %p121
    %p123 = scmp.ne.s32.totalorder %s112, %s113
    %p124 = scmp.eq.s32.totalorder %s15, 0
    %p125 = por %p123, %p124
    %p126 = scmp.ne.s32.totalorder %s112, %s113
    %p127 = scmp.eq.s32.totalorder %s16, 1
    %p128 = por %p126, %p127
    %p130 = scmp.ne.s32.totalorder %s113, %s129
    %p131 = scmp.eq.s32.totalorder %s16, 0
    %p132 = por %p130, %p131
    %p133 = scmp.le.s32.totalorder 1, %s10
    %p134 = scmp.lt.s32.totalorder %s10, 3
    %p135 = pnand %p133, %p134
    %p136 = pneg %p135
    // Predicated region
    $region9: #{mlp_forward.11} parent=5 // pred_check
      _
    $region10: #{mlp_forward.11} parent=5 // pred_check_branch
      %138 = sbr.rel (%p135) target = $region12
    $region11: #{mlp_forward.11} parent=5 // pred_region
      %s139 = ssub.s32 %s10, 1
      // Predicated region
      $region13: #{mlp_forward.11} parent=11 // pred_check
        %p140 = pneg %p57
      $region14: #{mlp_forward.11} parent=11 // pred_check_branch
        %142 = sbr.rel (%p140) target = $region16
      $region15: #{mlp_forward.11} parent=11 // pred_region
        _
      $region16: #{mlp_forward.11} parent=11 // pred_fallthru
        _
      // Predicated region
      $region17: #{mlp_forward.11} parent=11 // pred_check
        %p143 = pneg %p78
      $region18: #{mlp_forward.11} parent=11 // pred_check_branch
        %145 = sbr.rel (%p143) target = $region20
      $region19: #{mlp_forward.11} parent=11 // pred_region
        _
      $region20: #{mlp_forward.11} parent=11 // pred_fallthru
        _
      // Predicated region
      $region21: #{mlp_forward.11} parent=11 // pred_check
        %p146 = pneg %p99
      $region22: #{mlp_forward.11} parent=11 // pred_check_branch
        %148 = sbr.rel (%p146) target = $region24
      $region23: #{mlp_forward.11} parent=11 // pred_region
        _
      $region24: #{mlp_forward.11} parent=11 // pred_fallthru
        _
    $region12: #{mlp_forward.11} parent=5 // pred_fallthru
      _
    %p149 = scmp.lt.s32.totalorder %s10, 2
    // Predicated region
    $region25: #{mlp_forward.11} parent=5 // pred_check
      %p150 = pneg %p149
    $region26: #{mlp_forward.11} parent=5 // pred_check_branch
      %152 = sbr.rel (%p150) target = $region28
    $region27: #{mlp_forward.11} parent=5 // pred_region
      // Predicated region
      $region29: #{mlp_forward.11} parent=27 // pred_check
        %p153 = pneg %p30
      $region30: #{mlp_forward.11} parent=27 // pred_check_branch
        %155 = sbr.rel (%p153) target = $region32
      $region31: #{mlp_forward.11} parent=27 // pred_region
        %s156 = smul.u32 32, %s10
        %p157 = scmp.lt.s32.totalorder %s156, 63
        %s158 = scalar_select %p157, %s156, 63
        %s159 = smul.addr %s158, 8
        %s160 = scalar_lea.vmem %s0, %s159
        %s161 = smul.u32 32, %s10
      $region32: #{mlp_forward.11} parent=27 // pred_fallthru
        _
    $region28: #{mlp_forward.11} parent=5 // pred_fallthru
      _
    %p162 = scmp.le.s32.totalorder 1, %s10
    %p163 = scmp.lt.s32.totalorder %s10, 3
    %p164 = pnand %p162, %p163
    %p165 = pneg %p164
    // Predicated region
    $region33: #{mlp_forward.11} parent=5 // pred_check
      _
    $region34: #{mlp_forward.11} parent=5 // pred_check_branch
      %167 = sbr.rel (%p164) target = $region36
    $region35: #{mlp_forward.11} parent=5 // pred_region
      %s168 = ssub.s32 %s10, 1
      %s169 = smul.u32 32, %s15
      %p170 = scmp.lt.s32.totalorder %s169, 63
      %s171 = scalar_select %p170, %s169, 63
      %s172 = smul.addr %s171, 8
      %s173 = scalar_lea.vmem %s0, %s172
      %p174 = pneg %p36
      %p175 = pneg %p33
      %p176 = pneg %p57
      %p177 = pneg %p54
      %p178 = pneg %p78
      %p179 = pneg %p75
      %p180 = pneg %p99
      %p181 = pneg %p96
      %p182 = pneg %p125
      %p183 = pneg %p122
      %s184 = smul.u32 32, %s15
      %p185 = scmp.lt.s32.totalorder %s184, 63
      %s186 = scalar_select %p185, %s184, 63
      %s187 = smul.addr %s186, 8
      %s188 = scalar_lea.vmem %s4, %s187
      %s189 = smul.u32 32, %s15
      %p190 = scmp.lt.s32.totalorder %s189, 63
      %s191 = scalar_select %p190, %s189, 63
      %s192 = smul.addr %s191, 8
      %s193 = scalar_lea.vmem %s0, %s192
      %s194 = smul.u32 32, %s15
      %s195 = smul.u32 32, %s15
      %p196 = scmp.lt.s32.totalorder %s195, 63
      %s197 = scalar_select %p196, %s195, 63
      %s198 = smul.addr %s197, 8
      %s199 = scalar_lea.vmem %s4, %s198
      %s200 = smul.u32 32, %s15
      %v201 = vld [vmem:[%s1] sm:$0x1]
      %v202 = vmul.f32 %v201, 0.002
      %v203 = vld [vmem:[%s1 + $0x1] sm:$0x1]
      %v204 = vmul.f32 %v203, 0.002
      %v205 = vmul.f32 %v202, %v202
      %v206 = vsub.f32 %v204, %v205
      %v207 = vadd.f32 %v206, 1e-05
      %v208 = vrsqrt.pop %v207
      %v209 = vld [vmem:[%s193] sm:$0xff]
      %v210 = vld [vmem:[%s193 + $0x8] sm:$0xff]
      %v211 = vld [vmem:[%s193 + $0x10] sm:$0xff]
      %v212 = vld [vmem:[%s193 + $0x18] sm:$0xff]
      %v213 = vld [vmem:[%s193 + $0x20] sm:$0xff]
      %v214 = vld [vmem:[%s193 + $0x28] sm:$0xff]
      %v215 = vld [vmem:[%s193 + $0x30] sm:$0xff]
      %v216 = vld [vmem:[%s193 + $0x38] sm:$0xff]
      %v217 = vld [vmem:[%s193 + $0x40] sm:$0xff]
      %v218 = vld [vmem:[%s193 + $0x48] sm:$0xff]
      %v219 = vld [vmem:[%s193 + $0x50] sm:$0xff]
      %v220 = vld [vmem:[%s193 + $0x58] sm:$0xff]
      %v221 = vld [vmem:[%s193 + $0x60] sm:$0xff]
      %v222 = vld [vmem:[%s193 + $0x68] sm:$0xff]
      %v223 = vld [vmem:[%s193 + $0x70] sm:$0xff]
      %v224 = vld [vmem:[%s193 + $0x78] sm:$0xff]
      %v225 = vld [vmem:[%s193 + $0x80] sm:$0xff]
      %v226 = vld [vmem:[%s193 + $0x88] sm:$0xff]
      %v227 = vld [vmem:[%s193 + $0x90] sm:$0xff]
      %v228 = vld [vmem:[%s193 + $0x98] sm:$0xff]
      %v229 = vld [vmem:[%s193 + $0xa0] sm:$0xff]
      %v230 = vld [vmem:[%s193 + $0xa8] sm:$0xff]
      %v231 = vld [vmem:[%s193 + $0xb0] sm:$0xff]
      %v232 = vld [vmem:[%s193 + $0xb8] sm:$0xff]
      %v233 = vld [vmem:[%s193 + $0xc0] sm:$0xff]
      %v234 = vld [vmem:[%s193 + $0xc8] sm:$0xff]
      %v235 = vld [vmem:[%s193 + $0xd0] sm:$0xff]
      %v236 = vld [vmem:[%s193 + $0xd8] sm:$0xff]
      %v237 = vld [vmem:[%s193 + $0xe0] sm:$0xff]
      %v238 = vld [vmem:[%s193 + $0xe8] sm:$0xff]
      %v239 = vld [vmem:[%s193 + $0xf0] sm:$0xff]
      %v240 = vld [vmem:[%s193 + $0xf8] sm:$0xff]
      %v241 = vlaneseq
      %v242 = vshrl.u32 %v241, 7
      %v243 = vsub.s32 0, %v242
      %v244 = vrot.slane %v202, %v243
      %v245 = vsub.f32 %v209, %v244
      %v246 = vsub.f32 %v210, %v244
      %v247 = vsub.f32 %v211, %v244
      %v248 = vsub.f32 %v212, %v244
      %v249 = vsub.f32 %v213, %v244
      %v250 = vsub.f32 %v214, %v244
      %v251 = vsub.f32 %v215, %v244
      %v252 = vsub.f32 %v216, %v244
      %v253 = vsub.f32 %v217, %v244
      %v254 = vsub.f32 %v218, %v244
      %v255 = vsub.f32 %v219, %v244
      %v256 = vsub.f32 %v220, %v244
      %v257 = vsub.f32 %v221, %v244
      %v258 = vsub.f32 %v222, %v244
      %v259 = vsub.f32 %v223, %v244
      %v260 = vsub.f32 %v224, %v244
      %v261 = vsub.f32 %v225, %v244
      %v262 = vsub.f32 %v226, %v244
      %v263 = vsub.f32 %v227, %v244
      %v264 = vsub.f32 %v228, %v244
      %v265 = vsub.f32 %v229, %v244
      %v266 = vsub.f32 %v230, %v244
      %v267 = vsub.f32 %v231, %v244
      %v268 = vsub.f32 %v232, %v244
      %v269 = vsub.f32 %v233, %v244
      %v270 = vsub.f32 %v234, %v244
      %v271 = vsub.f32 %v235, %v244
      %v272 = vsub.f32 %v236, %v244
      %v273 = vsub.f32 %v237, %v244
      %v274 = vsub.f32 %v238, %v244
      %v275 = vsub.f32 %v239, %v244
      %v276 = vsub.f32 %v240, %v244
      %v277 = vlaneseq
      %v278 = vshrl.u32 %v277, 7
      %v279 = vsub.s32 0, %v278
      %v280 = vrot.slane %v208, %v279
      %v281 = vmul.f32 %v245, %v280
      %v282 = vmul.f32 %v246, %v280
      %v283 = vmul.f32 %v247, %v280
      %v284 = vmul.f32 %v248, %v280
      %v285 = vmul.f32 %v249, %v280
      %v286 = vmul.f32 %v250, %v280
      %v287 = vmul.f32 %v251, %v280
      %v288 = vmul.f32 %v252, %v280
      %v289 = vmul.f32 %v253, %v280
      %v290 = vmul.f32 %v254, %v280
      %v291 = vmul.f32 %v255, %v280
      %v292 = vmul.f32 %v256, %v280
      %v293 = vmul.f32 %v257, %v280
      %v294 = vmul.f32 %v258, %v280
      %v295 = vmul.f32 %v259, %v280
      %v296 = vmul.f32 %v260, %v280
      %v297 = vmul.f32 %v261, %v280
      %v298 = vmul.f32 %v262, %v280
      %v299 = vmul.f32 %v263, %v280
      %v300 = vmul.f32 %v264, %v280
      %v301 = vmul.f32 %v265, %v280
      %v302 = vmul.f32 %v266, %v280
      %v303 = vmul.f32 %v267, %v280
      %v304 = vmul.f32 %v268, %v280
      %v305 = vmul.f32 %v269, %v280
      %v306 = vmul.f32 %v270, %v280
      %v307 = vmul.f32 %v271, %v280
      %v308 = vmul.f32 %v272, %v280
      %v309 = vmul.f32 %v273, %v280
      %v310 = vmul.f32 %v274, %v280
      %v311 = vmul.f32 %v275, %v280
      %v312 = vmul.f32 %v276, %v280
      %v313 = vld [vmem:[%s2] sm:$0x1]
      %v315 = vlaneseq
      %v316 = vshrl.u32 %v315, 7
      %v317 = vsub.s32 0, %v316
      %v318 = vrot.slane %v313, %v317
      %v320 = vmul.f32 %v281, %v318
      %v321 = vmul.f32 %v282, %v318
      %v322 = vmul.f32 %v283, %v318
      %v323 = vmul.f32 %v284, %v318
      %v324 = vmul.f32 %v285, %v318
      %v325 = vmul.f32 %v286, %v318
      %v326 = vmul.f32 %v287, %v318
      %v327 = vmul.f32 %v288, %v318
      %v328 = vmul.f32 %v289, %v318
      %v329 = vmul.f32 %v290, %v318
      %v330 = vmul.f32 %v291, %v318
      %v331 = vmul.f32 %v292, %v318
      %v332 = vmul.f32 %v293, %v318
      %v333 = vmul.f32 %v294, %v318
      %v334 = vmul.f32 %v295, %v318
      %v335 = vmul.f32 %v296, %v318
      %v336 = vmul.f32 %v297, %v318
      %v337 = vmul.f32 %v298, %v318
      %v338 = vmul.f32 %v299, %v318
      %v339 = vmul.f32 %v300, %v318
      %v340 = vmul.f32 %v301, %v318
      %v341 = vmul.f32 %v302, %v318
      %v342 = vmul.f32 %v303, %v318
      %v343 = vmul.f32 %v304, %v318
      %v344 = vmul.f32 %v305, %v318
      %v345 = vmul.f32 %v306, %v318
      %v346 = vmul.f32 %v307, %v318
      %v347 = vmul.f32 %v308, %v318
      %v348 = vmul.f32 %v309, %v318
      %v349 = vmul.f32 %v310, %v318
      %v350 = vmul.f32 %v311, %v318
      %v351 = vmul.f32 %v312, %v318
      %v352 = vld [vmem:[%s3] sm:$0x1]
      %v354 = vlaneseq
      %v355 = vshrl.u32 %v354, 7
      %v356 = vsub.s32 0, %v355
      %v357 = vrot.slane %v352, %v356
      %v359 = vadd.f32 %v320, %v357
      %v360 = vadd.f32 %v321, %v357
      %v361 = vadd.f32 %v322, %v357
      %v362 = vadd.f32 %v323, %v357
      %v363 = vadd.f32 %v324, %v357
      %v364 = vadd.f32 %v325, %v357
      %v365 = vadd.f32 %v326, %v357
      %v366 = vadd.f32 %v327, %v357
      %v367 = vadd.f32 %v328, %v357
      %v368 = vadd.f32 %v329, %v357
      %v369 = vadd.f32 %v330, %v357
      %v370 = vadd.f32 %v331, %v357
      %v371 = vadd.f32 %v332, %v357
      %v372 = vadd.f32 %v333, %v357
      %v373 = vadd.f32 %v334, %v357
      %v374 = vadd.f32 %v335, %v357
      %v375 = vadd.f32 %v336, %v357
      %v376 = vadd.f32 %v337, %v357
      %v377 = vadd.f32 %v338, %v357
      %v378 = vadd.f32 %v339, %v357
      %v379 = vadd.f32 %v340, %v357
      %v380 = vadd.f32 %v341, %v357
      %v381 = vadd.f32 %v342, %v357
      %v382 = vadd.f32 %v343, %v357
      %v383 = vadd.f32 %v344, %v357
      %v384 = vadd.f32 %v345, %v357
      %v385 = vadd.f32 %v346, %v357
      %v386 = vadd.f32 %v347, %v357
      %v387 = vadd.f32 %v348, %v357
      %v388 = vadd.f32 %v349, %v357
      %v389 = vadd.f32 %v350, %v357
      %v390 = vadd.f32 %v351, %v357
      %vm391 = vcmp.gt.f32.partialorder %v359, 0.0
      %vm392 = vcmp.gt.f32.partialorder %v360, 0.0
      %vm393 = vcmp.gt.f32.partialorder %v361, 0.0
      %vm394 = vcmp.gt.f32.partialorder %v362, 0.0
      %vm395 = vcmp.gt.f32.partialorder %v363, 0.0
      %vm396 = vcmp.gt.f32.partialorder %v364, 0.0
      %vm397 = vcmp.gt.f32.partialorder %v365, 0.0
      %vm398 = vcmp.gt.f32.partialorder %v366, 0.0
      %vm399 = vcmp.gt.f32.partialorder %v367, 0.0
      %vm400 = vcmp.gt.f32.partialorder %v368, 0.0
      %vm401 = vcmp.gt.f32.partialorder %v369, 0.0
      %vm402 = vcmp.gt.f32.partialorder %v370, 0.0
      %vm403 = vcmp.gt.f32.partialorder %v371, 0.0
      %vm404 = vcmp.gt.f32.partialorder %v372, 0.0
      %vm405 = vcmp.gt.f32.partialorder %v373, 0.0
      %vm406 = vcmp.gt.f32.partialorder %v374, 0.0
      %vm407 = vcmp.gt.f32.partialorder %v375, 0.0
      %vm408 = vcmp.gt.f32.partialorder %v376, 0.0
      %vm409 = vcmp.gt.f32.partialorder %v377, 0.0
      %vm410 = vcmp.gt.f32.partialorder %v378, 0.0
      %vm411 = vcmp.gt.f32.partialorder %v379, 0.0
      %vm412 = vcmp.gt.f32.partialorder %v380, 0.0
      %vm413 = vcmp.gt.f32.partialorder %v381, 0.0
      %vm414 = vcmp.gt.f32.partialorder %v382, 0.0
      %vm415 = vcmp.gt.f32.partialorder %v383, 0.0
      %vm416 = vcmp.gt.f32.partialorder %v384, 0.0
      %vm417 = vcmp.gt.f32.partialorder %v385, 0.0
      %vm418 = vcmp.gt.f32.partialorder %v386, 0.0
      %vm419 = vcmp.gt.f32.partialorder %v387, 0.0
      %vm420 = vcmp.gt.f32.partialorder %v388, 0.0
      %vm421 = vcmp.gt.f32.partialorder %v389, 0.0
      %vm422 = vcmp.gt.f32.partialorder %v390, 0.0
      %v423 = vmul.f32 %v359, 1.442695
      %v424 = vpow.pop %v423
      %v425 = vmul.f32 %v360, 1.442695
      %v426 = vpow.pop %v425
      %v427 = vmul.f32 %v361, 1.442695
      %v428 = vpow.pop %v427
      %v429 = vmul.f32 %v362, 1.442695
      %v430 = vpow.pop %v429
      %v431 = vmul.f32 %v363, 1.442695
      %v432 = vpow.pop %v431
      %v433 = vmul.f32 %v364, 1.442695
      %v434 = vpow.pop %v433
      %v435 = vmul.f32 %v365, 1.442695
      %v436 = vpow.pop %v435
      %v437 = vmul.f32 %v366, 1.442695
      %v438 = vpow.pop %v437
      %v439 = vmul.f32 %v367, 1.442695
      %v440 = vpow.pop %v439
      %v441 = vmul.f32 %v368, 1.442695
      %v442 = vpow.pop %v441
      %v443 = vmul.f32 %v369, 1.442695
      %v444 = vpow.pop %v443
      %v445 = vmul.f32 %v370, 1.442695
      %v446 = vpow.pop %v445
      %v447 = vmul.f32 %v371, 1.442695
      %v448 = vpow.pop %v447
      %v449 = vmul.f32 %v372, 1.442695
      %v450 = vpow.pop %v449
      %v451 = vmul.f32 %v373, 1.442695
      %v452 = vpow.pop %v451
      %v453 = vmul.f32 %v374, 1.442695
      %v454 = vpow.pop %v453
      %v455 = vmul.f32 %v375, 1.442695
      %v456 = vpow.pop %v455
      %v457 = vmul.f32 %v376, 1.442695
      %v458 = vpow.pop %v457
      %v459 = vmul.f32 %v377, 1.442695
      %v460 = vpow.pop %v459
      %v461 = vmul.f32 %v378, 1.442695
      %v462 = vpow.pop %v461
      %v463 = vmul.f32 %v379, 1.442695
      %v464 = vpow.pop %v463
      %v465 = vmul.f32 %v380, 1.442695
      %v466 = vpow.pop %v465
      %v467 = vmul.f32 %v381, 1.442695
      %v468 = vpow.pop %v467
      %v469 = vmul.f32 %v382, 1.442695
      %v470 = vpow.pop %v469
      %v471 = vmul.f32 %v383, 1.442695
      %v472 = vpow.pop %v471
      %v473 = vmul.f32 %v384, 1.442695
      %v474 = vpow.pop %v473
      %v475 = vmul.f32 %v385, 1.442695
      %v476 = vpow.pop %v475
      %v477 = vmul.f32 %v386, 1.442695
      %v478 = vpow.pop %v477
      %v479 = vmul.f32 %v387, 1.442695
      %v480 = vpow.pop %v479
      %v481 = vmul.f32 %v388, 1.442695
      %v482 = vpow.pop %v481
      %v483 = vmul.f32 %v389, 1.442695
      %v484 = vpow.pop %v483
      %v485 = vmul.f32 %v390, 1.442695
      %v486 = vpow.pop %v485
      %v487 = vsub.f32 %v424, 1.0
      %v488 = vsub.f32 %v426, 1.0
      %v489 = vsub.f32 %v428, 1.0
      %v490 = vsub.f32 %v430, 1.0
      %v491 = vsub.f32 %v432, 1.0
      %v492 = vsub.f32 %v434, 1.0
      %v493 = vsub.f32 %v436, 1.0
      %v494 = vsub.f32 %v438, 1.0
      %v495 = vsub.f32 %v440, 1.0
      %v496 = vsub.f32 %v442, 1.0
      %v497 = vsub.f32 %v444, 1.0
      %v498 = vsub.f32 %v446, 1.0
      %v499 = vsub.f32 %v448, 1.0
      %v500 = vsub.f32 %v450, 1.0
      %v501 = vsub.f32 %v452, 1.0
      %v502 = vsub.f32 %v454, 1.0
      %v503 = vsub.f32 %v456, 1.0
      %v504 = vsub.f32 %v458, 1.0
      %v505 = vsub.f32 %v460, 1.0
      %v506 = vsub.f32 %v462, 1.0
      %v507 = vsub.f32 %v464, 1.0
      %v508 = vsub.f32 %v466, 1.0
      %v509 = vsub.f32 %v468, 1.0
      %v510 = vsub.f32 %v470, 1.0
      %v511 = vsub.f32 %v472, 1.0
      %v512 = vsub.f32 %v474, 1.0
      %v513 = vsub.f32 %v476, 1.0
      %v514 = vsub.f32 %v478, 1.0
      %v515 = vsub.f32 %v480, 1.0
      %v516 = vsub.f32 %v482, 1.0
      %v517 = vsub.f32 %v484, 1.0
      %v518 = vsub.f32 %v486, 1.0
      %v519 = vsel %vm391, %v359, %v487
      %v520 = vsel %vm392, %v360, %v488
      %v521 = vsel %vm393, %v361, %v489
      %v522 = vsel %vm394, %v362, %v490
      %v523 = vsel %vm395, %v363, %v491
      %v524 = vsel %vm396, %v364, %v492
      %v525 = vsel %vm397, %v365, %v493
      %v526 = vsel %vm398, %v366, %v494
      %v527 = vsel %vm399, %v367, %v495
      %v528 = vsel %vm400, %v368, %v496
      %v529 = vsel %vm401, %v369, %v497
      %v530 = vsel %vm402, %v370, %v498
      %v531 = vsel %vm403, %v371, %v499
      %v532 = vsel %vm404, %v372, %v500
      %v533 = vsel %vm405, %v373, %v501
      %v534 = vsel %vm406, %v374, %v502
      %v535 = vsel %vm407, %v375, %v503
      %v536 = vsel %vm408, %v376, %v504
      %v537 = vsel %vm409, %v377, %v505
      %v538 = vsel %vm410, %v378, %v506
      %v539 = vsel %vm411, %v379, %v507
      %v540 = vsel %vm412, %v380, %v508
      %v541 = vsel %vm413, %v381, %v509
      %v542 = vsel %vm414, %v382, %v510
      %v543 = vsel %vm415, %v383, %v511
      %v544 = vsel %vm416, %v384, %v512
      %v545 = vsel %vm417, %v385, %v513
      %v546 = vsel %vm418, %v386, %v514
      %v547 = vsel %vm419, %v387, %v515
      %v548 = vsel %vm420, %v388, %v516
      %v549 = vsel %vm421, %v389, %v517
      %v550 = vsel %vm422, %v390, %v518
      %s551 = smul.u32 %s15, 256
      %v552 = vlaneseq
      %v553 = vshrl.u32 %v552, 7
      %v554 = vadd.s32 %v553, 8
      %v555 = vadd.s32 %v553, 16
      %v556 = vadd.s32 %v553, 24
      %v557 = vadd.s32 %v553, 32
      %v558 = vadd.s32 %v553, 40
      %v559 = vadd.s32 %v553, 48
      %v560 = vadd.s32 %v553, 56
      %v561 = vadd.s32 %v553, 64
      %v562 = vadd.s32 %v553, 72
      %v563 = vadd.s32 %v553, 80
      %v564 = vadd.s32 %v553, 88
      %v565 = vadd.s32 %v553, 96
      %v566 = vadd.s32 %v553, 104
      %v567 = vadd.s32 %v553, 112
      %v568 = vadd.s32 %v553, 120
      %v569 = vadd.s32 %v553, 128
      %v570 = vadd.s32 %v553, 136
      %v571 = vadd.s32 %v553, 144
      %v572 = vadd.s32 %v553, 152
      %v573 = vadd.s32 %v553, 160
      %v574 = vadd.s32 %v553, 168
      %v575 = vadd.s32 %v553, 176
      %v576 = vadd.s32 %v553, 184
      %v577 = vadd.s32 %v553, 192
      %v578 = vadd.s32 %v553, 200
      %v579 = vadd.s32 %v553, 208
      %v580 = vadd.s32 %v553, 216
      %v581 = vadd.s32 %v553, 224
      %v582 = vadd.s32 %v553, 232
      %v583 = vadd.s32 %v553, 240
      %v584 = vadd.s32 %v553, 248
      %v585 = vstv %s551
      %v586 = vadd.s32 %v585, %v553
      %v587 = vadd.s32 %v585, %v554
      %v588 = vadd.s32 %v585, %v555
      %v589 = vadd.s32 %v585, %v556
      %v590 = vadd.s32 %v585, %v557
      %v591 = vadd.s32 %v585, %v558
      %v592 = vadd.s32 %v585, %v559
      %v593 = vadd.s32 %v585, %v560
      %v594 = vadd.s32 %v585, %v561
      %v595 = vadd.s32 %v585, %v562
      %v596 = vadd.s32 %v585, %v563
      %v597 = vadd.s32 %v585, %v564
      %v598 = vadd.s32 %v585, %v565
      %v599 = vadd.s32 %v585, %v566
      %v600 = vadd.s32 %v585, %v567
      %v601 = vadd.s32 %v585, %v568
      %v602 = vadd.s32 %v585, %v569
      %v603 = vadd.s32 %v585, %v570
      %v604 = vadd.s32 %v585, %v571
      %v605 = vadd.s32 %v585, %v572
      %v606 = vadd.s32 %v585, %v573
      %v607 = vadd.s32 %v585, %v574
      %v608 = vadd.s32 %v585, %v575
      %v609 = vadd.s32 %v585, %v576
      %v610 = vadd.s32 %v585, %v577
      %v611 = vadd.s32 %v585, %v578
      %v612 = vadd.s32 %v585, %v579
      %v613 = vadd.s32 %v585, %v580
      %v614 = vadd.s32 %v585, %v581
      %v615 = vadd.s32 %v585, %v582
      %v616 = vadd.s32 %v585, %v583
      %v617 = vadd.s32 %v585, %v584
      %vm618 = vcmp.lt.s32.totalorder %v586, 500
      %vm619 = vcmp.lt.s32.totalorder %v587, 500
      %vm620 = vcmp.lt.s32.totalorder %v588, 500
      %vm621 = vcmp.lt.s32.totalorder %v589, 500
      %vm622 = vcmp.lt.s32.totalorder %v590, 500
      %vm623 = vcmp.lt.s32.totalorder %v591, 500
      %vm624 = vcmp.lt.s32.totalorder %v592, 500
      %vm625 = vcmp.lt.s32.totalorder %v593, 500
      %vm626 = vcmp.lt.s32.totalorder %v594, 500
      %vm627 = vcmp.lt.s32.totalorder %v595, 500
      %vm628 = vcmp.lt.s32.totalorder %v596, 500
      %vm629 = vcmp.lt.s32.totalorder %v597, 500
      %vm630 = vcmp.lt.s32.totalorder %v598, 500
      %vm631 = vcmp.lt.s32.totalorder %v599, 500
      %vm632 = vcmp.lt.s32.totalorder %v600, 500
      %vm633 = vcmp.lt.s32.totalorder %v601, 500
      %vm634 = vcmp.lt.s32.totalorder %v602, 500
      %vm635 = vcmp.lt.s32.totalorder %v603, 500
      %vm636 = vcmp.lt.s32.totalorder %v604, 500
      %vm637 = vcmp.lt.s32.totalorder %v605, 500
      %vm638 = vcmp.lt.s32.totalorder %v606, 500
      %vm639 = vcmp.lt.s32.totalorder %v607, 500
      %vm640 = vcmp.lt.s32.totalorder %v608, 500
      %vm641 = vcmp.lt.s32.totalorder %v609, 500
      %vm642 = vcmp.lt.s32.totalorder %v610, 500
      %vm643 = vcmp.lt.s32.totalorder %v611, 500
      %vm644 = vcmp.lt.s32.totalorder %v612, 500
      %vm645 = vcmp.lt.s32.totalorder %v613, 500
      %vm646 = vcmp.lt.s32.totalorder %v614, 500
      %vm647 = vcmp.lt.s32.totalorder %v615, 500
      %vm648 = vcmp.lt.s32.totalorder %v616, 500
      %vm649 = vcmp.lt.s32.totalorder %v617, 500
      %v650 = vsel %vm618, %v519, 0.0
      %v651 = vsel %vm619, %v520, 0.0
      %v652 = vsel %vm620, %v521, 0.0
      %v653 = vsel %vm621, %v522, 0.0
      %v654 = vsel %vm622, %v523, 0.0
      %v655 = vsel %vm623, %v524, 0.0
      %v656 = vsel %vm624, %v525, 0.0
      %v657 = vsel %vm625, %v526, 0.0
      %v658 = vsel %vm626, %v527, 0.0
      %v659 = vsel %vm627, %v528, 0.0
      %v660 = vsel %vm628, %v529, 0.0
      %v661 = vsel %vm629, %v530, 0.0
      %v662 = vsel %vm630, %v531, 0.0
      %v663 = vsel %vm631, %v532, 0.0
      %v664 = vsel %vm632, %v533, 0.0
      %v665 = vsel %vm633, %v534, 0.0
      %v666 = vsel %vm634, %v535, 0.0
      %v667 = vsel %vm635, %v536, 0.0
      %v668 = vsel %vm636, %v537, 0.0
      %v669 = vsel %vm637, %v538, 0.0
      %v670 = vsel %vm638, %v539, 0.0
      %v671 = vsel %vm639, %v540, 0.0
      %v672 = vsel %vm640, %v541, 0.0
      %v673 = vsel %vm641, %v542, 0.0
      %v674 = vsel %vm642, %v543, 0.0
      %v675 = vsel %vm643, %v544, 0.0
      %v676 = vsel %vm644, %v545, 0.0
      %v677 = vsel %vm645, %v546, 0.0
      %v678 = vsel %vm646, %v547, 0.0
      %v679 = vsel %vm647, %v548, 0.0
      %v680 = vsel %vm648, %v549, 0.0
      %v681 = vsel %vm649, %v550, 0.0
      %682 = vst [vmem:[%s199] sm:$0xff] %v650
      %683 = vst [vmem:[%s199 + $0x8] sm:$0xff] %v651
      %684 = vst [vmem:[%s199 + $0x10] sm:$0xff] %v652
      %685 = vst [vmem:[%s199 + $0x18] sm:$0xff] %v653
      %686 = vst [vmem:[%s199 + $0x20] sm:$0xff] %v654
      %687 = vst [vmem:[%s199 + $0x28] sm:$0xff] %v655
      %688 = vst [vmem:[%s199 + $0x30] sm:$0xff] %v656
      %689 = vst [vmem:[%s199 + $0x38] sm:$0xff] %v657
      %690 = vst [vmem:[%s199 + $0x40] sm:$0xff] %v658
      %691 = vst [vmem:[%s199 + $0x48] sm:$0xff] %v659
      %692 = vst [vmem:[%s199 + $0x50] sm:$0xff] %v660
      %693 = vst [vmem:[%s199 + $0x58] sm:$0xff] %v661
      %694 = vst [vmem:[%s199 + $0x60] sm:$0xff] %v662
      %695 = vst [vmem:[%s199 + $0x68] sm:$0xff] %v663
      %696 = vst [vmem:[%s199 + $0x70] sm:$0xff] %v664
      %697 = vst [vmem:[%s199 + $0x78] sm:$0xff] %v665
      %698 = vst [vmem:[%s199 + $0x80] sm:$0xff] %v666
      %699 = vst [vmem:[%s199 + $0x88] sm:$0xff] %v667
      %700 = vst [vmem:[%s199 + $0x90] sm:$0xff] %v668
      %701 = vst [vmem:[%s199 + $0x98] sm:$0xff] %v669
      %702 = vst [vmem:[%s199 + $0xa0] sm:$0xff] %v670
      %703 = vst [vmem:[%s199 + $0xa8] sm:$0xff] %v671
      %704 = vst [vmem:[%s199 + $0xb0] sm:$0xff] %v672
      %705 = vst [vmem:[%s199 + $0xb8] sm:$0xff] %v673
      %706 = vst [vmem:[%s199 + $0xc0] sm:$0xff] %v674
      %707 = vst [vmem:[%s199 + $0xc8] sm:$0xff] %v675
      %708 = vst [vmem:[%s199 + $0xd0] sm:$0xff] %v676
      %709 = vst [vmem:[%s199 + $0xd8] sm:$0xff] %v677
      %710 = vst [vmem:[%s199 + $0xe0] sm:$0xff] %v678
      %711 = vst [vmem:[%s199 + $0xe8] sm:$0xff] %v679
      %712 = vst [vmem:[%s199 + $0xf0] sm:$0xff] %v680
      %713 = vst [vmem:[%s199 + $0xf8] sm:$0xff] %v681
      %s714 = smul.u32 32, %s15
      %p715 = scmp.lt.s32.totalorder %s714, 63
      %s716 = scalar_select %p715, %s714, 63
      %s717 = smul.addr %s716, 8
      %s718 = scalar_lea.vmem %s4, %s717
      // Predicated region
      $region37: #{mlp_forward.11} parent=35 // pred_check
        %p719 = pneg %p122
      $region38: #{mlp_forward.11} parent=35 // pred_check_branch
        %721 = sbr.rel (%p719) target = $region40
      $region39: #{mlp_forward.11} parent=35 // pred_region
        %s722 = smul.u32 32, %s15
      $region40: #{mlp_forward.11} parent=35 // pred_fallthru
        _
    $region36: #{mlp_forward.11} parent=5 // pred_fallthru
      _
    %p723 = scmp.le.s32.totalorder 2, %s10
    // Predicated region
    $region41: #{mlp_forward.11} parent=5 // pred_check
      %p724 = pneg %p723
    $region42: #{mlp_forward.11} parent=5 // pred_check_branch
      %726 = sbr.rel (%p724) target = $region44
    $region43: #{mlp_forward.11} parent=5 // pred_region
      %s727 = ssub.s32 %s10, 2
      // Predicated region
      $region45: #{mlp_forward.11} parent=43 // pred_check
        %p728 = pneg %p128
      $region46: #{mlp_forward.11} parent=43 // pred_check_branch
        %730 = sbr.rel (%p728) target = $region48
      $region47: #{mlp_forward.11} parent=43 // pred_region
        %s731 = smul.u32 32, %s16
        %p732 = scmp.lt.s32.totalorder %s731, 63
        %s733 = scalar_select %p732, %s731, 63
        %s734 = smul.addr %s733, 8
        %s735 = scalar_lea.vmem %s4, %s734
      $region48: #{mlp_forward.11} parent=43 // pred_fallthru
        _
    $region44: #{mlp_forward.11} parent=5 // pred_fallthru
      _
  $region6: #{mlp_forward.11} parent=0 // loop_footer
    %s14 = sadd.s32 1, %s10
  $region7: #{mlp_forward.11} parent=0 // loop_footer_branch
    %9 = sbr.rel target = $region3
  $region8: #{mlp_forward.11} parent=0 // loop_exit
    _

</llo_original>
